<compile_context>
chip_gen: v7x
topology: tpu7x:2x2x1
jax: 0.10.0
libtpu: 0.0.40
codegen_flags: <defaults>
</compile_context>

<pallas_src>
import math

import jax
import jax.numpy as jnp
from jax.experimental import pallas as pl
from jax.experimental.pallas import tpu as pltpu


# ----------------------------------------------------------------------------
# Fused whole-forward kernel
# ----------------------------------------------------------------------------
def make_fused_bert_kernel(cfg, B, S, compute_dtype=jnp.float32):
    H = cfg["hidden"]
    I = cfg["intermediate"]
    Hn = cfg["heads"]
    L = cfg["layers"]
    D = H // Hn
    c_gelu = math.sqrt(2.0 / math.pi)

    def mm(x, w):
        # MXU matmul; compute_dtype=bf16 is a drop-in for v6e/v7x, f32 keeps exactness.
        return jnp.dot(x.astype(compute_dtype), w.astype(compute_dtype),
                       preferred_element_type=jnp.float32)

    def layer_norm(x, g, b):
        mu = jnp.mean(x, axis=-1, keepdims=True)
        d = x - mu
        var = jnp.mean(d * d, axis=-1, keepdims=True)
        return d * jax.lax.rsqrt(var + 1e-12) * g + b

    def gelu(x):
        # TODO(synk): HF BertModel default GELU is the exact erf form; tanh approx kept
        # for guaranteed Mosaic lowering (negligible numeric drift).
        return 0.5 * x * (1.0 + jnp.tanh(c_gelu * (x + 0.044715 * x * x * x)))

    def kernel(emb_ref, maskb_ref, eg_ref, eb_ref,
               wqkv_ref, bqkv_ref, wo_ref, bo_ref,
               ln1g_ref, ln1b_ref, wi_ref, bi_ref, wf_ref, bf_ref,
               ln2g_ref, ln2b_ref, pw_ref, pb_ref, ow_ref, ob_ref,
               logits_ref, ctx_ref, cls_ref):
        maskb = maskb_ref[...]                                      # [B, S] additive
        h = layer_norm(emb_ref[...], eg_ref[...], eb_ref[...])      # [B*S, H]

        for l in range(L):                                          # static unroll
            # Fused QKV projection: one [M, H] x [H, 3H] MXU pass (scale folded in Wq).
            qkv = mm(h, wqkv_ref[l]) + bqkv_ref[l]                  # [B*S, 3H]

            # Attention for every (batch, head), all data resident in VMEM.
            for b in range(B):
                r0, r1 = b * S, (b + 1) * S
                mrow = jnp.broadcast_to(maskb[b:b + 1, :], (S, S))  # hoisted per batch
                for hd in range(Hn):
                    c0 = hd * D
                    q = qkv[r0:r1, c0:c0 + D]                       # [S, D] (pre-scaled)
                    k = qkv[r0:r1, H + c0:H + c0 + D]
                    v = qkv[r0:r1, 2 * H + c0:2 * H + c0 + D]
                    s = jax.lax.dot_general(
                        q.astype(compute_dtype), k.astype(compute_dtype),
                        (((1,), (1,)), ((), ())),
                        preferred_element_type=jnp.float32)         # [S, S]
                    s = s + mrow                                    # mask keys
                    s = s - jnp.max(s, axis=-1, keepdims=True)
                    p = jnp.exp(s)
                    p = p * pl.reciprocal(jnp.sum(p, axis=-1, keepdims=True),
                                          approx=True)
                    ctx_ref[r0:r1, c0:c0 + D] = mm(p, v)            # [S, D]

            attn_out = mm(ctx_ref[...], wo_ref[l]) + bo_ref[l]      # [B*S, H]
            x1 = layer_norm(attn_out + h, ln1g_ref[l], ln1b_ref[l])
            inter = gelu(mm(x1, wi_ref[l]) + bi_ref[l])             # [B*S, I]
            ffo = mm(inter, wf_ref[l]) + bf_ref[l]                  # [B*S, H]
            h = layer_norm(ffo + x1, ln2g_ref[l], ln2b_ref[l])

        # Pooler (tanh(Linear(CLS))) + classifier, fused.  Dropout(0.2) == identity.
        for b in range(B):
            cls_ref[b:b + 1, :] = h[b * S:b * S + 1, :]
        pooled = jnp.tanh(mm(cls_ref[...], pw_ref[...]) + pb_ref[...])
        logits_ref[...] = mm(pooled, ow_ref[...]) + ob_ref[...]

    return kernel


# ----------------------------------------------------------------------------
# Model wrapper: embedding gathers in plain JAX, everything else in one kernel.
# ----------------------------------------------------------------------------
def bert_model_forward(prepared, ids, mask, token_type_ids, cfg):
    B, S = ids.shape
    H, I = cfg["hidden"], cfg["intermediate"]
    Hn, L, C = cfg["heads"], cfg["layers"], cfg["num_classes"]
    D = H // Hn
    M = B * S

    # Embedding gathers are glue (data-dependent gather; kept outside the kernel).
    we = jnp.take(prepared["word_emb"], ids, axis=0)                 # [B,S,H]
    pe = prepared["pos_emb"][:S][None, :, :]                         # [1,S,H]
    te = jnp.take(prepared["type_emb"], token_type_ids, axis=0)      # [B,S,H]
    emb = (we + te + pe).reshape(M, H)                               # pre-LN sum

    # Additive key-padding mask, hoisted out of the kernel loops.
    maskb = (1.0 - mask.astype(jnp.float32)) * (-1e9)                # [B, S]

    operands = (emb, maskb,
                prepared["emb_ln_g"], prepared["emb_ln_b"],
                prepared["wqkv"], prepared["bqkv"],
                prepared["wo"], prepared["bo"],
                prepared["ln1_g"], prepared["ln1_b"],
                prepared["wi"], prepared["bi"],
                prepared["wf"], prepared["bf"],
                prepared["ln2_g"], prepared["ln2_b"],
                prepared["pooler_w"], prepared["pooler_b"],
                prepared["out_w"], prepared["out_b"])

    flops = (L * (2 * M * H * 3 * H + 2 * M * H * H + 2 * M * H * I + 2 * M * I * H
                  + B * Hn * 2 * (2 * S * S * D))
             + 2 * B * H * H + 2 * B * H * C)
    transcendentals = L * (B * Hn * S * S + M * I + 2 * M) + M + B * H
    bytes_accessed = (sum(math.prod(o.shape) * o.dtype.itemsize for o in operands)
                      + B * C * 4)

    kernel = make_fused_bert_kernel(cfg, B, S, compute_dtype=jnp.float32)

    return pl.pallas_call(
        kernel,
        out_shape=jax.ShapeDtypeStruct((B, C), jnp.float32),
        scratch_shapes=[pltpu.VMEM((M, H), jnp.float32),   # attention context
                        pltpu.VMEM((B, H), jnp.float32)],  # gathered CLS rows
        cost_estimate=pl.CostEstimate(flops=flops,
                                      transcendentals=transcendentals,
                                      bytes_accessed=bytes_accessed),
        compiler_params=pltpu.CompilerParams(vmem_limit_bytes=32 * 1024 * 1024),
    )(*operands)


# ----------------------------------------------------------------------------
# Parameter init (synthetic, deterministic) + packing into fused/stacked layout.
# ----------------------------------------------------------------------------
def init_params(key, cfg):
    H, I = cfg["hidden"], cfg["intermediate"]
    std = 0.02

    def nrm(k, shape):
        return jax.random.normal(k, shape, jnp.float32) * std

    keys = iter(jax.random.split(key, 8 + cfg["layers"] * 8))
    params = {
        "word_emb": nrm(next(keys), (cfg["vocab"], H)),
        "pos_emb": nrm(next(keys), (cfg["max_pos"], H)),
        "type_emb": nrm(next(keys), (cfg["type_vocab"], H)),
        "emb_ln_g": jnp.ones((H,), jnp.float32),
        "emb_ln_b": jnp.zeros((H,), jnp.float32),
        "pooler_w": nrm(next(keys), (H, H)),
        "pooler_b": jnp.zeros((H,), jnp.float32),
        "out_w": nrm(next(keys), (H, cfg["num_classes"])),
        "out_b": jnp.zeros((cfg["num_classes"],), jnp.float32),
        "layers": [],
    }
    for _ in range(cfg["layers"]):
        lp = {
            "wq": nrm(next(keys), (H, H)), "bq": jnp.zeros((H,), jnp.float32),
            "wk": nrm(next(keys), (H, H)), "bk": jnp.zeros((H,), jnp.float32),
            "wv": nrm(next(keys), (H, H)), "bv": jnp.zeros((H,), jnp.float32),
            "wo": nrm(next(keys), (H, H)), "bo": jnp.zeros((H,), jnp.float32),
            "ln1_g": jnp.ones((H,), jnp.float32), "ln1_b": jnp.zeros((H,), jnp.float32),
            "wi": nrm(next(keys), (H, I)), "bi": jnp.zeros((I,), jnp.float32),
            "wf": nrm(next(keys), (I, H)), "bf": jnp.zeros((H,), jnp.float32),
            "ln2_g": jnp.ones((H,), jnp.float32), "ln2_b": jnp.zeros((H,), jnp.float32),
        }
        params["layers"].append(lp)
    return params


def prepare_params(params, cfg):
    """Concatenate QKV (with 1/sqrt(D) folded into Wq/bq) and stack per-layer weights."""
    H, I, Hn = cfg["hidden"], cfg["intermediate"], cfg["heads"]
    D = H // Hn
    scale = 1.0 / math.sqrt(D)
    layers = params["layers"]
    return {
        "word_emb": params["word_emb"],
        "pos_emb": params["pos_emb"],
        "type_emb": params["type_emb"],
        "emb_ln_g": params["emb_ln_g"].reshape(1, H),
        "emb_ln_b": params["emb_ln_b"].reshape(1, H),
        "pooler_w": params["pooler_w"],
        "pooler_b": params["pooler_b"].reshape(1, H),
        "out_w": params["out_w"],
        "out_b": params["out_b"].reshape(1, -1),
        "wqkv": jnp.stack([jnp.concatenate(
            [lp["wq"] * scale, lp["wk"], lp["wv"]], axis=1) for lp in layers]),
        "bqkv": jnp.stack([jnp.concatenate(
            [lp["bq"] * scale, lp["bk"], lp["bv"]]).reshape(1, 3 * H) for lp in layers]),
        "wo": jnp.stack([lp["wo"] for lp in layers]),
        "bo": jnp.stack([lp["bo"].reshape(1, H) for lp in layers]),
        "ln1_g": jnp.stack([lp["ln1_g"].reshape(1, H) for lp in layers]),
        "ln1_b": jnp.stack([lp["ln1_b"].reshape(1, H) for lp in layers]),
        "wi": jnp.stack([lp["wi"] for lp in layers]),
        "bi": jnp.stack([lp["bi"].reshape(1, I) for lp in layers]),
        "wf": jnp.stack([lp["wf"] for lp in layers]),
        "bf": jnp.stack([lp["bf"].reshape(1, H) for lp in layers]),
        "ln2_g": jnp.stack([lp["ln2_g"].reshape(1, H) for lp in layers]),
        "ln2_b": jnp.stack([lp["ln2_b"].reshape(1, H) for lp in layers]),
    }


# ----------------------------------------------------------------------------
if __name__ == "__main__":
    cfg = dict(vocab=100, hidden=64, heads=4, layers=2, intermediate=256,
               max_pos=32, type_vocab=2, num_classes=6)

    key = jax.random.PRNGKey(0)
    kp, kid = jax.random.split(key)
    raw_params = init_params(kp, cfg)
    prepared = prepare_params(raw_params, cfg)

    B, S = 2, 8
    ids = jax.random.randint(kid, (B, S), 0, cfg["vocab"], dtype=jnp.int32)
    mask = jnp.array([[1, 1, 1, 1, 1, 1, 1, 1],
                      [1, 1, 1, 1, 1, 0, 0, 0]], dtype=jnp.int32)
    token_type_ids = jnp.zeros((B, S), dtype=jnp.int32)

    fwd = jax.jit(lambda i, m, t: bert_model_forward(prepared, i, m, t, cfg))
    logits = fwd(ids, mask, token_type_ids)
    jax.block_until_ready(logits)
    assert logits.shape == (B, cfg["num_classes"])
    print("KERNEL_OK")
</pallas_src>

<mosaic_0001>
module attributes {stable_mosaic.version = 11 : i64} {
  func.func @kernel(%arg0: memref<16x64xf32, #tpu.memory_space<vmem>>, %arg1: memref<2x8xf32, #tpu.memory_space<vmem>>, %arg2: memref<1x64xf32, #tpu.memory_space<vmem>>, %arg3: memref<1x64xf32, #tpu.memory_space<vmem>>, %arg4: memref<2x64x192xf32, #tpu.memory_space<vmem>>, %arg5: memref<2x1x192xf32, #tpu.memory_space<vmem>>, %arg6: memref<2x64x64xf32, #tpu.memory_space<vmem>>, %arg7: memref<2x1x64xf32, #tpu.memory_space<vmem>>, %arg8: memref<2x1x64xf32, #tpu.memory_space<vmem>>, %arg9: memref<2x1x64xf32, #tpu.memory_space<vmem>>, %arg10: memref<2x64x256xf32, #tpu.memory_space<vmem>>, %arg11: memref<2x1x256xf32, #tpu.memory_space<vmem>>, %arg12: memref<2x256x64xf32, #tpu.memory_space<vmem>>, %arg13: memref<2x1x64xf32, #tpu.memory_space<vmem>>, %arg14: memref<2x1x64xf32, #tpu.memory_space<vmem>>, %arg15: memref<2x1x64xf32, #tpu.memory_space<vmem>>, %arg16: memref<64x64xf32, #tpu.memory_space<vmem>>, %arg17: memref<1x64xf32, #tpu.memory_space<vmem>>, %arg18: memref<64x6xf32, #tpu.memory_space<vmem>>, %arg19: memref<1x6xf32, #tpu.memory_space<vmem>>, %arg20: memref<2x6xf32, #tpu.memory_space<vmem>>, %arg21: memref<16x64xf32, #tpu.memory_space<vmem>>, %arg22: memref<2x64xf32, #tpu.memory_space<vmem>>) attributes {dimension_semantics = [], scalar_prefetch = 0 : i64, scratch_operands = 2 : i64, tpu.core_type = #tpu.core_type<tc>} {
    %c0 = arith.constant 0 : index
    %c0_0 = arith.constant 0 : index
    %0 = vector.load %arg1[%c0, %c0_0] : memref<2x8xf32, #tpu.memory_space<vmem>>, vector<2x8xf32>
    %c0_1 = arith.constant 0 : index
    %c0_2 = arith.constant 0 : index
    %1 = vector.load %arg0[%c0_1, %c0_2] : memref<16x64xf32, #tpu.memory_space<vmem>>, vector<16x64xf32>
    %c0_3 = arith.constant 0 : index
    %c0_4 = arith.constant 0 : index
    %2 = vector.load %arg2[%c0_3, %c0_4] : memref<1x64xf32, #tpu.memory_space<vmem>>, vector<1x64xf32>
    %c0_5 = arith.constant 0 : index
    %c0_6 = arith.constant 0 : index
    %3 = vector.load %arg3[%c0_5, %c0_6] : memref<1x64xf32, #tpu.memory_space<vmem>>, vector<1x64xf32>
    %cst = arith.constant dense<0.000000e+00> : vector<16xf32>
    %4 = vector.multi_reduction <add>, %1, %cst [1] : vector<16x64xf32> to vector<16xf32>
    %5 = vector.shape_cast %4 : vector<16xf32> to vector<16x1xf32>
    %cst_7 = arith.constant 6.400000e+01 : f32
    %6 = vector.broadcast %cst_7 : f32 to vector<16x1xf32>
    %7 = arith.divf %5, %6 : vector<16x1xf32>
    %8 = vector.broadcast %7 : vector<16x1xf32> to vector<16x64xf32>
    %9 = arith.subf %1, %8 : vector<16x64xf32>
    %10 = arith.mulf %9, %9 : vector<16x64xf32>
    %cst_8 = arith.constant dense<0.000000e+00> : vector<16xf32>
    %11 = vector.multi_reduction <add>, %10, %cst_8 [1] : vector<16x64xf32> to vector<16xf32>
    %12 = vector.shape_cast %11 : vector<16xf32> to vector<16x1xf32>
    %cst_9 = arith.constant 6.400000e+01 : f32
    %13 = vector.broadcast %cst_9 : f32 to vector<16x1xf32>
    %14 = arith.divf %12, %13 : vector<16x1xf32>
    %cst_10 = arith.constant 9.99999996E-13 : f32
    %15 = vector.broadcast %cst_10 : f32 to vector<16x1xf32>
    %16 = arith.addf %14, %15 : vector<16x1xf32>
    %17 = math.rsqrt %16 : vector<16x1xf32>
    %18 = vector.broadcast %17 : vector<16x1xf32> to vector<16x64xf32>
    %19 = arith.mulf %9, %18 : vector<16x64xf32>
    %20 = vector.broadcast %2 : vector<1x64xf32> to vector<16x64xf32>
    %21 = arith.mulf %19, %20 : vector<16x64xf32>
    %22 = vector.broadcast %3 : vector<1x64xf32> to vector<16x64xf32>
    %23 = arith.addf %21, %22 : vector<16x64xf32>
    %c0_11 = arith.constant 0 : index
    %c0_12 = arith.constant 0 : index
    %c0_13 = arith.constant 0 : index
    %24 = vector.load %arg4[%c0_11, %c0_12, %c0_13] : memref<2x64x192xf32, #tpu.memory_space<vmem>>, vector<1x64x192xf32>
    %25 = vector.shape_cast %24 : vector<1x64x192xf32> to vector<64x192xf32>
    %cst_14 = arith.constant dense<0.000000e+00> : vector<16x192xf32>
    %26 = tpu.matmul %23, %25, %cst_14 {dimension_numbers = #tpu.dot_dimension_numbers<[1], [0], [0], [1], [0, 0, 1, 1], [], []>} : vector<16x64xf32>, vector<64x192xf32>, vector<16x192xf32> -> vector<16x192xf32>
    %c0_15 = arith.constant 0 : index
    %c0_16 = arith.constant 0 : index
    %c0_17 = arith.constant 0 : index
    %27 = vector.load %arg5[%c0_15, %c0_16, %c0_17] : memref<2x1x192xf32, #tpu.memory_space<vmem>>, vector<1x1x192xf32>
    %28 = vector.shape_cast %27 : vector<1x1x192xf32> to vector<1x192xf32>
    %29 = vector.broadcast %28 : vector<1x192xf32> to vector<16x192xf32>
    %30 = arith.addf %26, %29 : vector<16x192xf32>
    %31 = vector.extract_strided_slice %0 {offsets = [0, 0], sizes = [1, 8], strides = [1, 1]} : vector<2x8xf32> to vector<1x8xf32>
    %32 = vector.shape_cast %31 : vector<1x8xf32> to vector<1x8xf32>
    %33 = vector.broadcast %32 : vector<1x8xf32> to vector<8x8xf32>
    %34 = vector.extract_strided_slice %30 {offsets = [0, 0], sizes = [8, 16], strides = [1, 1]} : vector<16x192xf32> to vector<8x16xf32>
    %35 = vector.extract_strided_slice %30 {offsets = [0, 64], sizes = [8, 16], strides = [1, 1]} : vector<16x192xf32> to vector<8x16xf32>
    %36 = vector.extract_strided_slice %30 {offsets = [0, 128], sizes = [8, 16], strides = [1, 1]} : vector<16x192xf32> to vector<8x16xf32>
    %cst_18 = arith.constant dense<0.000000e+00> : vector<8x8xf32>
    %37 = tpu.matmul %34, %35, %cst_18 {dimension_numbers = #tpu.dot_dimension_numbers<[1], [1], [0], [0], [0, 0, 1, 0], [], []>} : vector<8x16xf32>, vector<8x16xf32>, vector<8x8xf32> -> vector<8x8xf32>
    %38 = arith.addf %37, %33 : vector<8x8xf32>
    %cst_19 = arith.constant dense<0xFF800000> : vector<8xf32>
    %39 = vector.multi_reduction <maximumf>, %38, %cst_19 [1] : vector<8x8xf32> to vector<8xf32>
    %40 = vector.shape_cast %39 : vector<8xf32> to vector<8x1xf32>
    %41 = vector.broadcast %40 : vector<8x1xf32> to vector<8x8xf32>
    %42 = arith.subf %38, %41 : vector<8x8xf32>
    %43 = math.exp %42 : vector<8x8xf32>
    %cst_20 = arith.constant dense<0.000000e+00> : vector<8xf32>
    %44 = vector.multi_reduction <add>, %43, %cst_20 [1] : vector<8x8xf32> to vector<8xf32>
    %45 = vector.shape_cast %44 : vector<8xf32> to vector<8x1xf32>
    %46 = tpu.reciprocal %45 {approx = true} : vector<8x1xf32> -> vector<8x1xf32>
    %47 = vector.broadcast %46 : vector<8x1xf32> to vector<8x8xf32>
    %48 = arith.mulf %43, %47 : vector<8x8xf32>
    %cst_21 = arith.constant dense<0.000000e+00> : vector<8x16xf32>
    %49 = tpu.matmul %48, %36, %cst_21 {dimension_numbers = #tpu.dot_dimension_numbers<[1], [0], [0], [1], [0, 0, 1, 1], [], []>} : vector<8x8xf32>, vector<8x16xf32>, vector<8x16xf32> -> vector<8x16xf32>
    %c0_22 = arith.constant 0 : index
    %c0_23 = arith.constant 0 : index
    %50 = vector.load %arg21[%c0_22, %c0_23] : memref<16x64xf32, #tpu.memory_space<vmem>>, vector<8x16xf32>
    tpu.vector_store %arg21[%c0_22, %c0_23], %49 {strides = array<i32>} : memref<16x64xf32, #tpu.memory_space<vmem>>, vector<8x16xf32>,
    %51 = vector.extract_strided_slice %30 {offsets = [0, 16], sizes = [8, 16], strides = [1, 1]} : vector<16x192xf32> to vector<8x16xf32>
    %52 = vector.extract_strided_slice %30 {offsets = [0, 80], sizes = [8, 16], strides = [1, 1]} : vector<16x192xf32> to vector<8x16xf32>
    %53 = vector.extract_strided_slice %30 {offsets = [0, 144], sizes = [8, 16], strides = [1, 1]} : vector<16x192xf32> to vector<8x16xf32>
    %cst_24 = arith.constant dense<0.000000e+00> : vector<8x8xf32>
    %54 = tpu.matmul %51, %52, %cst_24 {dimension_numbers = #tpu.dot_dimension_numbers<[1], [1], [0], [0], [0, 0, 1, 0], [], []>} : vector<8x16xf32>, vector<8x16xf32>, vector<8x8xf32> -> vector<8x8xf32>
    %55 = arith.addf %54, %33 : vector<8x8xf32>
    %cst_25 = arith.constant dense<0xFF800000> : vector<8xf32>
    %56 = vector.multi_reduction <maximumf>, %55, %cst_25 [1] : vector<8x8xf32> to vector<8xf32>
    %57 = vector.shape_cast %56 : vector<8xf32> to vector<8x1xf32>
    %58 = vector.broadcast %57 : vector<8x1xf32> to vector<8x8xf32>
    %59 = arith.subf %55, %58 : vector<8x8xf32>
    %60 = math.exp %59 : vector<8x8xf32>
    %cst_26 = arith.constant dense<0.000000e+00> : vector<8xf32>
    %61 = vector.multi_reduction <add>, %60, %cst_26 [1] : vector<8x8xf32> to vector<8xf32>
    %62 = vector.shape_cast %61 : vector<8xf32> to vector<8x1xf32>
    %63 = tpu.reciprocal %62 {approx = true} : vector<8x1xf32> -> vector<8x1xf32>
    %64 = vector.broadcast %63 : vector<8x1xf32> to vector<8x8xf32>
    %65 = arith.mulf %60, %64 : vector<8x8xf32>
    %cst_27 = arith.constant dense<0.000000e+00> : vector<8x16xf32>
    %66 = tpu.matmul %65, %53, %cst_27 {dimension_numbers = #tpu.dot_dimension_numbers<[1], [0], [0], [1], [0, 0, 1, 1], [], []>} : vector<8x8xf32>, vector<8x16xf32>, vector<8x16xf32> -> vector<8x16xf32>
    %c0_28 = arith.constant 0 : index
    %c16 = arith.constant 16 : index
    %67 = vector.load %arg21[%c0_28, %c16] : memref<16x64xf32, #tpu.memory_space<vmem>>, vector<8x16xf32>
    tpu.vector_store %arg21[%c0_28, %c16], %66 {strides = array<i32>} : memref<16x64xf32, #tpu.memory_space<vmem>>, vector<8x16xf32>,
    %68 = vector.extract_strided_slice %30 {offsets = [0, 32], sizes = [8, 16], strides = [1, 1]} : vector<16x192xf32> to vector<8x16xf32>
    %69 = vector.extract_strided_slice %30 {offsets = [0, 96], sizes = [8, 16], strides = [1, 1]} : vector<16x192xf32> to vector<8x16xf32>
    %70 = vector.extract_strided_slice %30 {offsets = [0, 160], sizes = [8, 16], strides = [1, 1]} : vector<16x192xf32> to vector<8x16xf32>
    %cst_29 = arith.constant dense<0.000000e+00> : vector<8x8xf32>
    %71 = tpu.matmul %68, %69, %cst_29 {dimension_numbers = #tpu.dot_dimension_numbers<[1], [1], [0], [0], [0, 0, 1, 0], [], []>} : vector<8x16xf32>, vector<8x16xf32>, vector<8x8xf32> -> vector<8x8xf32>
    %72 = arith.addf %71, %33 : vector<8x8xf32>
    %cst_30 = arith.constant dense<0xFF800000> : vector<8xf32>
    %73 = vector.multi_reduction <maximumf>, %72, %cst_30 [1] : vector<8x8xf32> to vector<8xf32>
    %74 = vector.shape_cast %73 : vector<8xf32> to vector<8x1xf32>
    %75 = vector.broadcast %74 : vector<8x1xf32> to vector<8x8xf32>
    %76 = arith.subf %72, %75 : vector<8x8xf32>
    %77 = math.exp %76 : vector<8x8xf32>
    %cst_31 = arith.constant dense<0.000000e+00> : vector<8xf32>
    %78 = vector.multi_reduction <add>, %77, %cst_31 [1] : vector<8x8xf32> to vector<8xf32>
    %79 = vector.shape_cast %78 : vector<8xf32> to vector<8x1xf32>
    %80 = tpu.reciprocal %79 {approx = true} : vector<8x1xf32> -> vector<8x1xf32>
    %81 = vector.broadcast %80 : vector<8x1xf32> to vector<8x8xf32>
    %82 = arith.mulf %77, %81 : vector<8x8xf32>
    %cst_32 = arith.constant dense<0.000000e+00> : vector<8x16xf32>
    %83 = tpu.matmul %82, %70, %cst_32 {dimension_numbers = #tpu.dot_dimension_numbers<[1], [0], [0], [1], [0, 0, 1, 1], [], []>} : vector<8x8xf32>, vector<8x16xf32>, vector<8x16xf32> -> vector<8x16xf32>
    %c0_33 = arith.constant 0 : index
    %c32 = arith.constant 32 : index
    %84 = vector.load %arg21[%c0_33, %c32] : memref<16x64xf32, #tpu.memory_space<vmem>>, vector<8x16xf32>
    tpu.vector_store %arg21[%c0_33, %c32], %83 {strides = array<i32>} : memref<16x64xf32, #tpu.memory_space<vmem>>, vector<8x16xf32>,
    %85 = vector.extract_strided_slice %30 {offsets = [0, 48], sizes = [8, 16], strides = [1, 1]} : vector<16x192xf32> to vector<8x16xf32>
    %86 = vector.extract_strided_slice %30 {offsets = [0, 112], sizes = [8, 16], strides = [1, 1]} : vector<16x192xf32> to vector<8x16xf32>
    %87 = vector.extract_strided_slice %30 {offsets = [0, 176], sizes = [8, 16], strides = [1, 1]} : vector<16x192xf32> to vector<8x16xf32>
    %cst_34 = arith.constant dense<0.000000e+00> : vector<8x8xf32>
    %88 = tpu.matmul %85, %86, %cst_34 {dimension_numbers = #tpu.dot_dimension_numbers<[1], [1], [0], [0], [0, 0, 1, 0], [], []>} : vector<8x16xf32>, vector<8x16xf32>, vector<8x8xf32> -> vector<8x8xf32>
    %89 = arith.addf %88, %33 : vector<8x8xf32>
    %cst_35 = arith.constant dense<0xFF800000> : vector<8xf32>
    %90 = vector.multi_reduction <maximumf>, %89, %cst_35 [1] : vector<8x8xf32> to vector<8xf32>
    %91 = vector.shape_cast %90 : vector<8xf32> to vector<8x1xf32>
    %92 = vector.broadcast %91 : vector<8x1xf32> to vector<8x8xf32>
    %93 = arith.subf %89, %92 : vector<8x8xf32>
    %94 = math.exp %93 : vector<8x8xf32>
    %cst_36 = arith.constant dense<0.000000e+00> : vector<8xf32>
    %95 = vector.multi_reduction <add>, %94, %cst_36 [1] : vector<8x8xf32> to vector<8xf32>
    %96 = vector.shape_cast %95 : vector<8xf32> to vector<8x1xf32>
    %97 = tpu.reciprocal %96 {approx = true} : vector<8x1xf32> -> vector<8x1xf32>
    %98 = vector.broadcast %97 : vector<8x1xf32> to vector<8x8xf32>
    %99 = arith.mulf %94, %98 : vector<8x8xf32>
    %cst_37 = arith.constant dense<0.000000e+00> : vector<8x16xf32>
    %100 = tpu.matmul %99, %87, %cst_37 {dimension_numbers = #tpu.dot_dimension_numbers<[1], [0], [0], [1], [0, 0, 1, 1], [], []>} : vector<8x8xf32>, vector<8x16xf32>, vector<8x16xf32> -> vector<8x16xf32>
    %c0_38 = arith.constant 0 : index
    %c48 = arith.constant 48 : index
    %101 = vector.load %arg21[%c0_38, %c48] : memref<16x64xf32, #tpu.memory_space<vmem>>, vector<8x16xf32>
    tpu.vector_store %arg21[%c0_38, %c48], %100 {strides = array<i32>} : memref<16x64xf32, #tpu.memory_space<vmem>>, vector<8x16xf32>,
    %102 = vector.extract_strided_slice %0 {offsets = [1, 0], sizes = [1, 8], strides = [1, 1]} : vector<2x8xf32> to vector<1x8xf32>
    %103 = vector.shape_cast %102 : vector<1x8xf32> to vector<1x8xf32>
    %104 = vector.broadcast %103 : vector<1x8xf32> to vector<8x8xf32>
    %105 = vector.extract_strided_slice %30 {offsets = [8, 0], sizes = [8, 16], strides = [1, 1]} : vector<16x192xf32> to vector<8x16xf32>
    %106 = vector.extract_strided_slice %30 {offsets = [8, 64], sizes = [8, 16], strides = [1, 1]} : vector<16x192xf32> to vector<8x16xf32>
    %107 = vector.extract_strided_slice %30 {offsets = [8, 128], sizes = [8, 16], strides = [1, 1]} : vector<16x192xf32> to vector<8x16xf32>
    %cst_39 = arith.constant dense<0.000000e+00> : vector<8x8xf32>
    %108 = tpu.matmul %105, %106, %cst_39 {dimension_numbers = #tpu.dot_dimension_numbers<[1], [1], [0], [0], [0, 0, 1, 0], [], []>} : vector<8x16xf32>, vector<8x16xf32>, vector<8x8xf32> -> vector<8x8xf32>
    %109 = arith.addf %108, %104 : vector<8x8xf32>
    %cst_40 = arith.constant dense<0xFF800000> : vector<8xf32>
    %110 = vector.multi_reduction <maximumf>, %109, %cst_40 [1] : vector<8x8xf32> to vector<8xf32>
    %111 = vector.shape_cast %110 : vector<8xf32> to vector<8x1xf32>
    %112 = vector.broadcast %111 : vector<8x1xf32> to vector<8x8xf32>
    %113 = arith.subf %109, %112 : vector<8x8xf32>
    %114 = math.exp %113 : vector<8x8xf32>
    %cst_41 = arith.constant dense<0.000000e+00> : vector<8xf32>
    %115 = vector.multi_reduction <add>, %114, %cst_41 [1] : vector<8x8xf32> to vector<8xf32>
    %116 = vector.shape_cast %115 : vector<8xf32> to vector<8x1xf32>
    %117 = tpu.reciprocal %116 {approx = true} : vector<8x1xf32> -> vector<8x1xf32>
    %118 = vector.broadcast %117 : vector<8x1xf32> to vector<8x8xf32>
    %119 = arith.mulf %114, %118 : vector<8x8xf32>
    %cst_42 = arith.constant dense<0.000000e+00> : vector<8x16xf32>
    %120 = tpu.matmul %119, %107, %cst_42 {dimension_numbers = #tpu.dot_dimension_numbers<[1], [0], [0], [1], [0, 0, 1, 1], [], []>} : vector<8x8xf32>, vector<8x16xf32>, vector<8x16xf32> -> vector<8x16xf32>
    %c8 = arith.constant 8 : index
    %c0_43 = arith.constant 0 : index
    %121 = vector.load %arg21[%c8, %c0_43] : memref<16x64xf32, #tpu.memory_space<vmem>>, vector<8x16xf32>
    tpu.vector_store %arg21[%c8, %c0_43], %120 {strides = array<i32>} : memref<16x64xf32, #tpu.memory_space<vmem>>, vector<8x16xf32>,
    %122 = vector.extract_strided_slice %30 {offsets = [8, 16], sizes = [8, 16], strides = [1, 1]} : vector<16x192xf32> to vector<8x16xf32>
    %123 = vector.extract_strided_slice %30 {offsets = [8, 80], sizes = [8, 16], strides = [1, 1]} : vector<16x192xf32> to vector<8x16xf32>
    %124 = vector.extract_strided_slice %30 {offsets = [8, 144], sizes = [8, 16], strides = [1, 1]} : vector<16x192xf32> to vector<8x16xf32>
    %cst_44 = arith.constant dense<0.000000e+00> : vector<8x8xf32>
    %125 = tpu.matmul %122, %123, %cst_44 {dimension_numbers = #tpu.dot_dimension_numbers<[1], [1], [0], [0], [0, 0, 1, 0], [], []>} : vector<8x16xf32>, vector<8x16xf32>, vector<8x8xf32> -> vector<8x8xf32>
    %126 = arith.addf %125, %104 : vector<8x8xf32>
    %cst_45 = arith.constant dense<0xFF800000> : vector<8xf32>
    %127 = vector.multi_reduction <maximumf>, %126, %cst_45 [1] : vector<8x8xf32> to vector<8xf32>
    %128 = vector.shape_cast %127 : vector<8xf32> to vector<8x1xf32>
    %129 = vector.broadcast %128 : vector<8x1xf32> to vector<8x8xf32>
    %130 = arith.subf %126, %129 : vector<8x8xf32>
    %131 = math.exp %130 : vector<8x8xf32>
    %cst_46 = arith.constant dense<0.000000e+00> : vector<8xf32>
    %132 = vector.multi_reduction <add>, %131, %cst_46 [1] : vector<8x8xf32> to vector<8xf32>
    %133 = vector.shape_cast %132 : vector<8xf32> to vector<8x1xf32>
    %134 = tpu.reciprocal %133 {approx = true} : vector<8x1xf32> -> vector<8x1xf32>
    %135 = vector.broadcast %134 : vector<8x1xf32> to vector<8x8xf32>
    %136 = arith.mulf %131, %135 : vector<8x8xf32>
    %cst_47 = arith.constant dense<0.000000e+00> : vector<8x16xf32>
    %137 = tpu.matmul %136, %124, %cst_47 {dimension_numbers = #tpu.dot_dimension_numbers<[1], [0], [0], [1], [0, 0, 1, 1], [], []>} : vector<8x8xf32>, vector<8x16xf32>, vector<8x16xf32> -> vector<8x16xf32>
    %c8_48 = arith.constant 8 : index
    %c16_49 = arith.constant 16 : index
    %138 = vector.load %arg21[%c8_48, %c16_49] : memref<16x64xf32, #tpu.memory_space<vmem>>, vector<8x16xf32>
    tpu.vector_store %arg21[%c8_48, %c16_49], %137 {strides = array<i32>} : memref<16x64xf32, #tpu.memory_space<vmem>>, vector<8x16xf32>,
    %139 = vector.extract_strided_slice %30 {offsets = [8, 32], sizes = [8, 16], strides = [1, 1]} : vector<16x192xf32> to vector<8x16xf32>
    %140 = vector.extract_strided_slice %30 {offsets = [8, 96], sizes = [8, 16], strides = [1, 1]} : vector<16x192xf32> to vector<8x16xf32>
    %141 = vector.extract_strided_slice %30 {offsets = [8, 160], sizes = [8, 16], strides = [1, 1]} : vector<16x192xf32> to vector<8x16xf32>
    %cst_50 = arith.constant dense<0.000000e+00> : vector<8x8xf32>
    %142 = tpu.matmul %139, %140, %cst_50 {dimension_numbers = #tpu.dot_dimension_numbers<[1], [1], [0], [0], [0, 0, 1, 0], [], []>} : vector<8x16xf32>, vector<8x16xf32>, vector<8x8xf32> -> vector<8x8xf32>
    %143 = arith.addf %142, %104 : vector<8x8xf32>
    %cst_51 = arith.constant dense<0xFF800000> : vector<8xf32>
    %144 = vector.multi_reduction <maximumf>, %143, %cst_51 [1] : vector<8x8xf32> to vector<8xf32>
    %145 = vector.shape_cast %144 : vector<8xf32> to vector<8x1xf32>
    %146 = vector.broadcast %145 : vector<8x1xf32> to vector<8x8xf32>
    %147 = arith.subf %143, %146 : vector<8x8xf32>
    %148 = math.exp %147 : vector<8x8xf32>
    %cst_52 = arith.constant dense<0.000000e+00> : vector<8xf32>
    %149 = vector.multi_reduction <add>, %148, %cst_52 [1] : vector<8x8xf32> to vector<8xf32>
    %150 = vector.shape_cast %149 : vector<8xf32> to vector<8x1xf32>
    %151 = tpu.reciprocal %150 {approx = true} : vector<8x1xf32> -> vector<8x1xf32>
    %152 = vector.broadcast %151 : vector<8x1xf32> to vector<8x8xf32>
    %153 = arith.mulf %148, %152 : vector<8x8xf32>
    %cst_53 = arith.constant dense<0.000000e+00> : vector<8x16xf32>
    %154 = tpu.matmul %153, %141, %cst_53 {dimension_numbers = #tpu.dot_dimension_numbers<[1], [0], [0], [1], [0, 0, 1, 1], [], []>} : vector<8x8xf32>, vector<8x16xf32>, vector<8x16xf32> -> vector<8x16xf32>
    %c8_54 = arith.constant 8 : index
    %c32_55 = arith.constant 32 : index
    %155 = vector.load %arg21[%c8_54, %c32_55] : memref<16x64xf32, #tpu.memory_space<vmem>>, vector<8x16xf32>
    tpu.vector_store %arg21[%c8_54, %c32_55], %154 {strides = array<i32>} : memref<16x64xf32, #tpu.memory_space<vmem>>, vector<8x16xf32>,
    %156 = vector.extract_strided_slice %30 {offsets = [8, 48], sizes = [8, 16], strides = [1, 1]} : vector<16x192xf32> to vector<8x16xf32>
    %157 = vector.extract_strided_slice %30 {offsets = [8, 112], sizes = [8, 16], strides = [1, 1]} : vector<16x192xf32> to vector<8x16xf32>
    %158 = vector.extract_strided_slice %30 {offsets = [8, 176], sizes = [8, 16], strides = [1, 1]} : vector<16x192xf32> to vector<8x16xf32>
    %cst_56 = arith.constant dense<0.000000e+00> : vector<8x8xf32>
    %159 = tpu.matmul %156, %157, %cst_56 {dimension_numbers = #tpu.dot_dimension_numbers<[1], [1], [0], [0], [0, 0, 1, 0], [], []>} : vector<8x16xf32>, vector<8x16xf32>, vector<8x8xf32> -> vector<8x8xf32>
    %160 = arith.addf %159, %104 : vector<8x8xf32>
    %cst_57 = arith.constant dense<0xFF800000> : vector<8xf32>
    %161 = vector.multi_reduction <maximumf>, %160, %cst_57 [1] : vector<8x8xf32> to vector<8xf32>
    %162 = vector.shape_cast %161 : vector<8xf32> to vector<8x1xf32>
    %163 = vector.broadcast %162 : vector<8x1xf32> to vector<8x8xf32>
    %164 = arith.subf %160, %163 : vector<8x8xf32>
    %165 = math.exp %164 : vector<8x8xf32>
    %cst_58 = arith.constant dense<0.000000e+00> : vector<8xf32>
    %166 = vector.multi_reduction <add>, %165, %cst_58 [1] : vector<8x8xf32> to vector<8xf32>
    %167 = vector.shape_cast %166 : vector<8xf32> to vector<8x1xf32>
    %168 = tpu.reciprocal %167 {approx = true} : vector<8x1xf32> -> vector<8x1xf32>
    %169 = vector.broadcast %168 : vector<8x1xf32> to vector<8x8xf32>
    %170 = arith.mulf %165, %169 : vector<8x8xf32>
    %cst_59 = arith.constant dense<0.000000e+00> : vector<8x16xf32>
    %171 = tpu.matmul %170, %158, %cst_59 {dimension_numbers = #tpu.dot_dimension_numbers<[1], [0], [0], [1], [0, 0, 1, 1], [], []>} : vector<8x8xf32>, vector<8x16xf32>, vector<8x16xf32> -> vector<8x16xf32>
    %c8_60 = arith.constant 8 : index
    %c48_61 = arith.constant 48 : index
    %172 = vector.load %arg21[%c8_60, %c48_61] : memref<16x64xf32, #tpu.memory_space<vmem>>, vector<8x16xf32>
    tpu.vector_store %arg21[%c8_60, %c48_61], %171 {strides = array<i32>} : memref<16x64xf32, #tpu.memory_space<vmem>>, vector<8x16xf32>,
    %c0_62 = arith.constant 0 : index
    %c0_63 = arith.constant 0 : index
    %173 = vector.load %arg21[%c0_62, %c0_63] : memref<16x64xf32, #tpu.memory_space<vmem>>, vector<16x64xf32>
    %c0_64 = arith.constant 0 : index
    %c0_65 = arith.constant 0 : index
    %c0_66 = arith.constant 0 : index
    %174 = vector.load %arg6[%c0_64, %c0_65, %c0_66] : memref<2x64x64xf32, #tpu.memory_space<vmem>>, vector<1x64x64xf32>
    %175 = vector.shape_cast %174 : vector<1x64x64xf32> to vector<64x64xf32>
    %cst_67 = arith.constant dense<0.000000e+00> : vector<16x64xf32>
    %176 = tpu.matmul %173, %175, %cst_67 {dimension_numbers = #tpu.dot_dimension_numbers<[1], [0], [0], [1], [0, 0, 1, 1], [], []>} : vector<16x64xf32>, vector<64x64xf32>, vector<16x64xf32> -> vector<16x64xf32>
    %c0_68 = arith.constant 0 : index
    %c0_69 = arith.constant 0 : index
    %c0_70 = arith.constant 0 : index
    %177 = vector.load %arg7[%c0_68, %c0_69, %c0_70] : memref<2x1x64xf32, #tpu.memory_space<vmem>>, vector<1x1x64xf32>
    %178 = vector.shape_cast %177 : vector<1x1x64xf32> to vector<1x64xf32>
    %179 = vector.broadcast %178 : vector<1x64xf32> to vector<16x64xf32>
    %180 = arith.addf %176, %179 : vector<16x64xf32>
    %181 = arith.addf %180, %23 : vector<16x64xf32>
    %c0_71 = arith.constant 0 : index
    %c0_72 = arith.constant 0 : index
    %c0_73 = arith.constant 0 : index
    %182 = vector.load %arg8[%c0_71, %c0_72, %c0_73] : memref<2x1x64xf32, #tpu.memory_space<vmem>>, vector<1x1x64xf32>
    %183 = vector.shape_cast %182 : vector<1x1x64xf32> to vector<1x64xf32>
    %c0_74 = arith.constant 0 : index
    %c0_75 = arith.constant 0 : index
    %c0_76 = arith.constant 0 : index
    %184 = vector.load %arg9[%c0_74, %c0_75, %c0_76] : memref<2x1x64xf32, #tpu.memory_space<vmem>>, vector<1x1x64xf32>
    %185 = vector.shape_cast %184 : vector<1x1x64xf32> to vector<1x64xf32>
    %cst_77 = arith.constant dense<0.000000e+00> : vector<16xf32>
    %186 = vector.multi_reduction <add>, %181, %cst_77 [1] : vector<16x64xf32> to vector<16xf32>
    %187 = vector.shape_cast %186 : vector<16xf32> to vector<16x1xf32>
    %cst_78 = arith.constant 6.400000e+01 : f32
    %188 = vector.broadcast %cst_78 : f32 to vector<16x1xf32>
    %189 = arith.divf %187, %188 : vector<16x1xf32>
    %190 = vector.broadcast %189 : vector<16x1xf32> to vector<16x64xf32>
    %191 = arith.subf %181, %190 : vector<16x64xf32>
    %192 = arith.mulf %191, %191 : vector<16x64xf32>
    %cst_79 = arith.constant dense<0.000000e+00> : vector<16xf32>
    %193 = vector.multi_reduction <add>, %192, %cst_79 [1] : vector<16x64xf32> to vector<16xf32>
    %194 = vector.shape_cast %193 : vector<16xf32> to vector<16x1xf32>
    %cst_80 = arith.constant 6.400000e+01 : f32
    %195 = vector.broadcast %cst_80 : f32 to vector<16x1xf32>
    %196 = arith.divf %194, %195 : vector<16x1xf32>
    %cst_81 = arith.constant 9.99999996E-13 : f32
    %197 = vector.broadcast %cst_81 : f32 to vector<16x1xf32>
    %198 = arith.addf %196, %197 : vector<16x1xf32>
    %199 = math.rsqrt %198 : vector<16x1xf32>
    %200 = vector.broadcast %199 : vector<16x1xf32> to vector<16x64xf32>
    %201 = arith.mulf %191, %200 : vector<16x64xf32>
    %202 = vector.broadcast %183 : vector<1x64xf32> to vector<16x64xf32>
    %203 = arith.mulf %201, %202 : vector<16x64xf32>
    %204 = vector.broadcast %185 : vector<1x64xf32> to vector<16x64xf32>
    %205 = arith.addf %203, %204 : vector<16x64xf32>
    %c0_82 = arith.constant 0 : index
    %c0_83 = arith.constant 0 : index
    %c0_84 = arith.constant 0 : index
    %206 = vector.load %arg10[%c0_82, %c0_83, %c0_84] : memref<2x64x256xf32, #tpu.memory_space<vmem>>, vector<1x64x256xf32>
    %207 = vector.shape_cast %206 : vector<1x64x256xf32> to vector<64x256xf32>
    %cst_85 = arith.constant dense<0.000000e+00> : vector<16x256xf32>
    %208 = tpu.matmul %205, %207, %cst_85 {dimension_numbers = #tpu.dot_dimension_numbers<[1], [0], [0], [1], [0, 0, 1, 1], [], []>} : vector<16x64xf32>, vector<64x256xf32>, vector<16x256xf32> -> vector<16x256xf32>
    %c0_86 = arith.constant 0 : index
    %c0_87 = arith.constant 0 : index
    %c0_88 = arith.constant 0 : index
    %209 = vector.load %arg11[%c0_86, %c0_87, %c0_88] : memref<2x1x256xf32, #tpu.memory_space<vmem>>, vector<1x1x256xf32>
    %210 = vector.shape_cast %209 : vector<1x1x256xf32> to vector<1x256xf32>
    %211 = vector.broadcast %210 : vector<1x256xf32> to vector<16x256xf32>
    %212 = arith.addf %208, %211 : vector<16x256xf32>
    %cst_89 = arith.constant 5.000000e-01 : f32
    %213 = vector.broadcast %cst_89 : f32 to vector<16x256xf32>
    %214 = arith.mulf %213, %212 : vector<16x256xf32>
    %cst_90 = arith.constant 4.471500e-02 : f32
    %215 = vector.broadcast %cst_90 : f32 to vector<16x256xf32>
    %216 = arith.mulf %215, %212 : vector<16x256xf32>
    %217 = arith.mulf %216, %212 : vector<16x256xf32>
    %218 = arith.mulf %217, %212 : vector<16x256xf32>
    %219 = arith.addf %212, %218 : vector<16x256xf32>
    %cst_91 = arith.constant 0.797884583 : f32
    %220 = vector.broadcast %cst_91 : f32 to vector<16x256xf32>
    %221 = arith.mulf %220, %219 : vector<16x256xf32>
    %222 = math.tanh %221 : vector<16x256xf32>
    %cst_92 = arith.constant 1.000000e+00 : f32
    %223 = vector.broadcast %cst_92 : f32 to vector<16x256xf32>
    %224 = arith.addf %223, %222 : vector<16x256xf32>
    %225 = arith.mulf %214, %224 : vector<16x256xf32>
    %c0_93 = arith.constant 0 : index
    %c0_94 = arith.constant 0 : index
    %c0_95 = arith.constant 0 : index
    %226 = vector.load %arg12[%c0_93, %c0_94, %c0_95] : memref<2x256x64xf32, #tpu.memory_space<vmem>>, vector<1x256x64xf32>
    %227 = vector.shape_cast %226 : vector<1x256x64xf32> to vector<256x64xf32>
    %cst_96 = arith.constant dense<0.000000e+00> : vector<16x64xf32>
    %228 = tpu.matmul %225, %227, %cst_96 {dimension_numbers = #tpu.dot_dimension_numbers<[1], [0], [0], [1], [0, 0, 1, 1], [], []>} : vector<16x256xf32>, vector<256x64xf32>, vector<16x64xf32> -> vector<16x64xf32>
    %c0_97 = arith.constant 0 : index
    %c0_98 = arith.constant 0 : index
    %c0_99 = arith.constant 0 : index
    %229 = vector.load %arg13[%c0_97, %c0_98, %c0_99] : memref<2x1x64xf32, #tpu.memory_space<vmem>>, vector<1x1x64xf32>
    %230 = vector.shape_cast %229 : vector<1x1x64xf32> to vector<1x64xf32>
    %231 = vector.broadcast %230 : vector<1x64xf32> to vector<16x64xf32>
    %232 = arith.addf %228, %231 : vector<16x64xf32>
    %233 = arith.addf %232, %205 : vector<16x64xf32>
    %c0_100 = arith.constant 0 : index
    %c0_101 = arith.constant 0 : index
    %c0_102 = arith.constant 0 : index
    %234 = vector.load %arg14[%c0_100, %c0_101, %c0_102] : memref<2x1x64xf32, #tpu.memory_space<vmem>>, vector<1x1x64xf32>
    %235 = vector.shape_cast %234 : vector<1x1x64xf32> to vector<1x64xf32>
    %c0_103 = arith.constant 0 : index
    %c0_104 = arith.constant 0 : index
    %c0_105 = arith.constant 0 : index
    %236 = vector.load %arg15[%c0_103, %c0_104, %c0_105] : memref<2x1x64xf32, #tpu.memory_space<vmem>>, vector<1x1x64xf32>
    %237 = vector.shape_cast %236 : vector<1x1x64xf32> to vector<1x64xf32>
    %cst_106 = arith.constant dense<0.000000e+00> : vector<16xf32>
    %238 = vector.multi_reduction <add>, %233, %cst_106 [1] : vector<16x64xf32> to vector<16xf32>
    %239 = vector.shape_cast %238 : vector<16xf32> to vector<16x1xf32>
    %cst_107 = arith.constant 6.400000e+01 : f32
    %240 = vector.broadcast %cst_107 : f32 to vector<16x1xf32>
    %241 = arith.divf %239, %240 : vector<16x1xf32>
    %242 = vector.broadcast %241 : vector<16x1xf32> to vector<16x64xf32>
    %243 = arith.subf %233, %242 : vector<16x64xf32>
    %244 = arith.mulf %243, %243 : vector<16x64xf32>
    %cst_108 = arith.constant dense<0.000000e+00> : vector<16xf32>
    %245 = vector.multi_reduction <add>, %244, %cst_108 [1] : vector<16x64xf32> to vector<16xf32>
    %246 = vector.shape_cast %245 : vector<16xf32> to vector<16x1xf32>
    %cst_109 = arith.constant 6.400000e+01 : f32
    %247 = vector.broadcast %cst_109 : f32 to vector<16x1xf32>
    %248 = arith.divf %246, %247 : vector<16x1xf32>
    %cst_110 = arith.constant 9.99999996E-13 : f32
    %249 = vector.broadcast %cst_110 : f32 to vector<16x1xf32>
    %250 = arith.addf %248, %249 : vector<16x1xf32>
    %251 = math.rsqrt %250 : vector<16x1xf32>
    %252 = vector.broadcast %251 : vector<16x1xf32> to vector<16x64xf32>
    %253 = arith.mulf %243, %252 : vector<16x64xf32>
    %254 = vector.broadcast %235 : vector<1x64xf32> to vector<16x64xf32>
    %255 = arith.mulf %253, %254 : vector<16x64xf32>
    %256 = vector.broadcast %237 : vector<1x64xf32> to vector<16x64xf32>
    %257 = arith.addf %255, %256 : vector<16x64xf32>
    %c1 = arith.constant 1 : index
    %c0_111 = arith.constant 0 : index
    %c0_112 = arith.constant 0 : index
    %258 = vector.load %arg4[%c1, %c0_111, %c0_112] : memref<2x64x192xf32, #tpu.memory_space<vmem>>, vector<1x64x192xf32>
    %259 = vector.shape_cast %258 : vector<1x64x192xf32> to vector<64x192xf32>
    %cst_113 = arith.constant dense<0.000000e+00> : vector<16x192xf32>
    %260 = tpu.matmul %257, %259, %cst_113 {dimension_numbers = #tpu.dot_dimension_numbers<[1], [0], [0], [1], [0, 0, 1, 1], [], []>} : vector<16x64xf32>, vector<64x192xf32>, vector<16x192xf32> -> vector<16x192xf32>
    %c1_114 = arith.constant 1 : index
    %c0_115 = arith.constant 0 : index
    %c0_116 = arith.constant 0 : index
    %261 = vector.load %arg5[%c1_114, %c0_115, %c0_116] : memref<2x1x192xf32, #tpu.memory_space<vmem>>, vector<1x1x192xf32>
    %262 = vector.shape_cast %261 : vector<1x1x192xf32> to vector<1x192xf32>
    %263 = vector.broadcast %262 : vector<1x192xf32> to vector<16x192xf32>
    %264 = arith.addf %260, %263 : vector<16x192xf32>
    %265 = vector.extract_strided_slice %0 {offsets = [0, 0], sizes = [1, 8], strides = [1, 1]} : vector<2x8xf32> to vector<1x8xf32>
    %266 = vector.shape_cast %265 : vector<1x8xf32> to vector<1x8xf32>
    %267 = vector.broadcast %266 : vector<1x8xf32> to vector<8x8xf32>
    %268 = vector.extract_strided_slice %264 {offsets = [0, 0], sizes = [8, 16], strides = [1, 1]} : vector<16x192xf32> to vector<8x16xf32>
    %269 = vector.extract_strided_slice %264 {offsets = [0, 64], sizes = [8, 16], strides = [1, 1]} : vector<16x192xf32> to vector<8x16xf32>
    %270 = vector.extract_strided_slice %264 {offsets = [0, 128], sizes = [8, 16], strides = [1, 1]} : vector<16x192xf32> to vector<8x16xf32>
    %cst_117 = arith.constant dense<0.000000e+00> : vector<8x8xf32>
    %271 = tpu.matmul %268, %269, %cst_117 {dimension_numbers = #tpu.dot_dimension_numbers<[1], [1], [0], [0], [0, 0, 1, 0], [], []>} : vector<8x16xf32>, vector<8x16xf32>, vector<8x8xf32> -> vector<8x8xf32>
    %272 = arith.addf %271, %267 : vector<8x8xf32>
    %cst_118 = arith.constant dense<0xFF800000> : vector<8xf32>
    %273 = vector.multi_reduction <maximumf>, %272, %cst_118 [1] : vector<8x8xf32> to vector<8xf32>
    %274 = vector.shape_cast %273 : vector<8xf32> to vector<8x1xf32>
    %275 = vector.broadcast %274 : vector<8x1xf32> to vector<8x8xf32>
    %276 = arith.subf %272, %275 : vector<8x8xf32>
    %277 = math.exp %276 : vector<8x8xf32>
    %cst_119 = arith.constant dense<0.000000e+00> : vector<8xf32>
    %278 = vector.multi_reduction <add>, %277, %cst_119 [1] : vector<8x8xf32> to vector<8xf32>
    %279 = vector.shape_cast %278 : vector<8xf32> to vector<8x1xf32>
    %280 = tpu.reciprocal %279 {approx = true} : vector<8x1xf32> -> vector<8x1xf32>
    %281 = vector.broadcast %280 : vector<8x1xf32> to vector<8x8xf32>
    %282 = arith.mulf %277, %281 : vector<8x8xf32>
    %cst_120 = arith.constant dense<0.000000e+00> : vector<8x16xf32>
    %283 = tpu.matmul %282, %270, %cst_120 {dimension_numbers = #tpu.dot_dimension_numbers<[1], [0], [0], [1], [0, 0, 1, 1], [], []>} : vector<8x8xf32>, vector<8x16xf32>, vector<8x16xf32> -> vector<8x16xf32>
    %c0_121 = arith.constant 0 : index
    %c0_122 = arith.constant 0 : index
    %284 = vector.load %arg21[%c0_121, %c0_122] : memref<16x64xf32, #tpu.memory_space<vmem>>, vector<8x16xf32>
    tpu.vector_store %arg21[%c0_121, %c0_122], %283 {strides = array<i32>} : memref<16x64xf32, #tpu.memory_space<vmem>>, vector<8x16xf32>,
    %285 = vector.extract_strided_slice %264 {offsets = [0, 16], sizes = [8, 16], strides = [1, 1]} : vector<16x192xf32> to vector<8x16xf32>
    %286 = vector.extract_strided_slice %264 {offsets = [0, 80], sizes = [8, 16], strides = [1, 1]} : vector<16x192xf32> to vector<8x16xf32>
    %287 = vector.extract_strided_slice %264 {offsets = [0, 144], sizes = [8, 16], strides = [1, 1]} : vector<16x192xf32> to vector<8x16xf32>
    %cst_123 = arith.constant dense<0.000000e+00> : vector<8x8xf32>
    %288 = tpu.matmul %285, %286, %cst_123 {dimension_numbers = #tpu.dot_dimension_numbers<[1], [1], [0], [0], [0, 0, 1, 0], [], []>} : vector<8x16xf32>, vector<8x16xf32>, vector<8x8xf32> -> vector<8x8xf32>
    %289 = arith.addf %288, %267 : vector<8x8xf32>
    %cst_124 = arith.constant dense<0xFF800000> : vector<8xf32>
    %290 = vector.multi_reduction <maximumf>, %289, %cst_124 [1] : vector<8x8xf32> to vector<8xf32>
    %291 = vector.shape_cast %290 : vector<8xf32> to vector<8x1xf32>
    %292 = vector.broadcast %291 : vector<8x1xf32> to vector<8x8xf32>
    %293 = arith.subf %289, %292 : vector<8x8xf32>
    %294 = math.exp %293 : vector<8x8xf32>
    %cst_125 = arith.constant dense<0.000000e+00> : vector<8xf32>
    %295 = vector.multi_reduction <add>, %294, %cst_125 [1] : vector<8x8xf32> to vector<8xf32>
    %296 = vector.shape_cast %295 : vector<8xf32> to vector<8x1xf32>
    %297 = tpu.reciprocal %296 {approx = true} : vector<8x1xf32> -> vector<8x1xf32>
    %298 = vector.broadcast %297 : vector<8x1xf32> to vector<8x8xf32>
    %299 = arith.mulf %294, %298 : vector<8x8xf32>
    %cst_126 = arith.constant dense<0.000000e+00> : vector<8x16xf32>
    %300 = tpu.matmul %299, %287, %cst_126 {dimension_numbers = #tpu.dot_dimension_numbers<[1], [0], [0], [1], [0, 0, 1, 1], [], []>} : vector<8x8xf32>, vector<8x16xf32>, vector<8x16xf32> -> vector<8x16xf32>
    %c0_127 = arith.constant 0 : index
    %c16_128 = arith.constant 16 : index
    %301 = vector.load %arg21[%c0_127, %c16_128] : memref<16x64xf32, #tpu.memory_space<vmem>>, vector<8x16xf32>
    tpu.vector_store %arg21[%c0_127, %c16_128], %300 {strides = array<i32>} : memref<16x64xf32, #tpu.memory_space<vmem>>, vector<8x16xf32>,
    %302 = vector.extract_strided_slice %264 {offsets = [0, 32], sizes = [8, 16], strides = [1, 1]} : vector<16x192xf32> to vector<8x16xf32>
    %303 = vector.extract_strided_slice %264 {offsets = [0, 96], sizes = [8, 16], strides = [1, 1]} : vector<16x192xf32> to vector<8x16xf32>
    %304 = vector.extract_strided_slice %264 {offsets = [0, 160], sizes = [8, 16], strides = [1, 1]} : vector<16x192xf32> to vector<8x16xf32>
    %cst_129 = arith.constant dense<0.000000e+00> : vector<8x8xf32>
    %305 = tpu.matmul %302, %303, %cst_129 {dimension_numbers = #tpu.dot_dimension_numbers<[1], [1], [0], [0], [0, 0, 1, 0], [], []>} : vector<8x16xf32>, vector<8x16xf32>, vector<8x8xf32> -> vector<8x8xf32>
    %306 = arith.addf %305, %267 : vector<8x8xf32>
    %cst_130 = arith.constant dense<0xFF800000> : vector<8xf32>
    %307 = vector.multi_reduction <maximumf>, %306, %cst_130 [1] : vector<8x8xf32> to vector<8xf32>
    %308 = vector.shape_cast %307 : vector<8xf32> to vector<8x1xf32>
    %309 = vector.broadcast %308 : vector<8x1xf32> to vector<8x8xf32>
    %310 = arith.subf %306, %309 : vector<8x8xf32>
    %311 = math.exp %310 : vector<8x8xf32>
    %cst_131 = arith.constant dense<0.000000e+00> : vector<8xf32>
    %312 = vector.multi_reduction <add>, %311, %cst_131 [1] : vector<8x8xf32> to vector<8xf32>
    %313 = vector.shape_cast %312 : vector<8xf32> to vector<8x1xf32>
    %314 = tpu.reciprocal %313 {approx = true} : vector<8x1xf32> -> vector<8x1xf32>
    %315 = vector.broadcast %314 : vector<8x1xf32> to vector<8x8xf32>
    %316 = arith.mulf %311, %315 : vector<8x8xf32>
    %cst_132 = arith.constant dense<0.000000e+00> : vector<8x16xf32>
    %317 = tpu.matmul %316, %304, %cst_132 {dimension_numbers = #tpu.dot_dimension_numbers<[1], [0], [0], [1], [0, 0, 1, 1], [], []>} : vector<8x8xf32>, vector<8x16xf32>, vector<8x16xf32> -> vector<8x16xf32>
    %c0_133 = arith.constant 0 : index
    %c32_134 = arith.constant 32 : index
    %318 = vector.load %arg21[%c0_133, %c32_134] : memref<16x64xf32, #tpu.memory_space<vmem>>, vector<8x16xf32>
    tpu.vector_store %arg21[%c0_133, %c32_134], %317 {strides = array<i32>} : memref<16x64xf32, #tpu.memory_space<vmem>>, vector<8x16xf32>,
    %319 = vector.extract_strided_slice %264 {offsets = [0, 48], sizes = [8, 16], strides = [1, 1]} : vector<16x192xf32> to vector<8x16xf32>
    %320 = vector.extract_strided_slice %264 {offsets = [0, 112], sizes = [8, 16], strides = [1, 1]} : vector<16x192xf32> to vector<8x16xf32>
    %321 = vector.extract_strided_slice %264 {offsets = [0, 176], sizes = [8, 16], strides = [1, 1]} : vector<16x192xf32> to vector<8x16xf32>
    %cst_135 = arith.constant dense<0.000000e+00> : vector<8x8xf32>
    %322 = tpu.matmul %319, %320, %cst_135 {dimension_numbers = #tpu.dot_dimension_numbers<[1], [1], [0], [0], [0, 0, 1, 0], [], []>} : vector<8x16xf32>, vector<8x16xf32>, vector<8x8xf32> -> vector<8x8xf32>
    %323 = arith.addf %322, %267 : vector<8x8xf32>
    %cst_136 = arith.constant dense<0xFF800000> : vector<8xf32>
    %324 = vector.multi_reduction <maximumf>, %323, %cst_136 [1] : vector<8x8xf32> to vector<8xf32>
    %325 = vector.shape_cast %324 : vector<8xf32> to vector<8x1xf32>
    %326 = vector.broadcast %325 : vector<8x1xf32> to vector<8x8xf32>
    %327 = arith.subf %323, %326 : vector<8x8xf32>
    %328 = math.exp %327 : vector<8x8xf32>
    %cst_137 = arith.constant dense<0.000000e+00> : vector<8xf32>
    %329 = vector.multi_reduction <add>, %328, %cst_137 [1] : vector<8x8xf32> to vector<8xf32>
    %330 = vector.shape_cast %329 : vector<8xf32> to vector<8x1xf32>
    %331 = tpu.reciprocal %330 {approx = true} : vector<8x1xf32> -> vector<8x1xf32>
    %332 = vector.broadcast %331 : vector<8x1xf32> to vector<8x8xf32>
    %333 = arith.mulf %328, %332 : vector<8x8xf32>
    %cst_138 = arith.constant dense<0.000000e+00> : vector<8x16xf32>
    %334 = tpu.matmul %333, %321, %cst_138 {dimension_numbers = #tpu.dot_dimension_numbers<[1], [0], [0], [1], [0, 0, 1, 1], [], []>} : vector<8x8xf32>, vector<8x16xf32>, vector<8x16xf32> -> vector<8x16xf32>
    %c0_139 = arith.constant 0 : index
    %c48_140 = arith.constant 48 : index
    %335 = vector.load %arg21[%c0_139, %c48_140] : memref<16x64xf32, #tpu.memory_space<vmem>>, vector<8x16xf32>
    tpu.vector_store %arg21[%c0_139, %c48_140], %334 {strides = array<i32>} : memref<16x64xf32, #tpu.memory_space<vmem>>, vector<8x16xf32>,
    %336 = vector.extract_strided_slice %0 {offsets = [1, 0], sizes = [1, 8], strides = [1, 1]} : vector<2x8xf32> to vector<1x8xf32>
    %337 = vector.shape_cast %336 : vector<1x8xf32> to vector<1x8xf32>
    %338 = vector.broadcast %337 : vector<1x8xf32> to vector<8x8xf32>
    %339 = vector.extract_strided_slice %264 {offsets = [8, 0], sizes = [8, 16], strides = [1, 1]} : vector<16x192xf32> to vector<8x16xf32>
    %340 = vector.extract_strided_slice %264 {offsets = [8, 64], sizes = [8, 16], strides = [1, 1]} : vector<16x192xf32> to vector<8x16xf32>
    %341 = vector.extract_strided_slice %264 {offsets = [8, 128], sizes = [8, 16], strides = [1, 1]} : vector<16x192xf32> to vector<8x16xf32>
    %cst_141 = arith.constant dense<0.000000e+00> : vector<8x8xf32>
    %342 = tpu.matmul %339, %340, %cst_141 {dimension_numbers = #tpu.dot_dimension_numbers<[1], [1], [0], [0], [0, 0, 1, 0], [], []>} : vector<8x16xf32>, vector<8x16xf32>, vector<8x8xf32> -> vector<8x8xf32>
    %343 = arith.addf %342, %338 : vector<8x8xf32>
    %cst_142 = arith.constant dense<0xFF800000> : vector<8xf32>
    %344 = vector.multi_reduction <maximumf>, %343, %cst_142 [1] : vector<8x8xf32> to vector<8xf32>
    %345 = vector.shape_cast %344 : vector<8xf32> to vector<8x1xf32>
    %346 = vector.broadcast %345 : vector<8x1xf32> to vector<8x8xf32>
    %347 = arith.subf %343, %346 : vector<8x8xf32>
    %348 = math.exp %347 : vector<8x8xf32>
    %cst_143 = arith.constant dense<0.000000e+00> : vector<8xf32>
    %349 = vector.multi_reduction <add>, %348, %cst_143 [1] : vector<8x8xf32> to vector<8xf32>
    %350 = vector.shape_cast %349 : vector<8xf32> to vector<8x1xf32>
    %351 = tpu.reciprocal %350 {approx = true} : vector<8x1xf32> -> vector<8x1xf32>
    %352 = vector.broadcast %351 : vector<8x1xf32> to vector<8x8xf32>
    %353 = arith.mulf %348, %352 : vector<8x8xf32>
    %cst_144 = arith.constant dense<0.000000e+00> : vector<8x16xf32>
    %354 = tpu.matmul %353, %341, %cst_144 {dimension_numbers = #tpu.dot_dimension_numbers<[1], [0], [0], [1], [0, 0, 1, 1], [], []>} : vector<8x8xf32>, vector<8x16xf32>, vector<8x16xf32> -> vector<8x16xf32>
    %c8_145 = arith.constant 8 : index
    %c0_146 = arith.constant 0 : index
    %355 = vector.load %arg21[%c8_145, %c0_146] : memref<16x64xf32, #tpu.memory_space<vmem>>, vector<8x16xf32>
    tpu.vector_store %arg21[%c8_145, %c0_146], %354 {strides = array<i32>} : memref<16x64xf32, #tpu.memory_space<vmem>>, vector<8x16xf32>,
    %356 = vector.extract_strided_slice %264 {offsets = [8, 16], sizes = [8, 16], strides = [1, 1]} : vector<16x192xf32> to vector<8x16xf32>
    %357 = vector.extract_strided_slice %264 {offsets = [8, 80], sizes = [8, 16], strides = [1, 1]} : vector<16x192xf32> to vector<8x16xf32>
    %358 = vector.extract_strided_slice %264 {offsets = [8, 144], sizes = [8, 16], strides = [1, 1]} : vector<16x192xf32> to vector<8x16xf32>
    %cst_147 = arith.constant dense<0.000000e+00> : vector<8x8xf32>
    %359 = tpu.matmul %356, %357, %cst_147 {dimension_numbers = #tpu.dot_dimension_numbers<[1], [1], [0], [0], [0, 0, 1, 0], [], []>} : vector<8x16xf32>, vector<8x16xf32>, vector<8x8xf32> -> vector<8x8xf32>
    %360 = arith.addf %359, %338 : vector<8x8xf32>
    %cst_148 = arith.constant dense<0xFF800000> : vector<8xf32>
    %361 = vector.multi_reduction <maximumf>, %360, %cst_148 [1] : vector<8x8xf32> to vector<8xf32>
    %362 = vector.shape_cast %361 : vector<8xf32> to vector<8x1xf32>
    %363 = vector.broadcast %362 : vector<8x1xf32> to vector<8x8xf32>
    %364 = arith.subf %360, %363 : vector<8x8xf32>
    %365 = math.exp %364 : vector<8x8xf32>
    %cst_149 = arith.constant dense<0.000000e+00> : vector<8xf32>
    %366 = vector.multi_reduction <add>, %365, %cst_149 [1] : vector<8x8xf32> to vector<8xf32>
    %367 = vector.shape_cast %366 : vector<8xf32> to vector<8x1xf32>
    %368 = tpu.reciprocal %367 {approx = true} : vector<8x1xf32> -> vector<8x1xf32>
    %369 = vector.broadcast %368 : vector<8x1xf32> to vector<8x8xf32>
    %370 = arith.mulf %365, %369 : vector<8x8xf32>
    %cst_150 = arith.constant dense<0.000000e+00> : vector<8x16xf32>
    %371 = tpu.matmul %370, %358, %cst_150 {dimension_numbers = #tpu.dot_dimension_numbers<[1], [0], [0], [1], [0, 0, 1, 1], [], []>} : vector<8x8xf32>, vector<8x16xf32>, vector<8x16xf32> -> vector<8x16xf32>
    %c8_151 = arith.constant 8 : index
    %c16_152 = arith.constant 16 : index
    %372 = vector.load %arg21[%c8_151, %c16_152] : memref<16x64xf32, #tpu.memory_space<vmem>>, vector<8x16xf32>
    tpu.vector_store %arg21[%c8_151, %c16_152], %371 {strides = array<i32>} : memref<16x64xf32, #tpu.memory_space<vmem>>, vector<8x16xf32>,
    %373 = vector.extract_strided_slice %264 {offsets = [8, 32], sizes = [8, 16], strides = [1, 1]} : vector<16x192xf32> to vector<8x16xf32>
    %374 = vector.extract_strided_slice %264 {offsets = [8, 96], sizes = [8, 16], strides = [1, 1]} : vector<16x192xf32> to vector<8x16xf32>
    %375 = vector.extract_strided_slice %264 {offsets = [8, 160], sizes = [8, 16], strides = [1, 1]} : vector<16x192xf32> to vector<8x16xf32>
    %cst_153 = arith.constant dense<0.000000e+00> : vector<8x8xf32>
    %376 = tpu.matmul %373, %374, %cst_153 {dimension_numbers = #tpu.dot_dimension_numbers<[1], [1], [0], [0], [0, 0, 1, 0], [], []>} : vector<8x16xf32>, vector<8x16xf32>, vector<8x8xf32> -> vector<8x8xf32>
    %377 = arith.addf %376, %338 : vector<8x8xf32>
    %cst_154 = arith.constant dense<0xFF800000> : vector<8xf32>
    %378 = vector.multi_reduction <maximumf>, %377, %cst_154 [1] : vector<8x8xf32> to vector<8xf32>
    %379 = vector.shape_cast %378 : vector<8xf32> to vector<8x1xf32>
    %380 = vector.broadcast %379 : vector<8x1xf32> to vector<8x8xf32>
    %381 = arith.subf %377, %380 : vector<8x8xf32>
    %382 = math.exp %381 : vector<8x8xf32>
    %cst_155 = arith.constant dense<0.000000e+00> : vector<8xf32>
    %383 = vector.multi_reduction <add>, %382, %cst_155 [1] : vector<8x8xf32> to vector<8xf32>
    %384 = vector.shape_cast %383 : vector<8xf32> to vector<8x1xf32>
    %385 = tpu.reciprocal %384 {approx = true} : vector<8x1xf32> -> vector<8x1xf32>
    %386 = vector.broadcast %385 : vector<8x1xf32> to vector<8x8xf32>
    %387 = arith.mulf %382, %386 : vector<8x8xf32>
    %cst_156 = arith.constant dense<0.000000e+00> : vector<8x16xf32>
    %388 = tpu.matmul %387, %375, %cst_156 {dimension_numbers = #tpu.dot_dimension_numbers<[1], [0], [0], [1], [0, 0, 1, 1], [], []>} : vector<8x8xf32>, vector<8x16xf32>, vector<8x16xf32> -> vector<8x16xf32>
    %c8_157 = arith.constant 8 : index
    %c32_158 = arith.constant 32 : index
    %389 = vector.load %arg21[%c8_157, %c32_158] : memref<16x64xf32, #tpu.memory_space<vmem>>, vector<8x16xf32>
    tpu.vector_store %arg21[%c8_157, %c32_158], %388 {strides = array<i32>} : memref<16x64xf32, #tpu.memory_space<vmem>>, vector<8x16xf32>,
    %390 = vector.extract_strided_slice %264 {offsets = [8, 48], sizes = [8, 16], strides = [1, 1]} : vector<16x192xf32> to vector<8x16xf32>
    %391 = vector.extract_strided_slice %264 {offsets = [8, 112], sizes = [8, 16], strides = [1, 1]} : vector<16x192xf32> to vector<8x16xf32>
    %392 = vector.extract_strided_slice %264 {offsets = [8, 176], sizes = [8, 16], strides = [1, 1]} : vector<16x192xf32> to vector<8x16xf32>
    %cst_159 = arith.constant dense<0.000000e+00> : vector<8x8xf32>
    %393 = tpu.matmul %390, %391, %cst_159 {dimension_numbers = #tpu.dot_dimension_numbers<[1], [1], [0], [0], [0, 0, 1, 0], [], []>} : vector<8x16xf32>, vector<8x16xf32>, vector<8x8xf32> -> vector<8x8xf32>
    %394 = arith.addf %393, %338 : vector<8x8xf32>
    %cst_160 = arith.constant dense<0xFF800000> : vector<8xf32>
    %395 = vector.multi_reduction <maximumf>, %394, %cst_160 [1] : vector<8x8xf32> to vector<8xf32>
    %396 = vector.shape_cast %395 : vector<8xf32> to vector<8x1xf32>
    %397 = vector.broadcast %396 : vector<8x1xf32> to vector<8x8xf32>
    %398 = arith.subf %394, %397 : vector<8x8xf32>
    %399 = math.exp %398 : vector<8x8xf32>
    %cst_161 = arith.constant dense<0.000000e+00> : vector<8xf32>
    %400 = vector.multi_reduction <add>, %399, %cst_161 [1] : vector<8x8xf32> to vector<8xf32>
    %401 = vector.shape_cast %400 : vector<8xf32> to vector<8x1xf32>
    %402 = tpu.reciprocal %401 {approx = true} : vector<8x1xf32> -> vector<8x1xf32>
    %403 = vector.broadcast %402 : vector<8x1xf32> to vector<8x8xf32>
    %404 = arith.mulf %399, %403 : vector<8x8xf32>
    %cst_162 = arith.constant dense<0.000000e+00> : vector<8x16xf32>
    %405 = tpu.matmul %404, %392, %cst_162 {dimension_numbers = #tpu.dot_dimension_numbers<[1], [0], [0], [1], [0, 0, 1, 1], [], []>} : vector<8x8xf32>, vector<8x16xf32>, vector<8x16xf32> -> vector<8x16xf32>
    %c8_163 = arith.constant 8 : index
    %c48_164 = arith.constant 48 : index
    %406 = vector.load %arg21[%c8_163, %c48_164] : memref<16x64xf32, #tpu.memory_space<vmem>>, vector<8x16xf32>
    tpu.vector_store %arg21[%c8_163, %c48_164], %405 {strides = array<i32>} : memref<16x64xf32, #tpu.memory_space<vmem>>, vector<8x16xf32>,
    %c0_165 = arith.constant 0 : index
    %c0_166 = arith.constant 0 : index
    %407 = vector.load %arg21[%c0_165, %c0_166] : memref<16x64xf32, #tpu.memory_space<vmem>>, vector<16x64xf32>
    %c1_167 = arith.constant 1 : index
    %c0_168 = arith.constant 0 : index
    %c0_169 = arith.constant 0 : index
    %408 = vector.load %arg6[%c1_167, %c0_168, %c0_169] : memref<2x64x64xf32, #tpu.memory_space<vmem>>, vector<1x64x64xf32>
    %409 = vector.shape_cast %408 : vector<1x64x64xf32> to vector<64x64xf32>
    %cst_170 = arith.constant dense<0.000000e+00> : vector<16x64xf32>
    %410 = tpu.matmul %407, %409, %cst_170 {dimension_numbers = #tpu.dot_dimension_numbers<[1], [0], [0], [1], [0, 0, 1, 1], [], []>} : vector<16x64xf32>, vector<64x64xf32>, vector<16x64xf32> -> vector<16x64xf32>
    %c1_171 = arith.constant 1 : index
    %c0_172 = arith.constant 0 : index
    %c0_173 = arith.constant 0 : index
    %411 = vector.load %arg7[%c1_171, %c0_172, %c0_173] : memref<2x1x64xf32, #tpu.memory_space<vmem>>, vector<1x1x64xf32>
    %412 = vector.shape_cast %411 : vector<1x1x64xf32> to vector<1x64xf32>
    %413 = vector.broadcast %412 : vector<1x64xf32> to vector<16x64xf32>
    %414 = arith.addf %410, %413 : vector<16x64xf32>
    %415 = arith.addf %414, %257 : vector<16x64xf32>
    %c1_174 = arith.constant 1 : index
    %c0_175 = arith.constant 0 : index
    %c0_176 = arith.constant 0 : index
    %416 = vector.load %arg8[%c1_174, %c0_175, %c0_176] : memref<2x1x64xf32, #tpu.memory_space<vmem>>, vector<1x1x64xf32>
    %417 = vector.shape_cast %416 : vector<1x1x64xf32> to vector<1x64xf32>
    %c1_177 = arith.constant 1 : index
    %c0_178 = arith.constant 0 : index
    %c0_179 = arith.constant 0 : index
    %418 = vector.load %arg9[%c1_177, %c0_178, %c0_179] : memref<2x1x64xf32, #tpu.memory_space<vmem>>, vector<1x1x64xf32>
    %419 = vector.shape_cast %418 : vector<1x1x64xf32> to vector<1x64xf32>
    %cst_180 = arith.constant dense<0.000000e+00> : vector<16xf32>
    %420 = vector.multi_reduction <add>, %415, %cst_180 [1] : vector<16x64xf32> to vector<16xf32>
    %421 = vector.shape_cast %420 : vector<16xf32> to vector<16x1xf32>
    %cst_181 = arith.constant 6.400000e+01 : f32
    %422 = vector.broadcast %cst_181 : f32 to vector<16x1xf32>
    %423 = arith.divf %421, %422 : vector<16x1xf32>
    %424 = vector.broadcast %423 : vector<16x1xf32> to vector<16x64xf32>
    %425 = arith.subf %415, %424 : vector<16x64xf32>
    %426 = arith.mulf %425, %425 : vector<16x64xf32>
    %cst_182 = arith.constant dense<0.000000e+00> : vector<16xf32>
    %427 = vector.multi_reduction <add>, %426, %cst_182 [1] : vector<16x64xf32> to vector<16xf32>
    %428 = vector.shape_cast %427 : vector<16xf32> to vector<16x1xf32>
    %cst_183 = arith.constant 6.400000e+01 : f32
    %429 = vector.broadcast %cst_183 : f32 to vector<16x1xf32>
    %430 = arith.divf %428, %429 : vector<16x1xf32>
    %cst_184 = arith.constant 9.99999996E-13 : f32
    %431 = vector.broadcast %cst_184 : f32 to vector<16x1xf32>
    %432 = arith.addf %430, %431 : vector<16x1xf32>
    %433 = math.rsqrt %432 : vector<16x1xf32>
    %434 = vector.broadcast %433 : vector<16x1xf32> to vector<16x64xf32>
    %435 = arith.mulf %425, %434 : vector<16x64xf32>
    %436 = vector.broadcast %417 : vector<1x64xf32> to vector<16x64xf32>
    %437 = arith.mulf %435, %436 : vector<16x64xf32>
    %438 = vector.broadcast %419 : vector<1x64xf32> to vector<16x64xf32>
    %439 = arith.addf %437, %438 : vector<16x64xf32>
    %c1_185 = arith.constant 1 : index
    %c0_186 = arith.constant 0 : index
    %c0_187 = arith.constant 0 : index
    %440 = vector.load %arg10[%c1_185, %c0_186, %c0_187] : memref<2x64x256xf32, #tpu.memory_space<vmem>>, vector<1x64x256xf32>
    %441 = vector.shape_cast %440 : vector<1x64x256xf32> to vector<64x256xf32>
    %cst_188 = arith.constant dense<0.000000e+00> : vector<16x256xf32>
    %442 = tpu.matmul %439, %441, %cst_188 {dimension_numbers = #tpu.dot_dimension_numbers<[1], [0], [0], [1], [0, 0, 1, 1], [], []>} : vector<16x64xf32>, vector<64x256xf32>, vector<16x256xf32> -> vector<16x256xf32>
    %c1_189 = arith.constant 1 : index
    %c0_190 = arith.constant 0 : index
    %c0_191 = arith.constant 0 : index
    %443 = vector.load %arg11[%c1_189, %c0_190, %c0_191] : memref<2x1x256xf32, #tpu.memory_space<vmem>>, vector<1x1x256xf32>
    %444 = vector.shape_cast %443 : vector<1x1x256xf32> to vector<1x256xf32>
    %445 = vector.broadcast %444 : vector<1x256xf32> to vector<16x256xf32>
    %446 = arith.addf %442, %445 : vector<16x256xf32>
    %cst_192 = arith.constant 5.000000e-01 : f32
    %447 = vector.broadcast %cst_192 : f32 to vector<16x256xf32>
    %448 = arith.mulf %447, %446 : vector<16x256xf32>
    %cst_193 = arith.constant 4.471500e-02 : f32
    %449 = vector.broadcast %cst_193 : f32 to vector<16x256xf32>
    %450 = arith.mulf %449, %446 : vector<16x256xf32>
    %451 = arith.mulf %450, %446 : vector<16x256xf32>
    %452 = arith.mulf %451, %446 : vector<16x256xf32>
    %453 = arith.addf %446, %452 : vector<16x256xf32>
    %cst_194 = arith.constant 0.797884583 : f32
    %454 = vector.broadcast %cst_194 : f32 to vector<16x256xf32>
    %455 = arith.mulf %454, %453 : vector<16x256xf32>
    %456 = math.tanh %455 : vector<16x256xf32>
    %cst_195 = arith.constant 1.000000e+00 : f32
    %457 = vector.broadcast %cst_195 : f32 to vector<16x256xf32>
    %458 = arith.addf %457, %456 : vector<16x256xf32>
    %459 = arith.mulf %448, %458 : vector<16x256xf32>
    %c1_196 = arith.constant 1 : index
    %c0_197 = arith.constant 0 : index
    %c0_198 = arith.constant 0 : index
    %460 = vector.load %arg12[%c1_196, %c0_197, %c0_198] : memref<2x256x64xf32, #tpu.memory_space<vmem>>, vector<1x256x64xf32>
    %461 = vector.shape_cast %460 : vector<1x256x64xf32> to vector<256x64xf32>
    %cst_199 = arith.constant dense<0.000000e+00> : vector<16x64xf32>
    %462 = tpu.matmul %459, %461, %cst_199 {dimension_numbers = #tpu.dot_dimension_numbers<[1], [0], [0], [1], [0, 0, 1, 1], [], []>} : vector<16x256xf32>, vector<256x64xf32>, vector<16x64xf32> -> vector<16x64xf32>
    %c1_200 = arith.constant 1 : index
    %c0_201 = arith.constant 0 : index
    %c0_202 = arith.constant 0 : index
    %463 = vector.load %arg13[%c1_200, %c0_201, %c0_202] : memref<2x1x64xf32, #tpu.memory_space<vmem>>, vector<1x1x64xf32>
    %464 = vector.shape_cast %463 : vector<1x1x64xf32> to vector<1x64xf32>
    %465 = vector.broadcast %464 : vector<1x64xf32> to vector<16x64xf32>
    %466 = arith.addf %462, %465 : vector<16x64xf32>
    %467 = arith.addf %466, %439 : vector<16x64xf32>
    %c1_203 = arith.constant 1 : index
    %c0_204 = arith.constant 0 : index
    %c0_205 = arith.constant 0 : index
    %468 = vector.load %arg14[%c1_203, %c0_204, %c0_205] : memref<2x1x64xf32, #tpu.memory_space<vmem>>, vector<1x1x64xf32>
    %469 = vector.shape_cast %468 : vector<1x1x64xf32> to vector<1x64xf32>
    %c1_206 = arith.constant 1 : index
    %c0_207 = arith.constant 0 : index
    %c0_208 = arith.constant 0 : index
    %470 = vector.load %arg15[%c1_206, %c0_207, %c0_208] : memref<2x1x64xf32, #tpu.memory_space<vmem>>, vector<1x1x64xf32>
    %471 = vector.shape_cast %470 : vector<1x1x64xf32> to vector<1x64xf32>
    %cst_209 = arith.constant dense<0.000000e+00> : vector<16xf32>
    %472 = vector.multi_reduction <add>, %467, %cst_209 [1] : vector<16x64xf32> to vector<16xf32>
    %473 = vector.shape_cast %472 : vector<16xf32> to vector<16x1xf32>
    %cst_210 = arith.constant 6.400000e+01 : f32
    %474 = vector.broadcast %cst_210 : f32 to vector<16x1xf32>
    %475 = arith.divf %473, %474 : vector<16x1xf32>
    %476 = vector.broadcast %475 : vector<16x1xf32> to vector<16x64xf32>
    %477 = arith.subf %467, %476 : vector<16x64xf32>
    %478 = arith.mulf %477, %477 : vector<16x64xf32>
    %cst_211 = arith.constant dense<0.000000e+00> : vector<16xf32>
    %479 = vector.multi_reduction <add>, %478, %cst_211 [1] : vector<16x64xf32> to vector<16xf32>
    %480 = vector.shape_cast %479 : vector<16xf32> to vector<16x1xf32>
    %cst_212 = arith.constant 6.400000e+01 : f32
    %481 = vector.broadcast %cst_212 : f32 to vector<16x1xf32>
    %482 = arith.divf %480, %481 : vector<16x1xf32>
    %cst_213 = arith.constant 9.99999996E-13 : f32
    %483 = vector.broadcast %cst_213 : f32 to vector<16x1xf32>
    %484 = arith.addf %482, %483 : vector<16x1xf32>
    %485 = math.rsqrt %484 : vector<16x1xf32>
    %486 = vector.broadcast %485 : vector<16x1xf32> to vector<16x64xf32>
    %487 = arith.mulf %477, %486 : vector<16x64xf32>
    %488 = vector.broadcast %469 : vector<1x64xf32> to vector<16x64xf32>
    %489 = arith.mulf %487, %488 : vector<16x64xf32>
    %490 = vector.broadcast %471 : vector<1x64xf32> to vector<16x64xf32>
    %491 = arith.addf %489, %490 : vector<16x64xf32>
    %492 = vector.extract_strided_slice %491 {offsets = [0, 0], sizes = [1, 64], strides = [1, 1]} : vector<16x64xf32> to vector<1x64xf32>
    %c0_214 = arith.constant 0 : index
    %c0_215 = arith.constant 0 : index
    %493 = vector.load %arg22[%c0_214, %c0_215] : memref<2x64xf32, #tpu.memory_space<vmem>>, vector<1x64xf32>
    tpu.vector_store %arg22[%c0_214, %c0_215], %492 {strides = array<i32>} : memref<2x64xf32, #tpu.memory_space<vmem>>, vector<1x64xf32>,
    %494 = vector.extract_strided_slice %491 {offsets = [8, 0], sizes = [1, 64], strides = [1, 1]} : vector<16x64xf32> to vector<1x64xf32>
    %c1_216 = arith.constant 1 : index
    %c0_217 = arith.constant 0 : index
    %495 = vector.load %arg22[%c1_216, %c0_217] : memref<2x64xf32, #tpu.memory_space<vmem>>, vector<1x64xf32>
    tpu.vector_store %arg22[%c1_216, %c0_217], %494 {strides = array<i32>} : memref<2x64xf32, #tpu.memory_space<vmem>>, vector<1x64xf32>,
    %c0_218 = arith.constant 0 : index
    %c0_219 = arith.constant 0 : index
    %496 = vector.load %arg22[%c0_218, %c0_219] : memref<2x64xf32, #tpu.memory_space<vmem>>, vector<2x64xf32>
    %c0_220 = arith.constant 0 : index
    %c0_221 = arith.constant 0 : index
    %497 = vector.load %arg16[%c0_220, %c0_221] : memref<64x64xf32, #tpu.memory_space<vmem>>, vector<64x64xf32>
    %cst_222 = arith.constant dense<0.000000e+00> : vector<2x64xf32>
    %498 = tpu.matmul %496, %497, %cst_222 {dimension_numbers = #tpu.dot_dimension_numbers<[1], [0], [0], [1], [0, 0, 1, 1], [], []>} : vector<2x64xf32>, vector<64x64xf32>, vector<2x64xf32> -> vector<2x64xf32>
    %c0_223 = arith.constant 0 : index
    %c0_224 = arith.constant 0 : index
    %499 = vector.load %arg17[%c0_223, %c0_224] : memref<1x64xf32, #tpu.memory_space<vmem>>, vector<1x64xf32>
    %500 = vector.broadcast %499 : vector<1x64xf32> to vector<2x64xf32>
    %501 = arith.addf %498, %500 : vector<2x64xf32>
    %502 = math.tanh %501 : vector<2x64xf32>
    %c0_225 = arith.constant 0 : index
    %c0_226 = arith.constant 0 : index
    %503 = vector.load %arg18[%c0_225, %c0_226] : memref<64x6xf32, #tpu.memory_space<vmem>>, vector<64x6xf32>
    %cst_227 = arith.constant dense<0.000000e+00> : vector<2x6xf32>
    %504 = tpu.matmul %502, %503, %cst_227 {dimension_numbers = #tpu.dot_dimension_numbers<[1], [0], [0], [1], [0, 0, 1, 1], [], []>} : vector<2x64xf32>, vector<64x6xf32>, vector<2x6xf32> -> vector<2x6xf32>
    %c0_228 = arith.constant 0 : index
    %c0_229 = arith.constant 0 : index
    %505 = vector.load %arg19[%c0_228, %c0_229] : memref<1x6xf32, #tpu.memory_space<vmem>>, vector<1x6xf32>
    %506 = vector.broadcast %505 : vector<1x6xf32> to vector<2x6xf32>
    %507 = arith.addf %504, %506 : vector<2x6xf32>
    %c0_230 = arith.constant 0 : index
    %c0_231 = arith.constant 0 : index
    %508 = vector.load %arg20[%c0_230, %c0_231] : memref<2x6xf32, #tpu.memory_space<vmem>>, vector<2x6xf32>
    tpu.vector_store %arg20[%c0_230, %c0_231], %507 {strides = array<i32>} : memref<2x6xf32, #tpu.memory_space<vmem>>, vector<2x6xf32>,
    return
  }
}

</mosaic_0001>

<llo_original>
// kernel: _lambda_.1
$region0: #{_lambda_.1}
  #allocation0 [shape = 'u32[]', space=smem, size = 0x4, offset = 0x4, fixed_abs, tag = 'smem constant byte address 0x4 - core index']
  #allocation1 [shape = 'u32[144,128]{1,0:T(1,128)}', space=vmem, size = 0x12000, scoped, tag = 'internal scratch']
  #allocation2 [shape = 'f32[16,64]{1,0:T(8,128)}', space=vmem, size = 0x2000, scoped, tag = 'scratch operand']
  #allocation3 [shape = 'f32[2,64]{1,0:T(2,128)}', space=vmem, size = 0x400, scoped, tag = 'scratch operand']
  %s0 = inlined_call_operand.vmem [shape: f32[16,64], index: 0, kind: input, shape index: {}]
  %s1 = inlined_call_operand.vmem [shape: f32[2,8], index: 1, kind: input, shape index: {}]
  %s2 = inlined_call_operand.vmem [shape: f32[1,64], index: 2, kind: input, shape index: {}]
  %s3 = inlined_call_operand.vmem [shape: f32[1,64], index: 3, kind: input, shape index: {}, may-alias: {3,17}]
  %s4 = inlined_call_operand.vmem [shape: f32[2,64,192], index: 4, kind: input, shape index: {}]
  %s5 = inlined_call_operand.vmem [shape: f32[2,1,192], index: 5, kind: input, shape index: {}]
  %s6 = inlined_call_operand.vmem [shape: f32[2,64,64], index: 6, kind: input, shape index: {}]
  %s7 = inlined_call_operand.vmem [shape: f32[2,1,64], index: 7, kind: input, shape index: {}, may-alias: {7,9,13,15}]
  %s8 = inlined_call_operand.vmem [shape: f32[2,1,64], index: 8, kind: input, shape index: {}, may-alias: {8,14}]
  %s9 = inlined_call_operand.vmem [shape: f32[2,1,64], index: 9, kind: input, shape index: {}, may-alias: {7,9,13,15}]
  %s10 = inlined_call_operand.hbm [shape: f32[2,64,256], index: 10, kind: input, shape index: {}]
  %s11 = inlined_call_operand.vmem [shape: f32[2,1,256], index: 11, kind: input, shape index: {}]
  %s12 = inlined_call_operand.hbm [shape: f32[2,256,64], index: 12, kind: input, shape index: {}]
  %s13 = inlined_call_operand.vmem [shape: f32[2,1,64], index: 13, kind: input, shape index: {}, may-alias: {7,9,13,15}]
  %s14 = inlined_call_operand.vmem [shape: f32[2,1,64], index: 14, kind: input, shape index: {}, may-alias: {8,14}]
  %s15 = inlined_call_operand.vmem [shape: f32[2,1,64], index: 15, kind: input, shape index: {}, may-alias: {7,9,13,15}]
  %s16 = inlined_call_operand.hbm [shape: f32[64,64], index: 16, kind: input, shape index: {}]
  %s17 = inlined_call_operand.vmem [shape: f32[1,64], index: 17, kind: input, shape index: {}, may-alias: {3,17}]
  %s18 = inlined_call_operand.hbm [shape: f32[64,6], index: 18, kind: input, shape index: {}]
  %s19 = inlined_call_operand.vmem [shape: f32[1,6], index: 19, kind: input, shape index: {}]
  %s20 = inlined_call_operand.hbm [shape: f32[2,6], index: 20, kind: output, shape index: {}]
  %s21 = sld [smem:[#allocation0]]
  $region106: #{_lambda_.1} parent=0
    _
  %s23 = ssub.s32 1, %s21
  %s24 = scalar_select 0, %s23, %s21
  $region1: #{_lambda_.1} parent=0
    #allocation4 [shape = 'u8[131072]{0}', space=vmem, size = 0x20000, scoped, tag = 'input window, operand 10, single buffered']
    #allocation5 [shape = 's32[1]{0}', space=sflag, size = 0x4, scoped, tag = 'scoped memory for _lambda_.1']
    #allocation6 [shape = 's32[1]{0}', space=sflag, size = 0x4, scoped, tag = 'scoped memory for _lambda_.1']
    #allocation7 [shape = 'u8[262144]{0}', space=vmem, size = 0x40000, scoped, tag = 'input window, operand 12, single buffered']
    #allocation8 [shape = 's32[1]{0}', space=sflag, size = 0x4, scoped, tag = 'scoped memory for _lambda_.1']
    #allocation9 [shape = 'u8[32768]{0}', space=vmem, size = 0x8000, scoped, tag = 'input window, operand 16, single buffered']
    #allocation10 [shape = 'u8[32768]{0}', space=vmem, size = 0x8000, scoped, tag = 'input window, operand 18, single buffered']
    #allocation11 [shape = 's32[1]{0}', space=sflag, size = 0x4, scoped, tag = 'scoped memory for _lambda_.1']
    #allocation12 [shape = 'u8[1024]{0}', space=vmem, size = 0x400, scoped, tag = 'output window, operand 0, single buffered']
    %25 = vsyncpa [#allocation5], 0
    %26 = vsyncpa [#allocation8], 0
    %27 = vsyncpa [#allocation11], 0
    %28 = vsyncpa [#allocation6], 0
    // Predicated region
    $region2: #{_lambda_.1} parent=1 // pred_check
      _
    $region3: #{_lambda_.1} parent=1 // pred_check_branch
      %30 = sbr.rel (0) target = $region5
    $region4: #{_lambda_.1} parent=1 // pred_region
      _
    $region5: #{_lambda_.1} parent=1 // pred_fallthru
      _
    // Predicated region
    $region6: #{_lambda_.1} parent=1 // pred_check
      _
    $region7: #{_lambda_.1} parent=1 // pred_check_branch
      %32 = sbr.rel (0) target = $region9
    $region8: #{_lambda_.1} parent=1 // pred_region
      _
    $region9: #{_lambda_.1} parent=1 // pred_fallthru
      _
    // Predicated region
    $region10: #{_lambda_.1} parent=1 // pred_check
      _
    $region11: #{_lambda_.1} parent=1 // pred_check_branch
      %34 = sbr.rel (0) target = $region13
    $region12: #{_lambda_.1} parent=1 // pred_region
      _
    $region13: #{_lambda_.1} parent=1 // pred_fallthru
      _
    // Predicated region
    $region14: #{_lambda_.1} parent=1 // pred_check
      _
    $region15: #{_lambda_.1} parent=1 // pred_check_branch
      %36 = sbr.rel (0) target = $region17
    $region16: #{_lambda_.1} parent=1 // pred_region
      _
    $region17: #{_lambda_.1} parent=1 // pred_fallthru
      _
    // Predicated region
    $region18: #{_lambda_.1} parent=1 // pred_check
      _
    $region19: #{_lambda_.1} parent=1 // pred_check_branch
      %38 = sbr.rel (0) target = $region21
    $region20: #{_lambda_.1} parent=1 // pred_region
      _
    $region21: #{_lambda_.1} parent=1 // pred_fallthru
      _
    // Predicated region
    $region22: #{_lambda_.1} parent=1 // pred_check
      _
    $region23: #{_lambda_.1} parent=1 // pred_check_branch
      %40 = sbr.rel (0) target = $region25
    $region24: #{_lambda_.1} parent=1 // pred_region
      _
    $region25: #{_lambda_.1} parent=1 // pred_fallthru
      _
    // Predicated region
    $region26: #{_lambda_.1} parent=1 // pred_check
      _
    $region27: #{_lambda_.1} parent=1 // pred_check_branch
      %42 = sbr.rel (0) target = $region29
    $region28: #{_lambda_.1} parent=1 // pred_region
      _
    $region29: #{_lambda_.1} parent=1 // pred_fallthru
      _
    // Predicated region
    $region30: #{_lambda_.1} parent=1 // pred_check
      _
    $region31: #{_lambda_.1} parent=1 // pred_check_branch
      %44 = sbr.rel (0) target = $region33
    $region32: #{_lambda_.1} parent=1 // pred_region
      _
    $region33: #{_lambda_.1} parent=1 // pred_fallthru
      _
    // Predicated region
    $region34: #{_lambda_.1} parent=1 // pred_check
      _
    $region35: #{_lambda_.1} parent=1 // pred_check_branch
      %46 = sbr.rel (0) target = $region37
    $region36: #{_lambda_.1} parent=1 // pred_region
      _
    $region37: #{_lambda_.1} parent=1 // pred_fallthru
      _
    // Predicated region
    $region38: #{_lambda_.1} parent=1 // pred_check
      _
    $region39: #{_lambda_.1} parent=1 // pred_check_branch
      %48 = sbr.rel (0) target = $region41
    $region40: #{_lambda_.1} parent=1 // pred_region
      _
    $region41: #{_lambda_.1} parent=1 // pred_fallthru
      _
    // Predicated region
    $region42: #{_lambda_.1} parent=1 // pred_check
      _
    $region43: #{_lambda_.1} parent=1 // pred_check_branch
      %50 = sbr.rel (0) target = $region45
    $region44: #{_lambda_.1} parent=1 // pred_region
      %s52 = ssub.s32 4096, 4096
      %53 = vsyncadd [#allocation5], %s52
      %s54 = sshll.u32 [#allocation4], 4
      %s55 = int_to_ptr.vmem [resolvable:$true] %s54
      %60 = dma.hbm_to_vmem [thread:$0]  %s10, 4096, %s55, [#allocation5], 256, 256, 16
    $region45: #{_lambda_.1} parent=1 // pred_fallthru
      _
    // Predicated region
    $region46: #{_lambda_.1} parent=1 // pred_check
      _
    $region47: #{_lambda_.1} parent=1 // pred_check_branch
      %62 = sbr.rel (0) target = $region49
    $region48: #{_lambda_.1} parent=1 // pred_region
      _
    $region49: #{_lambda_.1} parent=1 // pred_fallthru
      _
    // Predicated region
    $region50: #{_lambda_.1} parent=1 // pred_check
      _
    $region51: #{_lambda_.1} parent=1 // pred_check_branch
      %64 = sbr.rel (0) target = $region53
    $region52: #{_lambda_.1} parent=1 // pred_region
      %s66 = ssub.s32 8192, 8192
      %67 = vsyncadd [#allocation8], %s66
      %s68 = sshll.u32 [#allocation7], 4
      %s69 = int_to_ptr.vmem [resolvable:$true] %s68
      %74 = dma.hbm_to_vmem [thread:$0]  %s12, 8192, %s69, [#allocation8], 128, 128, 8
    $region53: #{_lambda_.1} parent=1 // pred_fallthru
      _
    // Predicated region
    $region54: #{_lambda_.1} parent=1 // pred_check
      _
    $region55: #{_lambda_.1} parent=1 // pred_check_branch
      %76 = sbr.rel (0) target = $region57
    $region56: #{_lambda_.1} parent=1 // pred_region
      _
    $region57: #{_lambda_.1} parent=1 // pred_fallthru
      _
    // Predicated region
    $region58: #{_lambda_.1} parent=1 // pred_check
      _
    $region59: #{_lambda_.1} parent=1 // pred_check_branch
      %78 = sbr.rel (0) target = $region61
    $region60: #{_lambda_.1} parent=1 // pred_region
      _
    $region61: #{_lambda_.1} parent=1 // pred_fallthru
      _
    // Predicated region
    $region62: #{_lambda_.1} parent=1 // pred_check
      _
    $region63: #{_lambda_.1} parent=1 // pred_check_branch
      %80 = sbr.rel (0) target = $region65
    $region64: #{_lambda_.1} parent=1 // pred_region
      _
    $region65: #{_lambda_.1} parent=1 // pred_fallthru
      _
    // Predicated region
    $region66: #{_lambda_.1} parent=1 // pred_check
      _
    $region67: #{_lambda_.1} parent=1 // pred_check_branch
      %82 = sbr.rel (0) target = $region69
    $region68: #{_lambda_.1} parent=1 // pred_region
      %s84 = ssub.s32 1024, 1024
      %85 = vsyncadd [#allocation8], %s84
      %s86 = sshll.u32 [#allocation9], 4
      %s87 = int_to_ptr.vmem [resolvable:$true] %s86
      %92 = dma.hbm_to_vmem [thread:$0]  %s16, 1024, %s87, [#allocation8], 128, 128, 8
    $region69: #{_lambda_.1} parent=1 // pred_fallthru
      _
    // Predicated region
    $region70: #{_lambda_.1} parent=1 // pred_check
      _
    $region71: #{_lambda_.1} parent=1 // pred_check_branch
      %94 = sbr.rel (0) target = $region73
    $region72: #{_lambda_.1} parent=1 // pred_region
      _
    $region73: #{_lambda_.1} parent=1 // pred_fallthru
      _
    // Predicated region
    $region74: #{_lambda_.1} parent=1 // pred_check
      _
    $region75: #{_lambda_.1} parent=1 // pred_check_branch
      %96 = sbr.rel (0) target = $region77
    $region76: #{_lambda_.1} parent=1 // pred_region
      %s98 = ssub.s32 1024, 1024
      %99 = vsyncadd [#allocation11], %s98
      %s100 = sshll.u32 [#allocation10], 4
      %s101 = int_to_ptr.vmem [resolvable:$true] %s100
      %106 = dma.hbm_to_vmem [thread:$0]  %s18, 1024, %s101, [#allocation11], 128, 128, 8
    $region77: #{_lambda_.1} parent=1 // pred_fallthru
      _
    // Predicated region
    $region78: #{_lambda_.1} parent=1 // pred_check
      _
    $region79: #{_lambda_.1} parent=1 // pred_check_branch
      %108 = sbr.rel (0) target = $region81
    $region80: #{_lambda_.1} parent=1 // pred_region
      _
    $region81: #{_lambda_.1} parent=1 // pred_fallthru
      _
    // Predicated region
    $region82: #{_lambda_.1} parent=1 // pred_check
      _
    $region83: #{_lambda_.1} parent=1 // pred_check_branch
      %110 = sbr.rel (0) target = $region85
    $region84: #{_lambda_.1} parent=1 // pred_region
      %111 = dma.done [#allocation5], 4096
    $region85: #{_lambda_.1} parent=1 // pred_fallthru
      _
    // Predicated region
    $region86: #{_lambda_.1} parent=1 // pred_check
      _
    $region87: #{_lambda_.1} parent=1 // pred_check_branch
      %113 = sbr.rel (0) target = $region89
    $region88: #{_lambda_.1} parent=1 // pred_region
      %114 = dma.done [#allocation8], 8192
    $region89: #{_lambda_.1} parent=1 // pred_fallthru
      _
    // Predicated region
    $region90: #{_lambda_.1} parent=1 // pred_check
      _
    $region91: #{_lambda_.1} parent=1 // pred_check_branch
      %116 = sbr.rel (0) target = $region93
    $region92: #{_lambda_.1} parent=1 // pred_region
      %117 = dma.done [#allocation8], 1024
    $region93: #{_lambda_.1} parent=1 // pred_fallthru
      _
    // Predicated region
    $region94: #{_lambda_.1} parent=1 // pred_check
      _
    $region95: #{_lambda_.1} parent=1 // pred_check_branch
      %119 = sbr.rel (0) target = $region97
    $region96: #{_lambda_.1} parent=1 // pred_region
      %120 = dma.done [#allocation11], 1024
    $region97: #{_lambda_.1} parent=1 // pred_fallthru
      _
    %v121 = vld [vmem:[%s1] sm:$0x3]
    %v122 = vld [vmem:[%s0] sm:$0xff]
    %v123 = vld [vmem:[%s0 + $0x8] sm:$0xff]
    %v124 = vld [vmem:[%s2] sm:$0x1]
    %v125 = vld [vmem:[%s3] sm:$0x1]
    %vm126 = vcmask 523264
    %v127 = vsel %vm126, %v122, 0.0
    %128 = vadd.xlane.f32.xlu0 %v127
    %v129 = vpop.xlane.xlu0 %128
    %v130 = vsel %vm126, %v123, 0.0
    %131 = vadd.xlane.f32.xlu0 %v130
    %v132 = vpop.xlane.xlu0 %131
    %v133 = vrcp.pop 64.0
    %v134 = vmul.f32 %v129, %v133
    %v135 = vmul.f32 %v132, %v133
    %v136 = vsub.f32 %v122, %v134
    %v137 = vsub.f32 %v123, %v135
    %v138 = vmul.f32 %v136, %v136
    %v139 = vmul.f32 %v137, %v137
    %v140 = vsel %vm126, %v138, 0.0
    %141 = vadd.xlane.f32.xlu0 %v140
    %v142 = vpop.xlane.xlu0 %141
    %v143 = vsel %vm126, %v139, 0.0
    %144 = vadd.xlane.f32.xlu0 %v143
    %v145 = vpop.xlane.xlu0 %144
    %v146 = vmul.f32 %v142, %v133
    %v147 = vmul.f32 %v145, %v133
    %v148 = vadd.f32 %v146, 1e-12
    %v149 = vadd.f32 %v147, 1e-12
    %v150 = vrsqrt.pop %v148
    %v151 = vrsqrt.pop %v149
    %v152 = vmul.f32 %v136, %v150
    %v153 = vmul.f32 %v137, %v151
    %v155 = vlaneseq
    %v156 = vshrl.u32 %v155, 7
    %v157 = vsub.s32 0, %v156
    %v158 = vrot.slane %v124, %v157
    %v160 = vmul.f32 %v152, %v158
    %v161 = vmul.f32 %v153, %v158
    %v163 = vlaneseq
    %v164 = vshrl.u32 %v163, 7
    %v165 = vsub.s32 0, %v164
    %v166 = vrot.slane %v125, %v165
    %v168 = vadd.f32 %v160, %v166
    %v169 = vadd.f32 %v161, %v166
    %v170 = vld [vmem:[%s4] sm:$0xff]
    %v171 = vld [vmem:[%s4 + $0x8] sm:$0xff]
    %v172 = vld [vmem:[%s4 + $0x10] sm:$0xff]
    %v173 = vld [vmem:[%s4 + $0x18] sm:$0xff]
    %v174 = vld [vmem:[%s4 + $0x20] sm:$0xff]
    %v175 = vld [vmem:[%s4 + $0x28] sm:$0xff]
    %v176 = vld [vmem:[%s4 + $0x30] sm:$0xff]
    %v177 = vld [vmem:[%s4 + $0x38] sm:$0xff]
    %v178 = vld [vmem:[%s4 + $0x40] sm:$0xff]
    %v179 = vld [vmem:[%s4 + $0x48] sm:$0xff]
    %v180 = vld [vmem:[%s4 + $0x50] sm:$0xff]
    %v181 = vld [vmem:[%s4 + $0x58] sm:$0xff]
    %v182 = vld [vmem:[%s4 + $0x60] sm:$0xff]
    %v183 = vld [vmem:[%s4 + $0x68] sm:$0xff]
    %v184 = vld [vmem:[%s4 + $0x70] sm:$0xff]
    %v185 = vld [vmem:[%s4 + $0x78] sm:$0xff]
    %v186 = vld [vmem:[%s5] sm:$0x3]
    %v188 = vlaneseq
    %v189 = vshrl.u32 %v188, 7
    %v190 = vsub.s32 0, %v189
    %v191 = vrot.slane %v186, %v190
    %v192 = vlaneseq
    %v193 = vshrl.u32 %v192, 7
    %v194 = vsub.s32 1, %v193
    %v195 = vrot.slane %v186, %v194
    %v199 = vsel %vm126, %v168, 0
    %v202 = vsel %vm126, %v169, 0
    %204 = vmatprep.subr.mxu0 %v171
    %205 = vmatpush1.msra.mxu0 %v170
    %206 = vmatprep.subr.mxu0 %v173
    %207 = vmatpush1.msra.mxu0 %v172
    %208 = vmatprep.subr.mxu0 %v175
    %209 = vmatpush1.msra.mxu0 %v174
    %210 = vmatprep.subr.mxu0 %v177
    %211 = vmatpush1.msra.mxu0 %v176
    %212 = vmatprep.subr.mxu0 %v179
    %213 = vmatpush1.msra.mxu0 %v178
    %214 = vmatprep.subr.mxu0 %v181
    %215 = vmatpush1.msra.mxu0 %v180
    %216 = vmatprep.subr.mxu0 %v183
    %217 = vmatpush1.msra.mxu0 %v182
    %218 = vmatprep.subr.mxu0 %v185
    %219 = vmatpush1.msra.mxu0 %v184
    %220 = vmatprep.subr.mxu0 0.0
    %221 = vmatpush1.msra.mxu0 0.0
    %222 = vmatprep.subr.mxu0 0.0
    %223 = vmatpush1.msra.mxu0 0.0
    %224 = vmatprep.subr.mxu0 0.0
    %225 = vmatpush1.msra.mxu0 0.0
    %226 = vmatprep.subr.mxu0 0.0
    %227 = vmatpush1.msra.mxu0 0.0
    %228 = vmatprep.subr.mxu0 0.0
    %229 = vmatpush1.msra.mxu0 0.0
    %230 = vmatprep.subr.mxu0 0.0
    %231 = vmatpush1.msra.mxu0 0.0
    %232 = vmatprep.subr.mxu0 0.0
    %233 = vmatpush1.msra.mxu0 0.0
    %234 = vmatprep.subr.mxu0 0.0
    %235 = vmatpush1.msra.mxu0 0.0
    %236 = vmatprep.subr.mxu0 0.0
    %237 = vmatpush1.msra.mxu0 0.0
    %238 = vmatprep.subr.mxu0 0.0
    %239 = vmatpush1.msra.mxu0 0.0
    %240 = vmatprep.subr.mxu0 0.0
    %241 = vmatpush1.msra.mxu0 0.0
    %242 = vmatprep.subr.mxu0 0.0
    %243 = vmatpush1.msra.mxu0 0.0
    %244 = vmatprep.subr.mxu0 0.0
    %245 = vmatpush1.msra.mxu0 0.0
    %246 = vmatprep.subr.mxu0 0.0
    %247 = vmatpush1.msra.mxu0 0.0
    %248 = vmatprep.subr.mxu0 0.0
    %249 = vmatpush1.msra.mxu0 0.0
    %250 = vmatprep.subr.mxu0 0.0
    %251 = vmatpush1.msra.mxu0 0.0
    %252 = vmatprep.subr.mxu0 0.0
    %253 = vmatpush1.msra.mxu0 0.0
    %254 = vmatprep.subr.mxu0 0.0
    %255 = vmatpush1.msra.mxu0 0.0
    %256 = vmatprep.subr.mxu0 0.0
    %257 = vmatpush1.msra.mxu0 0.0
    %258 = vmatprep.subr.mxu0 0.0
    %259 = vmatpush1.msra.mxu0 0.0
    %260 = vmatprep.subr.mxu0 0.0
    %261 = vmatpush1.msra.mxu0 0.0
    %262 = vmatprep.subr.mxu0 0.0
    %263 = vmatpush1.msra.mxu0 0.0
    %264 = vmatprep.subr.mxu0 0.0
    %265 = vmatpush1.msra.mxu0 0.0
    %266 = vmatprep.subr.mxu0 0.0
    %267 = vmatpush1.msra.mxu0 0.0
    %268 = vmatprep.mubr.f32.mxu0 0.0
    %269 = vmatmul.mubr.f32.gmra.mrb[0].mxu0 %v199
    %v270 = vpop.f32.mrb[0].mxu0
    %v271 = vadd.f32 %v191, %v270
    %v272 = vpop.f32.mrb[0].mxu0
    %v273 = vadd.f32 %v195, %v272
    %274 = vmatprep.mubr.f32.mxu0 0.0
    %275 = vmatmul.mubr.f32.gmra.mrb[0].mxu0 %v202
    %v276 = vpop.f32.mrb[0].mxu0
    %v277 = vadd.f32 %v191, %v276
    %v278 = vpop.f32.mrb[0].mxu0
    %v279 = vadd.f32 %v195, %v278
    %280 = vdwg.mxu0
    %v281 = vlaneseq
    %v282 = vshrl.u32 %v281, 7
    %v283 = vsub.s32 0, %v282
    %v284 = vrot.slane %v121, %v283
    %286 = vrot.lane.b32.xlu0 %v271, 64
    %v287 = vpop.permute.xlu0 %286
    %vm288 = vcmask 130048
    %v289 = vsel %vm288, %v271, 0
    %v291 = vsel %vm288, %v287, 0
    %293 = vmatprep.subr.mxu0 0.0
    %294 = vmatpush1.xpose.msra.mxu0 %v291
    %295 = vmatprep.subr.mxu0 0.0
    %296 = vmatpush1.xpose.msra.mxu0 0.0
    %297 = vmatprep.subr.mxu0 0.0
    %298 = vmatpush1.xpose.msra.mxu0 0.0
    %299 = vmatprep.subr.mxu0 0.0
    %300 = vmatpush1.xpose.msra.mxu0 0.0
    %301 = vmatprep.subr.mxu0 0.0
    %302 = vmatpush1.xpose.msra.mxu0 0.0
    %303 = vmatprep.subr.mxu0 0.0
    %304 = vmatpush1.xpose.msra.mxu0 0.0
    %305 = vmatprep.subr.mxu0 0.0
    %306 = vmatpush1.xpose.msra.mxu0 0.0
    %307 = vmatprep.subr.mxu0 0.0
    %308 = vmatpush1.xpose.msra.mxu0 0.0
    %309 = vmatprep.subr.mxu0 0.0
    %310 = vmatpush1.xpose.msra.mxu0 0.0
    %311 = vmatprep.subr.mxu0 0.0
    %312 = vmatpush1.xpose.msra.mxu0 0.0
    %313 = vmatprep.subr.mxu0 0.0
    %314 = vmatpush1.xpose.msra.mxu0 0.0
    %315 = vmatprep.subr.mxu0 0.0
    %316 = vmatpush1.xpose.msra.mxu0 0.0
    %317 = vmatprep.subr.mxu0 0.0
    %318 = vmatpush1.xpose.msra.mxu0 0.0
    %319 = vmatprep.subr.mxu0 0.0
    %320 = vmatpush1.xpose.msra.mxu0 0.0
    %321 = vmatprep.subr.mxu0 0.0
    %322 = vmatpush1.xpose.msra.mxu0 0.0
    %323 = vmatprep.subr.mxu0 0.0
    %324 = vmatpush1.xpose.msra.mxu0 0.0
    %325 = vmatprep.subr.mxu0 0.0
    %326 = vmatpush1.xpose.msra.mxu0 0.0
    %327 = vmatprep.subr.mxu0 0.0
    %328 = vmatpush1.xpose.msra.mxu0 0.0
    %329 = vmatprep.subr.mxu0 0.0
    %330 = vmatpush1.xpose.msra.mxu0 0.0
    %331 = vmatprep.subr.mxu0 0.0
    %332 = vmatpush1.xpose.msra.mxu0 0.0
    %333 = vmatprep.subr.mxu0 0.0
    %334 = vmatpush1.xpose.msra.mxu0 0.0
    %335 = vmatprep.subr.mxu0 0.0
    %336 = vmatpush1.xpose.msra.mxu0 0.0
    %337 = vmatprep.subr.mxu0 0.0
    %338 = vmatpush1.xpose.msra.mxu0 0.0
    %339 = vmatprep.subr.mxu0 0.0
    %340 = vmatpush1.xpose.msra.mxu0 0.0
    %341 = vmatprep.subr.mxu0 0.0
    %342 = vmatpush1.xpose.msra.mxu0 0.0
    %343 = vmatprep.subr.mxu0 0.0
    %344 = vmatpush1.xpose.msra.mxu0 0.0
    %345 = vmatprep.subr.mxu0 0.0
    %346 = vmatpush1.xpose.msra.mxu0 0.0
    %347 = vmatprep.subr.mxu0 0.0
    %348 = vmatpush1.xpose.msra.mxu0 0.0
    %349 = vmatprep.subr.mxu0 0.0
    %350 = vmatpush1.xpose.msra.mxu0 0.0
    %351 = vmatprep.subr.mxu0 0.0
    %352 = vmatpush1.xpose.msra.mxu0 0.0
    %353 = vmatprep.subr.mxu0 0.0
    %354 = vmatpush1.xpose.msra.mxu0 0.0
    %355 = vmatprep.subr.mxu0 0.0
    %356 = vmatpush1.xpose.msra.mxu0 0.0
    %357 = vmatprep.mubr.f32.mxu0 0.0
    %358 = vmatmul.mubr.f32.gmra.mrb[0].mxu0 %v289
    %v359 = vpop.f32.mrb[0].mxu0
    %v360 = vadd.f32 %v284, %v359
    %v361 = vpop.f32.mrb[0].mxu0
    %362 = vdwg.mxu0
    %vm363 = vcmask 64512
    %v364 = vsel %vm363, %v360, -inf
    %365 = vmax.xlane.f32.xlu0 %v364
    %v366 = vpop.xlane.xlu0 %365
    %v367 = vsub.f32 %v360, %v366
    %v368 = vmul.f32 %v367, 1.442695
    %v369 = vpow.pop %v368
    %v370 = vsel %vm363, %v369, 0.0
    %371 = vadd.xlane.f32.xlu0 %v370
    %v372 = vpop.xlane.xlu0 %371
    %v373 = vrcp.pop %v372
    %v374 = vmul.f32 %v369, %v373
    %v376 = vsel %vm363, %v374, 0
    %378 = vmatprep.subr.mxu0 0.0
    %379 = vmatpush1.msra.mxu0 %v273
    %380 = vmatprep.subr.mxu0 0.0
    %381 = vmatpush1.msra.mxu0 0.0
    %382 = vmatprep.subr.mxu0 0.0
    %383 = vmatpush1.msra.mxu0 0.0
    %384 = vmatprep.subr.mxu0 0.0
    %385 = vmatpush1.msra.mxu0 0.0
    %386 = vmatprep.subr.mxu0 0.0
    %387 = vmatpush1.msra.mxu0 0.0
    %388 = vmatprep.subr.mxu0 0.0
    %389 = vmatpush1.msra.mxu0 0.0
    %390 = vmatprep.subr.mxu0 0.0
    %391 = vmatpush1.msra.mxu0 0.0
    %392 = vmatprep.subr.mxu0 0.0
    %393 = vmatpush1.msra.mxu0 0.0
    %394 = vmatprep.subr.mxu0 0.0
    %395 = vmatpush1.msra.mxu0 0.0
    %396 = vmatprep.subr.mxu0 0.0
    %397 = vmatpush1.msra.mxu0 0.0
    %398 = vmatprep.subr.mxu0 0.0
    %399 = vmatpush1.msra.mxu0 0.0
    %400 = vmatprep.subr.mxu0 0.0
    %401 = vmatpush1.msra.mxu0 0.0
    %402 = vmatprep.subr.mxu0 0.0
    %403 = vmatpush1.msra.mxu0 0.0
    %404 = vmatprep.subr.mxu0 0.0
    %405 = vmatpush1.msra.mxu0 0.0
    %406 = vmatprep.subr.mxu0 0.0
    %407 = vmatpush1.msra.mxu0 0.0
    %408 = vmatprep.subr.mxu0 0.0
    %409 = vmatpush1.msra.mxu0 0.0
    %410 = vmatprep.subr.mxu0 0.0
    %411 = vmatpush1.msra.mxu0 0.0
    %412 = vmatprep.subr.mxu0 0.0
    %413 = vmatpush1.msra.mxu0 0.0
    %414 = vmatprep.subr.mxu0 0.0
    %415 = vmatpush1.msra.mxu0 0.0
    %416 = vmatprep.subr.mxu0 0.0
    %417 = vmatpush1.msra.mxu0 0.0
    %418 = vmatprep.subr.mxu0 0.0
    %419 = vmatpush1.msra.mxu0 0.0
    %420 = vmatprep.subr.mxu0 0.0
    %421 = vmatpush1.msra.mxu0 0.0
    %422 = vmatprep.subr.mxu0 0.0
    %423 = vmatpush1.msra.mxu0 0.0
    %424 = vmatprep.subr.mxu0 0.0
    %425 = vmatpush1.msra.mxu0 0.0
    %426 = vmatprep.subr.mxu0 0.0
    %427 = vmatpush1.msra.mxu0 0.0
    %428 = vmatprep.subr.mxu0 0.0
    %429 = vmatpush1.msra.mxu0 0.0
    %430 = vmatprep.subr.mxu0 0.0
    %431 = vmatpush1.msra.mxu0 0.0
    %432 = vmatprep.subr.mxu0 0.0
    %433 = vmatpush1.msra.mxu0 0.0
    %434 = vmatprep.subr.mxu0 0.0
    %435 = vmatpush1.msra.mxu0 0.0
    %436 = vmatprep.subr.mxu0 0.0
    %437 = vmatpush1.msra.mxu0 0.0
    %438 = vmatprep.subr.mxu0 0.0
    %439 = vmatpush1.msra.mxu0 0.0
    %440 = vmatprep.subr.mxu0 0.0
    %441 = vmatpush1.msra.mxu0 0.0
    %442 = vmatprep.mubr.f32.mxu0 0.0
    %443 = vmatmul.mubr.f32.gmra.mrb[0].mxu0 %v376
    %v444 = vpop.f32.mrb[0].mxu0
    %v445 = vadd.f32 0.0, %v444
    %v446 = vpop.f32.mrb[0].mxu0
    %447 = vdwg.mxu0
    %448 = vst.msk [vmem:[#allocation2] sm:$0xff] %vm288, %v445
    %449 = vrot.lane.b32.xlu0 %v271, 112
    %v450 = vpop.permute.xlu0 %449
    %451 = vrot.lane.b32.xlu0 %v271, 48
    %v452 = vpop.permute.xlu0 %451
    %v453 = vsel %vm288, %v450, 0
    %v455 = vsel %vm288, %v452, 0
    %457 = vmatprep.subr.mxu0 0.0
    %458 = vmatpush1.xpose.msra.mxu0 %v455
    %459 = vmatprep.subr.mxu0 0.0
    %460 = vmatpush1.xpose.msra.mxu0 0.0
    %461 = vmatprep.subr.mxu0 0.0
    %462 = vmatpush1.xpose.msra.mxu0 0.0
    %463 = vmatprep.subr.mxu0 0.0
    %464 = vmatpush1.xpose.msra.mxu0 0.0
    %465 = vmatprep.subr.mxu0 0.0
    %466 = vmatpush1.xpose.msra.mxu0 0.0
    %467 = vmatprep.subr.mxu0 0.0
    %468 = vmatpush1.xpose.msra.mxu0 0.0
    %469 = vmatprep.subr.mxu0 0.0
    %470 = vmatpush1.xpose.msra.mxu0 0.0
    %471 = vmatprep.subr.mxu0 0.0
    %472 = vmatpush1.xpose.msra.mxu0 0.0
    %473 = vmatprep.subr.mxu0 0.0
    %474 = vmatpush1.xpose.msra.mxu0 0.0
    %475 = vmatprep.subr.mxu0 0.0
    %476 = vmatpush1.xpose.msra.mxu0 0.0
    %477 = vmatprep.subr.mxu0 0.0
    %478 = vmatpush1.xpose.msra.mxu0 0.0
    %479 = vmatprep.subr.mxu0 0.0
    %480 = vmatpush1.xpose.msra.mxu0 0.0
    %481 = vmatprep.subr.mxu0 0.0
    %482 = vmatpush1.xpose.msra.mxu0 0.0
    %483 = vmatprep.subr.mxu0 0.0
    %484 = vmatpush1.xpose.msra.mxu0 0.0
    %485 = vmatprep.subr.mxu0 0.0
    %486 = vmatpush1.xpose.msra.mxu0 0.0
    %487 = vmatprep.subr.mxu0 0.0
    %488 = vmatpush1.xpose.msra.mxu0 0.0
    %489 = vmatprep.subr.mxu0 0.0
    %490 = vmatpush1.xpose.msra.mxu0 0.0
    %491 = vmatprep.subr.mxu0 0.0
    %492 = vmatpush1.xpose.msra.mxu0 0.0
    %493 = vmatprep.subr.mxu0 0.0
    %494 = vmatpush1.xpose.msra.mxu0 0.0
    %495 = vmatprep.subr.mxu0 0.0
    %496 = vmatpush1.xpose.msra.mxu0 0.0
    %497 = vmatprep.subr.mxu0 0.0
    %498 = vmatpush1.xpose.msra.mxu0 0.0
    %499 = vmatprep.subr.mxu0 0.0
    %500 = vmatpush1.xpose.msra.mxu0 0.0
    %501 = vmatprep.subr.mxu0 0.0
    %502 = vmatpush1.xpose.msra.mxu0 0.0
    %503 = vmatprep.subr.mxu0 0.0
    %504 = vmatpush1.xpose.msra.mxu0 0.0
    %505 = vmatprep.subr.mxu0 0.0
    %506 = vmatpush1.xpose.msra.mxu0 0.0
    %507 = vmatprep.subr.mxu0 0.0
    %508 = vmatpush1.xpose.msra.mxu0 0.0
    %509 = vmatprep.subr.mxu0 0.0
    %510 = vmatpush1.xpose.msra.mxu0 0.0
    %511 = vmatprep.subr.mxu0 0.0
    %512 = vmatpush1.xpose.msra.mxu0 0.0
    %513 = vmatprep.subr.mxu0 0.0
    %514 = vmatpush1.xpose.msra.mxu0 0.0
    %515 = vmatprep.subr.mxu0 0.0
    %516 = vmatpush1.xpose.msra.mxu0 0.0
    %517 = vmatprep.subr.mxu0 0.0
    %518 = vmatpush1.xpose.msra.mxu0 0.0
    %519 = vmatprep.subr.mxu0 0.0
    %520 = vmatpush1.xpose.msra.mxu0 0.0
    %521 = vmatprep.mubr.f32.mxu0 0.0
    %522 = vmatmul.mubr.f32.gmra.mrb[0].mxu0 %v453
    %v523 = vpop.f32.mrb[0].mxu0
    %v524 = vadd.f32 %v284, %v523
    %v525 = vpop.f32.mrb[0].mxu0
    %526 = vdwg.mxu0
    %v527 = vsel %vm363, %v524, -inf
    %528 = vmax.xlane.f32.xlu0 %v527
    %v529 = vpop.xlane.xlu0 %528
    %v530 = vsub.f32 %v524, %v529
    %v531 = vmul.f32 %v530, 1.442695
    %v532 = vpow.pop %v531
    %v533 = vsel %vm363, %v532, 0.0
    %534 = vadd.xlane.f32.xlu0 %v533
    %v535 = vpop.xlane.xlu0 %534
    %v536 = vrcp.pop %v535
    %v537 = vmul.f32 %v532, %v536
    %539 = vrot.lane.b32.xlu0 %v273, 112
    %v540 = vpop.permute.xlu0 %539
    %v543 = vsel %vm363, %v537, 0
    %545 = vmatprep.subr.mxu0 0.0
    %546 = vmatpush1.msra.mxu0 %v540
    %547 = vmatprep.subr.mxu0 0.0
    %548 = vmatpush1.msra.mxu0 0.0
    %549 = vmatprep.subr.mxu0 0.0
    %550 = vmatpush1.msra.mxu0 0.0
    %551 = vmatprep.subr.mxu0 0.0
    %552 = vmatpush1.msra.mxu0 0.0
    %553 = vmatprep.subr.mxu0 0.0
    %554 = vmatpush1.msra.mxu0 0.0
    %555 = vmatprep.subr.mxu0 0.0
    %556 = vmatpush1.msra.mxu0 0.0
    %557 = vmatprep.subr.mxu0 0.0
    %558 = vmatpush1.msra.mxu0 0.0
    %559 = vmatprep.subr.mxu0 0.0
    %560 = vmatpush1.msra.mxu0 0.0
    %561 = vmatprep.subr.mxu0 0.0
    %562 = vmatpush1.msra.mxu0 0.0
    %563 = vmatprep.subr.mxu0 0.0
    %564 = vmatpush1.msra.mxu0 0.0
    %565 = vmatprep.subr.mxu0 0.0
    %566 = vmatpush1.msra.mxu0 0.0
    %567 = vmatprep.subr.mxu0 0.0
    %568 = vmatpush1.msra.mxu0 0.0
    %569 = vmatprep.subr.mxu0 0.0
    %570 = vmatpush1.msra.mxu0 0.0
    %571 = vmatprep.subr.mxu0 0.0
    %572 = vmatpush1.msra.mxu0 0.0
    %573 = vmatprep.subr.mxu0 0.0
    %574 = vmatpush1.msra.mxu0 0.0
    %575 = vmatprep.subr.mxu0 0.0
    %576 = vmatpush1.msra.mxu0 0.0
    %577 = vmatprep.subr.mxu0 0.0
    %578 = vmatpush1.msra.mxu0 0.0
    %579 = vmatprep.subr.mxu0 0.0
    %580 = vmatpush1.msra.mxu0 0.0
    %581 = vmatprep.subr.mxu0 0.0
    %582 = vmatpush1.msra.mxu0 0.0
    %583 = vmatprep.subr.mxu0 0.0
    %584 = vmatpush1.msra.mxu0 0.0
    %585 = vmatprep.subr.mxu0 0.0
    %586 = vmatpush1.msra.mxu0 0.0
    %587 = vmatprep.subr.mxu0 0.0
    %588 = vmatpush1.msra.mxu0 0.0
    %589 = vmatprep.subr.mxu0 0.0
    %590 = vmatpush1.msra.mxu0 0.0
    %591 = vmatprep.subr.mxu0 0.0
    %592 = vmatpush1.msra.mxu0 0.0
    %593 = vmatprep.subr.mxu0 0.0
    %594 = vmatpush1.msra.mxu0 0.0
    %595 = vmatprep.subr.mxu0 0.0
    %596 = vmatpush1.msra.mxu0 0.0
    %597 = vmatprep.subr.mxu0 0.0
    %598 = vmatpush1.msra.mxu0 0.0
    %599 = vmatprep.subr.mxu0 0.0
    %600 = vmatpush1.msra.mxu0 0.0
    %601 = vmatprep.subr.mxu0 0.0
    %602 = vmatpush1.msra.mxu0 0.0
    %603 = vmatprep.subr.mxu0 0.0
    %604 = vmatpush1.msra.mxu0 0.0
    %605 = vmatprep.subr.mxu0 0.0
    %606 = vmatpush1.msra.mxu0 0.0
    %607 = vmatprep.subr.mxu0 0.0
    %608 = vmatpush1.msra.mxu0 0.0
    %609 = vmatprep.mubr.f32.mxu0 0.0
    %610 = vmatmul.mubr.f32.gmra.mrb[0].mxu0 %v543
    %v611 = vpop.f32.mrb[0].mxu0
    %v612 = vadd.f32 0.0, %v611
    %v613 = vpop.f32.mrb[0].mxu0
    %614 = vdwg.mxu0
    %616 = vrot.lane.b32.xlu0 %v612, 16
    %v617 = vpop.permute.xlu0 %616
    %vm619 = vcmask 261248
    %620 = vst.msk [vmem:[#allocation2] sm:$0xff] %vm619, %v617
    %621 = vrot.lane.b32.xlu0 %v271, 96
    %v622 = vpop.permute.xlu0 %621
    %623 = vrot.lane.b32.xlu0 %v271, 32
    %v624 = vpop.permute.xlu0 %623
    %v625 = vsel %vm288, %v622, 0
    %v627 = vsel %vm288, %v624, 0
    %629 = vmatprep.subr.mxu0 0.0
    %630 = vmatpush1.xpose.msra.mxu0 %v627
    %631 = vmatprep.subr.mxu0 0.0
    %632 = vmatpush1.xpose.msra.mxu0 0.0
    %633 = vmatprep.subr.mxu0 0.0
    %634 = vmatpush1.xpose.msra.mxu0 0.0
    %635 = vmatprep.subr.mxu0 0.0
    %636 = vmatpush1.xpose.msra.mxu0 0.0
    %637 = vmatprep.subr.mxu0 0.0
    %638 = vmatpush1.xpose.msra.mxu0 0.0
    %639 = vmatprep.subr.mxu0 0.0
    %640 = vmatpush1.xpose.msra.mxu0 0.0
    %641 = vmatprep.subr.mxu0 0.0
    %642 = vmatpush1.xpose.msra.mxu0 0.0
    %643 = vmatprep.subr.mxu0 0.0
    %644 = vmatpush1.xpose.msra.mxu0 0.0
    %645 = vmatprep.subr.mxu0 0.0
    %646 = vmatpush1.xpose.msra.mxu0 0.0
    %647 = vmatprep.subr.mxu0 0.0
    %648 = vmatpush1.xpose.msra.mxu0 0.0
    %649 = vmatprep.subr.mxu0 0.0
    %650 = vmatpush1.xpose.msra.mxu0 0.0
    %651 = vmatprep.subr.mxu0 0.0
    %652 = vmatpush1.xpose.msra.mxu0 0.0
    %653 = vmatprep.subr.mxu0 0.0
    %654 = vmatpush1.xpose.msra.mxu0 0.0
    %655 = vmatprep.subr.mxu0 0.0
    %656 = vmatpush1.xpose.msra.mxu0 0.0
    %657 = vmatprep.subr.mxu0 0.0
    %658 = vmatpush1.xpose.msra.mxu0 0.0
    %659 = vmatprep.subr.mxu0 0.0
    %660 = vmatpush1.xpose.msra.mxu0 0.0
    %661 = vmatprep.subr.mxu0 0.0
    %662 = vmatpush1.xpose.msra.mxu0 0.0
    %663 = vmatprep.subr.mxu0 0.0
    %664 = vmatpush1.xpose.msra.mxu0 0.0
    %665 = vmatprep.subr.mxu0 0.0
    %666 = vmatpush1.xpose.msra.mxu0 0.0
    %667 = vmatprep.subr.mxu0 0.0
    %668 = vmatpush1.xpose.msra.mxu0 0.0
    %669 = vmatprep.subr.mxu0 0.0
    %670 = vmatpush1.xpose.msra.mxu0 0.0
    %671 = vmatprep.subr.mxu0 0.0
    %672 = vmatpush1.xpose.msra.mxu0 0.0
    %673 = vmatprep.subr.mxu0 0.0
    %674 = vmatpush1.xpose.msra.mxu0 0.0
    %675 = vmatprep.subr.mxu0 0.0
    %676 = vmatpush1.xpose.msra.mxu0 0.0
    %677 = vmatprep.subr.mxu0 0.0
    %678 = vmatpush1.xpose.msra.mxu0 0.0
    %679 = vmatprep.subr.mxu0 0.0
    %680 = vmatpush1.xpose.msra.mxu0 0.0
    %681 = vmatprep.subr.mxu0 0.0
    %682 = vmatpush1.xpose.msra.mxu0 0.0
    %683 = vmatprep.subr.mxu0 0.0
    %684 = vmatpush1.xpose.msra.mxu0 0.0
    %685 = vmatprep.subr.mxu0 0.0
    %686 = vmatpush1.xpose.msra.mxu0 0.0
    %687 = vmatprep.subr.mxu0 0.0
    %688 = vmatpush1.xpose.msra.mxu0 0.0
    %689 = vmatprep.subr.mxu0 0.0
    %690 = vmatpush1.xpose.msra.mxu0 0.0
    %691 = vmatprep.subr.mxu0 0.0
    %692 = vmatpush1.xpose.msra.mxu0 0.0
    %693 = vmatprep.mubr.f32.mxu0 0.0
    %694 = vmatmul.mubr.f32.gmra.mrb[0].mxu0 %v625
    %v695 = vpop.f32.mrb[0].mxu0
    %v696 = vadd.f32 %v284, %v695
    %v697 = vpop.f32.mrb[0].mxu0
    %698 = vdwg.mxu0
    %v699 = vsel %vm363, %v696, -inf
    %700 = vmax.xlane.f32.xlu0 %v699
    %v701 = vpop.xlane.xlu0 %700
    %v702 = vsub.f32 %v696, %v701
    %v703 = vmul.f32 %v702, 1.442695
    %v704 = vpow.pop %v703
    %v705 = vsel %vm363, %v704, 0.0
    %706 = vadd.xlane.f32.xlu0 %v705
    %v707 = vpop.xlane.xlu0 %706
    %v708 = vrcp.pop %v707
    %v709 = vmul.f32 %v704, %v708
    %710 = vrot.lane.b32.xlu0 %v273, 96
    %v711 = vpop.permute.xlu0 %710
    %v714 = vsel %vm363, %v709, 0
    %716 = vmatprep.subr.mxu0 0.0
    %717 = vmatpush1.msra.mxu0 %v711
    %718 = vmatprep.subr.mxu0 0.0
    %719 = vmatpush1.msra.mxu0 0.0
    %720 = vmatprep.subr.mxu0 0.0
    %721 = vmatpush1.msra.mxu0 0.0
    %722 = vmatprep.subr.mxu0 0.0
    %723 = vmatpush1.msra.mxu0 0.0
    %724 = vmatprep.subr.mxu0 0.0
    %725 = vmatpush1.msra.mxu0 0.0
    %726 = vmatprep.subr.mxu0 0.0
    %727 = vmatpush1.msra.mxu0 0.0
    %728 = vmatprep.subr.mxu0 0.0
    %729 = vmatpush1.msra.mxu0 0.0
    %730 = vmatprep.subr.mxu0 0.0
    %731 = vmatpush1.msra.mxu0 0.0
    %732 = vmatprep.subr.mxu0 0.0
    %733 = vmatpush1.msra.mxu0 0.0
    %734 = vmatprep.subr.mxu0 0.0
    %735 = vmatpush1.msra.mxu0 0.0
    %736 = vmatprep.subr.mxu0 0.0
    %737 = vmatpush1.msra.mxu0 0.0
    %738 = vmatprep.subr.mxu0 0.0
    %739 = vmatpush1.msra.mxu0 0.0
    %740 = vmatprep.subr.mxu0 0.0
    %741 = vmatpush1.msra.mxu0 0.0
    %742 = vmatprep.subr.mxu0 0.0
    %743 = vmatpush1.msra.mxu0 0.0
    %744 = vmatprep.subr.mxu0 0.0
    %745 = vmatpush1.msra.mxu0 0.0
    %746 = vmatprep.subr.mxu0 0.0
    %747 = vmatpush1.msra.mxu0 0.0
    %748 = vmatprep.subr.mxu0 0.0
    %749 = vmatpush1.msra.mxu0 0.0
    %750 = vmatprep.subr.mxu0 0.0
    %751 = vmatpush1.msra.mxu0 0.0
    %752 = vmatprep.subr.mxu0 0.0
    %753 = vmatpush1.msra.mxu0 0.0
    %754 = vmatprep.subr.mxu0 0.0
    %755 = vmatpush1.msra.mxu0 0.0
    %756 = vmatprep.subr.mxu0 0.0
    %757 = vmatpush1.msra.mxu0 0.0
    %758 = vmatprep.subr.mxu0 0.0
    %759 = vmatpush1.msra.mxu0 0.0
    %760 = vmatprep.subr.mxu0 0.0
    %761 = vmatpush1.msra.mxu0 0.0
    %762 = vmatprep.subr.mxu0 0.0
    %763 = vmatpush1.msra.mxu0 0.0
    %764 = vmatprep.subr.mxu0 0.0
    %765 = vmatpush1.msra.mxu0 0.0
    %766 = vmatprep.subr.mxu0 0.0
    %767 = vmatpush1.msra.mxu0 0.0
    %768 = vmatprep.subr.mxu0 0.0
    %769 = vmatpush1.msra.mxu0 0.0
    %770 = vmatprep.subr.mxu0 0.0
    %771 = vmatpush1.msra.mxu0 0.0
    %772 = vmatprep.subr.mxu0 0.0
    %773 = vmatpush1.msra.mxu0 0.0
    %774 = vmatprep.subr.mxu0 0.0
    %775 = vmatpush1.msra.mxu0 0.0
    %776 = vmatprep.subr.mxu0 0.0
    %777 = vmatpush1.msra.mxu0 0.0
    %778 = vmatprep.subr.mxu0 0.0
    %779 = vmatpush1.msra.mxu0 0.0
    %780 = vmatprep.mubr.f32.mxu0 0.0
    %781 = vmatmul.mubr.f32.gmra.mrb[0].mxu0 %v714
    %v782 = vpop.f32.mrb[0].mxu0
    %v783 = vadd.f32 0.0, %v782
    %v784 = vpop.f32.mrb[0].mxu0
    %785 = vdwg.mxu0
    %787 = vrot.lane.b32.xlu0 %v783, 32
    %v788 = vpop.permute.xlu0 %787
    %vm790 = vcmask 392448
    %791 = vst.msk [vmem:[#allocation2] sm:$0xff] %vm790, %v788
    %792 = vrot.lane.b32.xlu0 %v271, 80
    %v793 = vpop.permute.xlu0 %792
    %794 = vrot.lane.b32.xlu0 %v271, 16
    %v795 = vpop.permute.xlu0 %794
    %v796 = vsel %vm288, %v793, 0
    %v798 = vsel %vm288, %v795, 0
    %800 = vmatprep.subr.mxu0 0.0
    %801 = vmatpush1.xpose.msra.mxu0 %v798
    %802 = vmatprep.subr.mxu0 0.0
    %803 = vmatpush1.xpose.msra.mxu0 0.0
    %804 = vmatprep.subr.mxu0 0.0
    %805 = vmatpush1.xpose.msra.mxu0 0.0
    %806 = vmatprep.subr.mxu0 0.0
    %807 = vmatpush1.xpose.msra.mxu0 0.0
    %808 = vmatprep.subr.mxu0 0.0
    %809 = vmatpush1.xpose.msra.mxu0 0.0
    %810 = vmatprep.subr.mxu0 0.0
    %811 = vmatpush1.xpose.msra.mxu0 0.0
    %812 = vmatprep.subr.mxu0 0.0
    %813 = vmatpush1.xpose.msra.mxu0 0.0
    %814 = vmatprep.subr.mxu0 0.0
    %815 = vmatpush1.xpose.msra.mxu0 0.0
    %816 = vmatprep.subr.mxu0 0.0
    %817 = vmatpush1.xpose.msra.mxu0 0.0
    %818 = vmatprep.subr.mxu0 0.0
    %819 = vmatpush1.xpose.msra.mxu0 0.0
    %820 = vmatprep.subr.mxu0 0.0
    %821 = vmatpush1.xpose.msra.mxu0 0.0
    %822 = vmatprep.subr.mxu0 0.0
    %823 = vmatpush1.xpose.msra.mxu0 0.0
    %824 = vmatprep.subr.mxu0 0.0
    %825 = vmatpush1.xpose.msra.mxu0 0.0
    %826 = vmatprep.subr.mxu0 0.0
    %827 = vmatpush1.xpose.msra.mxu0 0.0
    %828 = vmatprep.subr.mxu0 0.0
    %829 = vmatpush1.xpose.msra.mxu0 0.0
    %830 = vmatprep.subr.mxu0 0.0
    %831 = vmatpush1.xpose.msra.mxu0 0.0
    %832 = vmatprep.subr.mxu0 0.0
    %833 = vmatpush1.xpose.msra.mxu0 0.0
    %834 = vmatprep.subr.mxu0 0.0
    %835 = vmatpush1.xpose.msra.mxu0 0.0
    %836 = vmatprep.subr.mxu0 0.0
    %837 = vmatpush1.xpose.msra.mxu0 0.0
    %838 = vmatprep.subr.mxu0 0.0
    %839 = vmatpush1.xpose.msra.mxu0 0.0
    %840 = vmatprep.subr.mxu0 0.0
    %841 = vmatpush1.xpose.msra.mxu0 0.0
    %842 = vmatprep.subr.mxu0 0.0
    %843 = vmatpush1.xpose.msra.mxu0 0.0
    %844 = vmatprep.subr.mxu0 0.0
    %845 = vmatpush1.xpose.msra.mxu0 0.0
    %846 = vmatprep.subr.mxu0 0.0
    %847 = vmatpush1.xpose.msra.mxu0 0.0
    %848 = vmatprep.subr.mxu0 0.0
    %849 = vmatpush1.xpose.msra.mxu0 0.0
    %850 = vmatprep.subr.mxu0 0.0
    %851 = vmatpush1.xpose.msra.mxu0 0.0
    %852 = vmatprep.subr.mxu0 0.0
    %853 = vmatpush1.xpose.msra.mxu0 0.0
    %854 = vmatprep.subr.mxu0 0.0
    %855 = vmatpush1.xpose.msra.mxu0 0.0
    %856 = vmatprep.subr.mxu0 0.0
    %857 = vmatpush1.xpose.msra.mxu0 0.0
    %858 = vmatprep.subr.mxu0 0.0
    %859 = vmatpush1.xpose.msra.mxu0 0.0
    %860 = vmatprep.subr.mxu0 0.0
    %861 = vmatpush1.xpose.msra.mxu0 0.0
    %862 = vmatprep.subr.mxu0 0.0
    %863 = vmatpush1.xpose.msra.mxu0 0.0
    %864 = vmatprep.mubr.f32.mxu0 0.0
    %865 = vmatmul.mubr.f32.gmra.mrb[0].mxu0 %v796
    %v866 = vpop.f32.mrb[0].mxu0
    %v867 = vadd.f32 %v284, %v866
    %v868 = vpop.f32.mrb[0].mxu0
    %869 = vdwg.mxu0
    %v870 = vsel %vm363, %v867, -inf
    %871 = vmax.xlane.f32.xlu0 %v870
    %v872 = vpop.xlane.xlu0 %871
    %v873 = vsub.f32 %v867, %v872
    %v874 = vmul.f32 %v873, 1.442695
    %v875 = vpow.pop %v874
    %v876 = vsel %vm363, %v875, 0.0
    %877 = vadd.xlane.f32.xlu0 %v876
    %v878 = vpop.xlane.xlu0 %877
    %v879 = vrcp.pop %v878
    %v880 = vmul.f32 %v875, %v879
    %881 = vrot.lane.b32.xlu0 %v273, 80
    %v882 = vpop.permute.xlu0 %881
    %v885 = vsel %vm363, %v880, 0
    %887 = vmatprep.subr.mxu0 0.0
    %888 = vmatpush1.msra.mxu0 %v882
    %889 = vmatprep.subr.mxu0 0.0
    %890 = vmatpush1.msra.mxu0 0.0
    %891 = vmatprep.subr.mxu0 0.0
    %892 = vmatpush1.msra.mxu0 0.0
    %893 = vmatprep.subr.mxu0 0.0
    %894 = vmatpush1.msra.mxu0 0.0
    %895 = vmatprep.subr.mxu0 0.0
    %896 = vmatpush1.msra.mxu0 0.0
    %897 = vmatprep.subr.mxu0 0.0
    %898 = vmatpush1.msra.mxu0 0.0
    %899 = vmatprep.subr.mxu0 0.0
    %900 = vmatpush1.msra.mxu0 0.0
    %901 = vmatprep.subr.mxu0 0.0
    %902 = vmatpush1.msra.mxu0 0.0
    %903 = vmatprep.subr.mxu0 0.0
    %904 = vmatpush1.msra.mxu0 0.0
    %905 = vmatprep.subr.mxu0 0.0
    %906 = vmatpush1.msra.mxu0 0.0
    %907 = vmatprep.subr.mxu0 0.0
    %908 = vmatpush1.msra.mxu0 0.0
    %909 = vmatprep.subr.mxu0 0.0
    %910 = vmatpush1.msra.mxu0 0.0
    %911 = vmatprep.subr.mxu0 0.0
    %912 = vmatpush1.msra.mxu0 0.0
    %913 = vmatprep.subr.mxu0 0.0
    %914 = vmatpush1.msra.mxu0 0.0
    %915 = vmatprep.subr.mxu0 0.0
    %916 = vmatpush1.msra.mxu0 0.0
    %917 = vmatprep.subr.mxu0 0.0
    %918 = vmatpush1.msra.mxu0 0.0
    %919 = vmatprep.subr.mxu0 0.0
    %920 = vmatpush1.msra.mxu0 0.0
    %921 = vmatprep.subr.mxu0 0.0
    %922 = vmatpush1.msra.mxu0 0.0
    %923 = vmatprep.subr.mxu0 0.0
    %924 = vmatpush1.msra.mxu0 0.0
    %925 = vmatprep.subr.mxu0 0.0
    %926 = vmatpush1.msra.mxu0 0.0
    %927 = vmatprep.subr.mxu0 0.0
    %928 = vmatpush1.msra.mxu0 0.0
    %929 = vmatprep.subr.mxu0 0.0
    %930 = vmatpush1.msra.mxu0 0.0
    %931 = vmatprep.subr.mxu0 0.0
    %932 = vmatpush1.msra.mxu0 0.0
    %933 = vmatprep.subr.mxu0 0.0
    %934 = vmatpush1.msra.mxu0 0.0
    %935 = vmatprep.subr.mxu0 0.0
    %936 = vmatpush1.msra.mxu0 0.0
    %937 = vmatprep.subr.mxu0 0.0
    %938 = vmatpush1.msra.mxu0 0.0
    %939 = vmatprep.subr.mxu0 0.0
    %940 = vmatpush1.msra.mxu0 0.0
    %941 = vmatprep.subr.mxu0 0.0
    %942 = vmatpush1.msra.mxu0 0.0
    %943 = vmatprep.subr.mxu0 0.0
    %944 = vmatpush1.msra.mxu0 0.0
    %945 = vmatprep.subr.mxu0 0.0
    %946 = vmatpush1.msra.mxu0 0.0
    %947 = vmatprep.subr.mxu0 0.0
    %948 = vmatpush1.msra.mxu0 0.0
    %949 = vmatprep.subr.mxu0 0.0
    %950 = vmatpush1.msra.mxu0 0.0
    %951 = vmatprep.mubr.f32.mxu0 0.0
    %952 = vmatmul.mubr.f32.gmra.mrb[0].mxu0 %v885
    %v953 = vpop.f32.mrb[0].mxu0
    %v954 = vadd.f32 0.0, %v953
    %v955 = vpop.f32.mrb[0].mxu0
    %956 = vdwg.mxu0
    %958 = vrot.lane.b32.xlu0 %v954, 48
    %v959 = vpop.permute.xlu0 %958
    %vm961 = vcmask 523648
    %962 = vst.msk [vmem:[#allocation2] sm:$0xff] %vm961, %v959
    %v963 = vlaneseq
    %v964 = vshrl.u32 %v963, 7
    %v965 = vsub.s32 1, %v964
    %v966 = vrot.slane %v121, %v965
    %968 = vrot.lane.b32.xlu0 %v277, 64
    %v969 = vpop.permute.xlu0 %968
    %v970 = vsel %vm288, %v277, 0
    %v972 = vsel %vm288, %v969, 0
    %974 = vmatprep.subr.mxu0 0.0
    %975 = vmatpush1.xpose.msra.mxu0 %v972
    %976 = vmatprep.subr.mxu0 0.0
    %977 = vmatpush1.xpose.msra.mxu0 0.0
    %978 = vmatprep.subr.mxu0 0.0
    %979 = vmatpush1.xpose.msra.mxu0 0.0
    %980 = vmatprep.subr.mxu0 0.0
    %981 = vmatpush1.xpose.msra.mxu0 0.0
    %982 = vmatprep.subr.mxu0 0.0
    %983 = vmatpush1.xpose.msra.mxu0 0.0
    %984 = vmatprep.subr.mxu0 0.0
    %985 = vmatpush1.xpose.msra.mxu0 0.0
    %986 = vmatprep.subr.mxu0 0.0
    %987 = vmatpush1.xpose.msra.mxu0 0.0
    %988 = vmatprep.subr.mxu0 0.0
    %989 = vmatpush1.xpose.msra.mxu0 0.0
    %990 = vmatprep.subr.mxu0 0.0
    %991 = vmatpush1.xpose.msra.mxu0 0.0
    %992 = vmatprep.subr.mxu0 0.0
    %993 = vmatpush1.xpose.msra.mxu0 0.0
    %994 = vmatprep.subr.mxu0 0.0
    %995 = vmatpush1.xpose.msra.mxu0 0.0
    %996 = vmatprep.subr.mxu0 0.0
    %997 = vmatpush1.xpose.msra.mxu0 0.0
    %998 = vmatprep.subr.mxu0 0.0
    %999 = vmatpush1.xpose.msra.mxu0 0.0
    %1000 = vmatprep.subr.mxu0 0.0
    %1001 = vmatpush1.xpose.msra.mxu0 0.0
    %1002 = vmatprep.subr.mxu0 0.0
    %1003 = vmatpush1.xpose.msra.mxu0 0.0
    %1004 = vmatprep.subr.mxu0 0.0
    %1005 = vmatpush1.xpose.msra.mxu0 0.0
    %1006 = vmatprep.subr.mxu0 0.0
    %1007 = vmatpush1.xpose.msra.mxu0 0.0
    %1008 = vmatprep.subr.mxu0 0.0
    %1009 = vmatpush1.xpose.msra.mxu0 0.0
    %1010 = vmatprep.subr.mxu0 0.0
    %1011 = vmatpush1.xpose.msra.mxu0 0.0
    %1012 = vmatprep.subr.mxu0 0.0
    %1013 = vmatpush1.xpose.msra.mxu0 0.0
    %1014 = vmatprep.subr.mxu0 0.0
    %1015 = vmatpush1.xpose.msra.mxu0 0.0
    %1016 = vmatprep.subr.mxu0 0.0
    %1017 = vmatpush1.xpose.msra.mxu0 0.0
    %1018 = vmatprep.subr.mxu0 0.0
    %1019 = vmatpush1.xpose.msra.mxu0 0.0
    %1020 = vmatprep.subr.mxu0 0.0
    %1021 = vmatpush1.xpose.msra.mxu0 0.0
    %1022 = vmatprep.subr.mxu0 0.0
    %1023 = vmatpush1.xpose.msra.mxu0 0.0
    %1024 = vmatprep.subr.mxu0 0.0
    %1025 = vmatpush1.xpose.msra.mxu0 0.0
    %1026 = vmatprep.subr.mxu0 0.0
    %1027 = vmatpush1.xpose.msra.mxu0 0.0
    %1028 = vmatprep.subr.mxu0 0.0
    %1029 = vmatpush1.xpose.msra.mxu0 0.0
    %1030 = vmatprep.subr.mxu0 0.0
    %1031 = vmatpush1.xpose.msra.mxu0 0.0
    %1032 = vmatprep.subr.mxu0 0.0
    %1033 = vmatpush1.xpose.msra.mxu0 0.0
    %1034 = vmatprep.subr.mxu0 0.0
    %1035 = vmatpush1.xpose.msra.mxu0 0.0
    %1036 = vmatprep.subr.mxu0 0.0
    %1037 = vmatpush1.xpose.msra.mxu0 0.0
    %1038 = vmatprep.mubr.f32.mxu0 0.0
    %1039 = vmatmul.mubr.f32.gmra.mrb[0].mxu0 %v970
    %v1040 = vpop.f32.mrb[0].mxu0
    %v1041 = vadd.f32 %v966, %v1040
    %v1042 = vpop.f32.mrb[0].mxu0
    %1043 = vdwg.mxu0
    %v1044 = vsel %vm363, %v1041, -inf
    %1045 = vmax.xlane.f32.xlu0 %v1044
    %v1046 = vpop.xlane.xlu0 %1045
    %v1047 = vsub.f32 %v1041, %v1046
    %v1048 = vmul.f32 %v1047, 1.442695
    %v1049 = vpow.pop %v1048
    %v1050 = vsel %vm363, %v1049, 0.0
    %1051 = vadd.xlane.f32.xlu0 %v1050
    %v1052 = vpop.xlane.xlu0 %1051
    %v1053 = vrcp.pop %v1052
    %v1054 = vmul.f32 %v1049, %v1053
    %v1056 = vsel %vm363, %v1054, 0
    %1058 = vmatprep.subr.mxu0 0.0
    %1059 = vmatpush1.msra.mxu0 %v279
    %1060 = vmatprep.subr.mxu0 0.0
    %1061 = vmatpush1.msra.mxu0 0.0
    %1062 = vmatprep.subr.mxu0 0.0
    %1063 = vmatpush1.msra.mxu0 0.0
    %1064 = vmatprep.subr.mxu0 0.0
    %1065 = vmatpush1.msra.mxu0 0.0
    %1066 = vmatprep.subr.mxu0 0.0
    %1067 = vmatpush1.msra.mxu0 0.0
    %1068 = vmatprep.subr.mxu0 0.0
    %1069 = vmatpush1.msra.mxu0 0.0
    %1070 = vmatprep.subr.mxu0 0.0
    %1071 = vmatpush1.msra.mxu0 0.0
    %1072 = vmatprep.subr.mxu0 0.0
    %1073 = vmatpush1.msra.mxu0 0.0
    %1074 = vmatprep.subr.mxu0 0.0
    %1075 = vmatpush1.msra.mxu0 0.0
    %1076 = vmatprep.subr.mxu0 0.0
    %1077 = vmatpush1.msra.mxu0 0.0
    %1078 = vmatprep.subr.mxu0 0.0
    %1079 = vmatpush1.msra.mxu0 0.0
    %1080 = vmatprep.subr.mxu0 0.0
    %1081 = vmatpush1.msra.mxu0 0.0
    %1082 = vmatprep.subr.mxu0 0.0
    %1083 = vmatpush1.msra.mxu0 0.0
    %1084 = vmatprep.subr.mxu0 0.0
    %1085 = vmatpush1.msra.mxu0 0.0
    %1086 = vmatprep.subr.mxu0 0.0
    %1087 = vmatpush1.msra.mxu0 0.0
    %1088 = vmatprep.subr.mxu0 0.0
    %1089 = vmatpush1.msra.mxu0 0.0
    %1090 = vmatprep.subr.mxu0 0.0
    %1091 = vmatpush1.msra.mxu0 0.0
    %1092 = vmatprep.subr.mxu0 0.0
    %1093 = vmatpush1.msra.mxu0 0.0
    %1094 = vmatprep.subr.mxu0 0.0
    %1095 = vmatpush1.msra.mxu0 0.0
    %1096 = vmatprep.subr.mxu0 0.0
    %1097 = vmatpush1.msra.mxu0 0.0
    %1098 = vmatprep.subr.mxu0 0.0
    %1099 = vmatpush1.msra.mxu0 0.0
    %1100 = vmatprep.subr.mxu0 0.0
    %1101 = vmatpush1.msra.mxu0 0.0
    %1102 = vmatprep.subr.mxu0 0.0
    %1103 = vmatpush1.msra.mxu0 0.0
    %1104 = vmatprep.subr.mxu0 0.0
    %1105 = vmatpush1.msra.mxu0 0.0
    %1106 = vmatprep.subr.mxu0 0.0
    %1107 = vmatpush1.msra.mxu0 0.0
    %1108 = vmatprep.subr.mxu0 0.0
    %1109 = vmatpush1.msra.mxu0 0.0
    %1110 = vmatprep.subr.mxu0 0.0
    %1111 = vmatpush1.msra.mxu0 0.0
    %1112 = vmatprep.subr.mxu0 0.0
    %1113 = vmatpush1.msra.mxu0 0.0
    %1114 = vmatprep.subr.mxu0 0.0
    %1115 = vmatpush1.msra.mxu0 0.0
    %1116 = vmatprep.subr.mxu0 0.0
    %1117 = vmatpush1.msra.mxu0 0.0
    %1118 = vmatprep.subr.mxu0 0.0
    %1119 = vmatpush1.msra.mxu0 0.0
    %1120 = vmatprep.subr.mxu0 0.0
    %1121 = vmatpush1.msra.mxu0 0.0
    %1122 = vmatprep.mubr.f32.mxu0 0.0
    %1123 = vmatmul.mubr.f32.gmra.mrb[0].mxu0 %v1056
    %v1124 = vpop.f32.mrb[0].mxu0
    %v1125 = vadd.f32 0.0, %v1124
    %v1126 = vpop.f32.mrb[0].mxu0
    %1127 = vdwg.mxu0
    %1128 = vst.msk [vmem:[#allocation2 + $0x8] sm:$0xff] %vm288, %v1125
    %1129 = vrot.lane.b32.xlu0 %v277, 112
    %v1130 = vpop.permute.xlu0 %1129
    %1131 = vrot.lane.b32.xlu0 %v277, 48
    %v1132 = vpop.permute.xlu0 %1131
    %v1133 = vsel %vm288, %v1130, 0
    %v1135 = vsel %vm288, %v1132, 0
    %1137 = vmatprep.subr.mxu0 0.0
    %1138 = vmatpush1.xpose.msra.mxu0 %v1135
    %1139 = vmatprep.subr.mxu0 0.0
    %1140 = vmatpush1.xpose.msra.mxu0 0.0
    %1141 = vmatprep.subr.mxu0 0.0
    %1142 = vmatpush1.xpose.msra.mxu0 0.0
    %1143 = vmatprep.subr.mxu0 0.0
    %1144 = vmatpush1.xpose.msra.mxu0 0.0
    %1145 = vmatprep.subr.mxu0 0.0
    %1146 = vmatpush1.xpose.msra.mxu0 0.0
    %1147 = vmatprep.subr.mxu0 0.0
    %1148 = vmatpush1.xpose.msra.mxu0 0.0
    %1149 = vmatprep.subr.mxu0 0.0
    %1150 = vmatpush1.xpose.msra.mxu0 0.0
    %1151 = vmatprep.subr.mxu0 0.0
    %1152 = vmatpush1.xpose.msra.mxu0 0.0
    %1153 = vmatprep.subr.mxu0 0.0
    %1154 = vmatpush1.xpose.msra.mxu0 0.0
    %1155 = vmatprep.subr.mxu0 0.0
    %1156 = vmatpush1.xpose.msra.mxu0 0.0
    %1157 = vmatprep.subr.mxu0 0.0
    %1158 = vmatpush1.xpose.msra.mxu0 0.0
    %1159 = vmatprep.subr.mxu0 0.0
    %1160 = vmatpush1.xpose.msra.mxu0 0.0
    %1161 = vmatprep.subr.mxu0 0.0
    %1162 = vmatpush1.xpose.msra.mxu0 0.0
    %1163 = vmatprep.subr.mxu0 0.0
    %1164 = vmatpush1.xpose.msra.mxu0 0.0
    %1165 = vmatprep.subr.mxu0 0.0
    %1166 = vmatpush1.xpose.msra.mxu0 0.0
    %1167 = vmatprep.subr.mxu0 0.0
    %1168 = vmatpush1.xpose.msra.mxu0 0.0
    %1169 = vmatprep.subr.mxu0 0.0
    %1170 = vmatpush1.xpose.msra.mxu0 0.0
    %1171 = vmatprep.subr.mxu0 0.0
    %1172 = vmatpush1.xpose.msra.mxu0 0.0
    %1173 = vmatprep.subr.mxu0 0.0
    %1174 = vmatpush1.xpose.msra.mxu0 0.0
    %1175 = vmatprep.subr.mxu0 0.0
    %1176 = vmatpush1.xpose.msra.mxu0 0.0
    %1177 = vmatprep.subr.mxu0 0.0
    %1178 = vmatpush1.xpose.msra.mxu0 0.0
    %1179 = vmatprep.subr.mxu0 0.0
    %1180 = vmatpush1.xpose.msra.mxu0 0.0
    %1181 = vmatprep.subr.mxu0 0.0
    %1182 = vmatpush1.xpose.msra.mxu0 0.0
    %1183 = vmatprep.subr.mxu0 0.0
    %1184 = vmatpush1.xpose.msra.mxu0 0.0
    %1185 = vmatprep.subr.mxu0 0.0
    %1186 = vmatpush1.xpose.msra.mxu0 0.0
    %1187 = vmatprep.subr.mxu0 0.0
    %1188 = vmatpush1.xpose.msra.mxu0 0.0
    %1189 = vmatprep.subr.mxu0 0.0
    %1190 = vmatpush1.xpose.msra.mxu0 0.0
    %1191 = vmatprep.subr.mxu0 0.0
    %1192 = vmatpush1.xpose.msra.mxu0 0.0
    %1193 = vmatprep.subr.mxu0 0.0
    %1194 = vmatpush1.xpose.msra.mxu0 0.0
    %1195 = vmatprep.subr.mxu0 0.0
    %1196 = vmatpush1.xpose.msra.mxu0 0.0
    %1197 = vmatprep.subr.mxu0 0.0
    %1198 = vmatpush1.xpose.msra.mxu0 0.0
    %1199 = vmatprep.subr.mxu0 0.0
    %1200 = vmatpush1.xpose.msra.mxu0 0.0
    %1201 = vmatprep.mubr.f32.mxu0 0.0
    %1202 = vmatmul.mubr.f32.gmra.mrb[0].mxu0 %v1133
    %v1203 = vpop.f32.mrb[0].mxu0
    %v1204 = vadd.f32 %v966, %v1203
    %v1205 = vpop.f32.mrb[0].mxu0
    %1206 = vdwg.mxu0
    %v1207 = vsel %vm363, %v1204, -inf
    %1208 = vmax.xlane.f32.xlu0 %v1207
    %v1209 = vpop.xlane.xlu0 %1208
    %v1210 = vsub.f32 %v1204, %v1209
    %v1211 = vmul.f32 %v1210, 1.442695
    %v1212 = vpow.pop %v1211
    %v1213 = vsel %vm363, %v1212, 0.0
    %1214 = vadd.xlane.f32.xlu0 %v1213
    %v1215 = vpop.xlane.xlu0 %1214
    %v1216 = vrcp.pop %v1215
    %v1217 = vmul.f32 %v1212, %v1216
    %1219 = vrot.lane.b32.xlu0 %v279, 112
    %v1220 = vpop.permute.xlu0 %1219
    %v1223 = vsel %vm363, %v1217, 0
    %1225 = vmatprep.subr.mxu0 0.0
    %1226 = vmatpush1.msra.mxu0 %v1220
    %1227 = vmatprep.subr.mxu0 0.0
    %1228 = vmatpush1.msra.mxu0 0.0
    %1229 = vmatprep.subr.mxu0 0.0
    %1230 = vmatpush1.msra.mxu0 0.0
    %1231 = vmatprep.subr.mxu0 0.0
    %1232 = vmatpush1.msra.mxu0 0.0
    %1233 = vmatprep.subr.mxu0 0.0
    %1234 = vmatpush1.msra.mxu0 0.0
    %1235 = vmatprep.subr.mxu0 0.0
    %1236 = vmatpush1.msra.mxu0 0.0
    %1237 = vmatprep.subr.mxu0 0.0
    %1238 = vmatpush1.msra.mxu0 0.0
    %1239 = vmatprep.subr.mxu0 0.0
    %1240 = vmatpush1.msra.mxu0 0.0
    %1241 = vmatprep.subr.mxu0 0.0
    %1242 = vmatpush1.msra.mxu0 0.0
    %1243 = vmatprep.subr.mxu0 0.0
    %1244 = vmatpush1.msra.mxu0 0.0
    %1245 = vmatprep.subr.mxu0 0.0
    %1246 = vmatpush1.msra.mxu0 0.0
    %1247 = vmatprep.subr.mxu0 0.0
    %1248 = vmatpush1.msra.mxu0 0.0
    %1249 = vmatprep.subr.mxu0 0.0
    %1250 = vmatpush1.msra.mxu0 0.0
    %1251 = vmatprep.subr.mxu0 0.0
    %1252 = vmatpush1.msra.mxu0 0.0
    %1253 = vmatprep.subr.mxu0 0.0
    %1254 = vmatpush1.msra.mxu0 0.0
    %1255 = vmatprep.subr.mxu0 0.0
    %1256 = vmatpush1.msra.mxu0 0.0
    %1257 = vmatprep.subr.mxu0 0.0
    %1258 = vmatpush1.msra.mxu0 0.0
    %1259 = vmatprep.subr.mxu0 0.0
    %1260 = vmatpush1.msra.mxu0 0.0
    %1261 = vmatprep.subr.mxu0 0.0
    %1262 = vmatpush1.msra.mxu0 0.0
    %1263 = vmatprep.subr.mxu0 0.0
    %1264 = vmatpush1.msra.mxu0 0.0
    %1265 = vmatprep.subr.mxu0 0.0
    %1266 = vmatpush1.msra.mxu0 0.0
    %1267 = vmatprep.subr.mxu0 0.0
    %1268 = vmatpush1.msra.mxu0 0.0
    %1269 = vmatprep.subr.mxu0 0.0
    %1270 = vmatpush1.msra.mxu0 0.0
    %1271 = vmatprep.subr.mxu0 0.0
    %1272 = vmatpush1.msra.mxu0 0.0
    %1273 = vmatprep.subr.mxu0 0.0
    %1274 = vmatpush1.msra.mxu0 0.0
    %1275 = vmatprep.subr.mxu0 0.0
    %1276 = vmatpush1.msra.mxu0 0.0
    %1277 = vmatprep.subr.mxu0 0.0
    %1278 = vmatpush1.msra.mxu0 0.0
    %1279 = vmatprep.subr.mxu0 0.0
    %1280 = vmatpush1.msra.mxu0 0.0
    %1281 = vmatprep.subr.mxu0 0.0
    %1282 = vmatpush1.msra.mxu0 0.0
    %1283 = vmatprep.subr.mxu0 0.0
    %1284 = vmatpush1.msra.mxu0 0.0
    %1285 = vmatprep.subr.mxu0 0.0
    %1286 = vmatpush1.msra.mxu0 0.0
    %1287 = vmatprep.subr.mxu0 0.0
    %1288 = vmatpush1.msra.mxu0 0.0
    %1289 = vmatprep.mubr.f32.mxu0 0.0
    %1290 = vmatmul.mubr.f32.gmra.mrb[0].mxu0 %v1223
    %v1291 = vpop.f32.mrb[0].mxu0
    %v1292 = vadd.f32 0.0, %v1291
    %v1293 = vpop.f32.mrb[0].mxu0
    %1294 = vdwg.mxu0
    %1296 = vrot.lane.b32.xlu0 %v1292, 16
    %v1297 = vpop.permute.xlu0 %1296
    %1299 = vst.msk [vmem:[#allocation2 + $0x8] sm:$0xff] %vm619, %v1297
    %1300 = vrot.lane.b32.xlu0 %v277, 96
    %v1301 = vpop.permute.xlu0 %1300
    %1302 = vrot.lane.b32.xlu0 %v277, 32
    %v1303 = vpop.permute.xlu0 %1302
    %v1304 = vsel %vm288, %v1301, 0
    %v1306 = vsel %vm288, %v1303, 0
    %1308 = vmatprep.subr.mxu0 0.0
    %1309 = vmatpush1.xpose.msra.mxu0 %v1306
    %1310 = vmatprep.subr.mxu0 0.0
    %1311 = vmatpush1.xpose.msra.mxu0 0.0
    %1312 = vmatprep.subr.mxu0 0.0
    %1313 = vmatpush1.xpose.msra.mxu0 0.0
    %1314 = vmatprep.subr.mxu0 0.0
    %1315 = vmatpush1.xpose.msra.mxu0 0.0
    %1316 = vmatprep.subr.mxu0 0.0
    %1317 = vmatpush1.xpose.msra.mxu0 0.0
    %1318 = vmatprep.subr.mxu0 0.0
    %1319 = vmatpush1.xpose.msra.mxu0 0.0
    %1320 = vmatprep.subr.mxu0 0.0
    %1321 = vmatpush1.xpose.msra.mxu0 0.0
    %1322 = vmatprep.subr.mxu0 0.0
    %1323 = vmatpush1.xpose.msra.mxu0 0.0
    %1324 = vmatprep.subr.mxu0 0.0
    %1325 = vmatpush1.xpose.msra.mxu0 0.0
    %1326 = vmatprep.subr.mxu0 0.0
    %1327 = vmatpush1.xpose.msra.mxu0 0.0
    %1328 = vmatprep.subr.mxu0 0.0
    %1329 = vmatpush1.xpose.msra.mxu0 0.0
    %1330 = vmatprep.subr.mxu0 0.0
    %1331 = vmatpush1.xpose.msra.mxu0 0.0
    %1332 = vmatprep.subr.mxu0 0.0
    %1333 = vmatpush1.xpose.msra.mxu0 0.0
    %1334 = vmatprep.subr.mxu0 0.0
    %1335 = vmatpush1.xpose.msra.mxu0 0.0
    %1336 = vmatprep.subr.mxu0 0.0
    %1337 = vmatpush1.xpose.msra.mxu0 0.0
    %1338 = vmatprep.subr.mxu0 0.0
    %1339 = vmatpush1.xpose.msra.mxu0 0.0
    %1340 = vmatprep.subr.mxu0 0.0
    %1341 = vmatpush1.xpose.msra.mxu0 0.0
    %1342 = vmatprep.subr.mxu0 0.0
    %1343 = vmatpush1.xpose.msra.mxu0 0.0
    %1344 = vmatprep.subr.mxu0 0.0
    %1345 = vmatpush1.xpose.msra.mxu0 0.0
    %1346 = vmatprep.subr.mxu0 0.0
    %1347 = vmatpush1.xpose.msra.mxu0 0.0
    %1348 = vmatprep.subr.mxu0 0.0
    %1349 = vmatpush1.xpose.msra.mxu0 0.0
    %1350 = vmatprep.subr.mxu0 0.0
    %1351 = vmatpush1.xpose.msra.mxu0 0.0
    %1352 = vmatprep.subr.mxu0 0.0
    %1353 = vmatpush1.xpose.msra.mxu0 0.0
    %1354 = vmatprep.subr.mxu0 0.0
    %1355 = vmatpush1.xpose.msra.mxu0 0.0
    %1356 = vmatprep.subr.mxu0 0.0
    %1357 = vmatpush1.xpose.msra.mxu0 0.0
    %1358 = vmatprep.subr.mxu0 0.0
    %1359 = vmatpush1.xpose.msra.mxu0 0.0
    %1360 = vmatprep.subr.mxu0 0.0
    %1361 = vmatpush1.xpose.msra.mxu0 0.0
    %1362 = vmatprep.subr.mxu0 0.0
    %1363 = vmatpush1.xpose.msra.mxu0 0.0
    %1364 = vmatprep.subr.mxu0 0.0
    %1365 = vmatpush1.xpose.msra.mxu0 0.0
    %1366 = vmatprep.subr.mxu0 0.0
    %1367 = vmatpush1.xpose.msra.mxu0 0.0
    %1368 = vmatprep.subr.mxu0 0.0
    %1369 = vmatpush1.xpose.msra.mxu0 0.0
    %1370 = vmatprep.subr.mxu0 0.0
    %1371 = vmatpush1.xpose.msra.mxu0 0.0
    %1372 = vmatprep.mubr.f32.mxu0 0.0
    %1373 = vmatmul.mubr.f32.gmra.mrb[0].mxu0 %v1304
    %v1374 = vpop.f32.mrb[0].mxu0
    %v1375 = vadd.f32 %v966, %v1374
    %v1376 = vpop.f32.mrb[0].mxu0
    %1377 = vdwg.mxu0
    %v1378 = vsel %vm363, %v1375, -inf
    %1379 = vmax.xlane.f32.xlu0 %v1378
    %v1380 = vpop.xlane.xlu0 %1379
    %v1381 = vsub.f32 %v1375, %v1380
    %v1382 = vmul.f32 %v1381, 1.442695
    %v1383 = vpow.pop %v1382
    %v1384 = vsel %vm363, %v1383, 0.0
    %1385 = vadd.xlane.f32.xlu0 %v1384
    %v1386 = vpop.xlane.xlu0 %1385
    %v1387 = vrcp.pop %v1386
    %v1388 = vmul.f32 %v1383, %v1387
    %1389 = vrot.lane.b32.xlu0 %v279, 96
    %v1390 = vpop.permute.xlu0 %1389
    %v1393 = vsel %vm363, %v1388, 0
    %1395 = vmatprep.subr.mxu0 0.0
    %1396 = vmatpush1.msra.mxu0 %v1390
    %1397 = vmatprep.subr.mxu0 0.0
    %1398 = vmatpush1.msra.mxu0 0.0
    %1399 = vmatprep.subr.mxu0 0.0
    %1400 = vmatpush1.msra.mxu0 0.0
    %1401 = vmatprep.subr.mxu0 0.0
    %1402 = vmatpush1.msra.mxu0 0.0
    %1403 = vmatprep.subr.mxu0 0.0
    %1404 = vmatpush1.msra.mxu0 0.0
    %1405 = vmatprep.subr.mxu0 0.0
    %1406 = vmatpush1.msra.mxu0 0.0
    %1407 = vmatprep.subr.mxu0 0.0
    %1408 = vmatpush1.msra.mxu0 0.0
    %1409 = vmatprep.subr.mxu0 0.0
    %1410 = vmatpush1.msra.mxu0 0.0
    %1411 = vmatprep.subr.mxu0 0.0
    %1412 = vmatpush1.msra.mxu0 0.0
    %1413 = vmatprep.subr.mxu0 0.0
    %1414 = vmatpush1.msra.mxu0 0.0
    %1415 = vmatprep.subr.mxu0 0.0
    %1416 = vmatpush1.msra.mxu0 0.0
    %1417 = vmatprep.subr.mxu0 0.0
    %1418 = vmatpush1.msra.mxu0 0.0
    %1419 = vmatprep.subr.mxu0 0.0
    %1420 = vmatpush1.msra.mxu0 0.0
    %1421 = vmatprep.subr.mxu0 0.0
    %1422 = vmatpush1.msra.mxu0 0.0
    %1423 = vmatprep.subr.mxu0 0.0
    %1424 = vmatpush1.msra.mxu0 0.0
    %1425 = vmatprep.subr.mxu0 0.0
    %1426 = vmatpush1.msra.mxu0 0.0
    %1427 = vmatprep.subr.mxu0 0.0
    %1428 = vmatpush1.msra.mxu0 0.0
    %1429 = vmatprep.subr.mxu0 0.0
    %1430 = vmatpush1.msra.mxu0 0.0
    %1431 = vmatprep.subr.mxu0 0.0
    %1432 = vmatpush1.msra.mxu0 0.0
    %1433 = vmatprep.subr.mxu0 0.0
    %1434 = vmatpush1.msra.mxu0 0.0
    %1435 = vmatprep.subr.mxu0 0.0
    %1436 = vmatpush1.msra.mxu0 0.0
    %1437 = vmatprep.subr.mxu0 0.0
    %1438 = vmatpush1.msra.mxu0 0.0
    %1439 = vmatprep.subr.mxu0 0.0
    %1440 = vmatpush1.msra.mxu0 0.0
    %1441 = vmatprep.subr.mxu0 0.0
    %1442 = vmatpush1.msra.mxu0 0.0
    %1443 = vmatprep.subr.mxu0 0.0
    %1444 = vmatpush1.msra.mxu0 0.0
    %1445 = vmatprep.subr.mxu0 0.0
    %1446 = vmatpush1.msra.mxu0 0.0
    %1447 = vmatprep.subr.mxu0 0.0
    %1448 = vmatpush1.msra.mxu0 0.0
    %1449 = vmatprep.subr.mxu0 0.0
    %1450 = vmatpush1.msra.mxu0 0.0
    %1451 = vmatprep.subr.mxu0 0.0
    %1452 = vmatpush1.msra.mxu0 0.0
    %1453 = vmatprep.subr.mxu0 0.0
    %1454 = vmatpush1.msra.mxu0 0.0
    %1455 = vmatprep.subr.mxu0 0.0
    %1456 = vmatpush1.msra.mxu0 0.0
    %1457 = vmatprep.subr.mxu0 0.0
    %1458 = vmatpush1.msra.mxu0 0.0
    %1459 = vmatprep.mubr.f32.mxu0 0.0
    %1460 = vmatmul.mubr.f32.gmra.mrb[0].mxu0 %v1393
    %v1461 = vpop.f32.mrb[0].mxu0
    %v1462 = vadd.f32 0.0, %v1461
    %v1463 = vpop.f32.mrb[0].mxu0
    %1464 = vdwg.mxu0
    %1466 = vrot.lane.b32.xlu0 %v1462, 32
    %v1467 = vpop.permute.xlu0 %1466
    %1469 = vst.msk [vmem:[#allocation2 + $0x8] sm:$0xff] %vm790, %v1467
    %1470 = vrot.lane.b32.xlu0 %v277, 80
    %v1471 = vpop.permute.xlu0 %1470
    %1472 = vrot.lane.b32.xlu0 %v277, 16
    %v1473 = vpop.permute.xlu0 %1472
    %v1474 = vsel %vm288, %v1471, 0
    %v1476 = vsel %vm288, %v1473, 0
    %1478 = vmatprep.subr.mxu0 0.0
    %1479 = vmatpush1.xpose.msra.mxu0 %v1476
    %1480 = vmatprep.subr.mxu0 0.0
    %1481 = vmatpush1.xpose.msra.mxu0 0.0
    %1482 = vmatprep.subr.mxu0 0.0
    %1483 = vmatpush1.xpose.msra.mxu0 0.0
    %1484 = vmatprep.subr.mxu0 0.0
    %1485 = vmatpush1.xpose.msra.mxu0 0.0
    %1486 = vmatprep.subr.mxu0 0.0
    %1487 = vmatpush1.xpose.msra.mxu0 0.0
    %1488 = vmatprep.subr.mxu0 0.0
    %1489 = vmatpush1.xpose.msra.mxu0 0.0
    %1490 = vmatprep.subr.mxu0 0.0
    %1491 = vmatpush1.xpose.msra.mxu0 0.0
    %1492 = vmatprep.subr.mxu0 0.0
    %1493 = vmatpush1.xpose.msra.mxu0 0.0
    %1494 = vmatprep.subr.mxu0 0.0
    %1495 = vmatpush1.xpose.msra.mxu0 0.0
    %1496 = vmatprep.subr.mxu0 0.0
    %1497 = vmatpush1.xpose.msra.mxu0 0.0
    %1498 = vmatprep.subr.mxu0 0.0
    %1499 = vmatpush1.xpose.msra.mxu0 0.0
    %1500 = vmatprep.subr.mxu0 0.0
    %1501 = vmatpush1.xpose.msra.mxu0 0.0
    %1502 = vmatprep.subr.mxu0 0.0
    %1503 = vmatpush1.xpose.msra.mxu0 0.0
    %1504 = vmatprep.subr.mxu0 0.0
    %1505 = vmatpush1.xpose.msra.mxu0 0.0
    %1506 = vmatprep.subr.mxu0 0.0
    %1507 = vmatpush1.xpose.msra.mxu0 0.0
    %1508 = vmatprep.subr.mxu0 0.0
    %1509 = vmatpush1.xpose.msra.mxu0 0.0
    %1510 = vmatprep.subr.mxu0 0.0
    %1511 = vmatpush1.xpose.msra.mxu0 0.0
    %1512 = vmatprep.subr.mxu0 0.0
    %1513 = vmatpush1.xpose.msra.mxu0 0.0
    %1514 = vmatprep.subr.mxu0 0.0
    %1515 = vmatpush1.xpose.msra.mxu0 0.0
    %1516 = vmatprep.subr.mxu0 0.0
    %1517 = vmatpush1.xpose.msra.mxu0 0.0
    %1518 = vmatprep.subr.mxu0 0.0
    %1519 = vmatpush1.xpose.msra.mxu0 0.0
    %1520 = vmatprep.subr.mxu0 0.0
    %1521 = vmatpush1.xpose.msra.mxu0 0.0
    %1522 = vmatprep.subr.mxu0 0.0
    %1523 = vmatpush1.xpose.msra.mxu0 0.0
    %1524 = vmatprep.subr.mxu0 0.0
    %1525 = vmatpush1.xpose.msra.mxu0 0.0
    %1526 = vmatprep.subr.mxu0 0.0
    %1527 = vmatpush1.xpose.msra.mxu0 0.0
    %1528 = vmatprep.subr.mxu0 0.0
    %1529 = vmatpush1.xpose.msra.mxu0 0.0
    %1530 = vmatprep.subr.mxu0 0.0
    %1531 = vmatpush1.xpose.msra.mxu0 0.0
    %1532 = vmatprep.subr.mxu0 0.0
    %1533 = vmatpush1.xpose.msra.mxu0 0.0
    %1534 = vmatprep.subr.mxu0 0.0
    %1535 = vmatpush1.xpose.msra.mxu0 0.0
    %1536 = vmatprep.subr.mxu0 0.0
    %1537 = vmatpush1.xpose.msra.mxu0 0.0
    %1538 = vmatprep.subr.mxu0 0.0
    %1539 = vmatpush1.xpose.msra.mxu0 0.0
    %1540 = vmatprep.subr.mxu0 0.0
    %1541 = vmatpush1.xpose.msra.mxu0 0.0
    %1542 = vmatprep.mubr.f32.mxu0 0.0
    %1543 = vmatmul.mubr.f32.gmra.mrb[0].mxu0 %v1474
    %v1544 = vpop.f32.mrb[0].mxu0
    %v1545 = vadd.f32 %v966, %v1544
    %v1546 = vpop.f32.mrb[0].mxu0
    %1547 = vdwg.mxu0
    %v1548 = vsel %vm363, %v1545, -inf
    %1549 = vmax.xlane.f32.xlu0 %v1548
    %v1550 = vpop.xlane.xlu0 %1549
    %v1551 = vsub.f32 %v1545, %v1550
    %v1552 = vmul.f32 %v1551, 1.442695
    %v1553 = vpow.pop %v1552
    %v1554 = vsel %vm363, %v1553, 0.0
    %1555 = vadd.xlane.f32.xlu0 %v1554
    %v1556 = vpop.xlane.xlu0 %1555
    %v1557 = vrcp.pop %v1556
    %v1558 = vmul.f32 %v1553, %v1557
    %1559 = vrot.lane.b32.xlu0 %v279, 80
    %v1560 = vpop.permute.xlu0 %1559
    %v1563 = vsel %vm363, %v1558, 0
    %1565 = vmatprep.subr.mxu0 0.0
    %1566 = vmatpush1.msra.mxu0 %v1560
    %1567 = vmatprep.subr.mxu0 0.0
    %1568 = vmatpush1.msra.mxu0 0.0
    %1569 = vmatprep.subr.mxu0 0.0
    %1570 = vmatpush1.msra.mxu0 0.0
    %1571 = vmatprep.subr.mxu0 0.0
    %1572 = vmatpush1.msra.mxu0 0.0
    %1573 = vmatprep.subr.mxu0 0.0
    %1574 = vmatpush1.msra.mxu0 0.0
    %1575 = vmatprep.subr.mxu0 0.0
    %1576 = vmatpush1.msra.mxu0 0.0
    %1577 = vmatprep.subr.mxu0 0.0
    %1578 = vmatpush1.msra.mxu0 0.0
    %1579 = vmatprep.subr.mxu0 0.0
    %1580 = vmatpush1.msra.mxu0 0.0
    %1581 = vmatprep.subr.mxu0 0.0
    %1582 = vmatpush1.msra.mxu0 0.0
    %1583 = vmatprep.subr.mxu0 0.0
    %1584 = vmatpush1.msra.mxu0 0.0
    %1585 = vmatprep.subr.mxu0 0.0
    %1586 = vmatpush1.msra.mxu0 0.0
    %1587 = vmatprep.subr.mxu0 0.0
    %1588 = vmatpush1.msra.mxu0 0.0
    %1589 = vmatprep.subr.mxu0 0.0
    %1590 = vmatpush1.msra.mxu0 0.0
    %1591 = vmatprep.subr.mxu0 0.0
    %1592 = vmatpush1.msra.mxu0 0.0
    %1593 = vmatprep.subr.mxu0 0.0
    %1594 = vmatpush1.msra.mxu0 0.0
    %1595 = vmatprep.subr.mxu0 0.0
    %1596 = vmatpush1.msra.mxu0 0.0
    %1597 = vmatprep.subr.mxu0 0.0
    %1598 = vmatpush1.msra.mxu0 0.0
    %1599 = vmatprep.subr.mxu0 0.0
    %1600 = vmatpush1.msra.mxu0 0.0
    %1601 = vmatprep.subr.mxu0 0.0
    %1602 = vmatpush1.msra.mxu0 0.0
    %1603 = vmatprep.subr.mxu0 0.0
    %1604 = vmatpush1.msra.mxu0 0.0
    %1605 = vmatprep.subr.mxu0 0.0
    %1606 = vmatpush1.msra.mxu0 0.0
    %1607 = vmatprep.subr.mxu0 0.0
    %1608 = vmatpush1.msra.mxu0 0.0
    %1609 = vmatprep.subr.mxu0 0.0
    %1610 = vmatpush1.msra.mxu0 0.0
    %1611 = vmatprep.subr.mxu0 0.0
    %1612 = vmatpush1.msra.mxu0 0.0
    %1613 = vmatprep.subr.mxu0 0.0
    %1614 = vmatpush1.msra.mxu0 0.0
    %1615 = vmatprep.subr.mxu0 0.0
    %1616 = vmatpush1.msra.mxu0 0.0
    %1617 = vmatprep.subr.mxu0 0.0
    %1618 = vmatpush1.msra.mxu0 0.0
    %1619 = vmatprep.subr.mxu0 0.0
    %1620 = vmatpush1.msra.mxu0 0.0
    %1621 = vmatprep.subr.mxu0 0.0
    %1622 = vmatpush1.msra.mxu0 0.0
    %1623 = vmatprep.subr.mxu0 0.0
    %1624 = vmatpush1.msra.mxu0 0.0
    %1625 = vmatprep.subr.mxu0 0.0
    %1626 = vmatpush1.msra.mxu0 0.0
    %1627 = vmatprep.subr.mxu0 0.0
    %1628 = vmatpush1.msra.mxu0 0.0
    %1629 = vmatprep.mubr.f32.mxu0 0.0
    %1630 = vmatmul.mubr.f32.gmra.mrb[0].mxu0 %v1563
    %v1631 = vpop.f32.mrb[0].mxu0
    %v1632 = vadd.f32 0.0, %v1631
    %v1633 = vpop.f32.mrb[0].mxu0
    %1634 = vdwg.mxu0
    %1636 = vrot.lane.b32.xlu0 %v1632, 48
    %v1637 = vpop.permute.xlu0 %1636
    %1639 = vst.msk [vmem:[#allocation2 + $0x8] sm:$0xff] %vm961, %v1637
    %v1640 = vld [vmem:[#allocation2] sm:$0xff]
    %v1641 = vld [vmem:[#allocation2 + $0x8] sm:$0xff]
    %v1642 = vld [vmem:[%s6] sm:$0xff]
    %v1643 = vld [vmem:[%s6 + $0x8] sm:$0xff]
    %v1644 = vld [vmem:[%s6 + $0x10] sm:$0xff]
    %v1645 = vld [vmem:[%s6 + $0x18] sm:$0xff]
    %v1646 = vld [vmem:[%s6 + $0x20] sm:$0xff]
    %v1647 = vld [vmem:[%s6 + $0x28] sm:$0xff]
    %v1648 = vld [vmem:[%s6 + $0x30] sm:$0xff]
    %v1649 = vld [vmem:[%s6 + $0x38] sm:$0xff]
    %v1650 = vld [vmem:[%s7] sm:$0x1]
    %v1652 = vlaneseq
    %v1653 = vshrl.u32 %v1652, 7
    %v1654 = vsub.s32 0, %v1653
    %v1655 = vrot.slane %v1650, %v1654
    %v1658 = vsel %vm126, %v1640, 0
    %v1661 = vsel %vm126, %v1641, 0
    %1663 = vmatprep.subr.mxu0 0.0
    %1664 = vmatpush1.msra.mxu0 %v1642
    %1665 = vmatprep.subr.mxu0 0.0
    %1666 = vmatpush1.msra.mxu0 %v1643
    %1667 = vmatprep.subr.mxu0 0.0
    %1668 = vmatpush1.msra.mxu0 %v1644
    %1669 = vmatprep.subr.mxu0 0.0
    %1670 = vmatpush1.msra.mxu0 %v1645
    %1671 = vmatprep.subr.mxu0 0.0
    %1672 = vmatpush1.msra.mxu0 %v1646
    %1673 = vmatprep.subr.mxu0 0.0
    %1674 = vmatpush1.msra.mxu0 %v1647
    %1675 = vmatprep.subr.mxu0 0.0
    %1676 = vmatpush1.msra.mxu0 %v1648
    %1677 = vmatprep.subr.mxu0 0.0
    %1678 = vmatpush1.msra.mxu0 %v1649
    %1679 = vmatprep.subr.mxu0 0.0
    %1680 = vmatpush1.msra.mxu0 0.0
    %1681 = vmatprep.subr.mxu0 0.0
    %1682 = vmatpush1.msra.mxu0 0.0
    %1683 = vmatprep.subr.mxu0 0.0
    %1684 = vmatpush1.msra.mxu0 0.0
    %1685 = vmatprep.subr.mxu0 0.0
    %1686 = vmatpush1.msra.mxu0 0.0
    %1687 = vmatprep.subr.mxu0 0.0
    %1688 = vmatpush1.msra.mxu0 0.0
    %1689 = vmatprep.subr.mxu0 0.0
    %1690 = vmatpush1.msra.mxu0 0.0
    %1691 = vmatprep.subr.mxu0 0.0
    %1692 = vmatpush1.msra.mxu0 0.0
    %1693 = vmatprep.subr.mxu0 0.0
    %1694 = vmatpush1.msra.mxu0 0.0
    %1695 = vmatprep.subr.mxu0 0.0
    %1696 = vmatpush1.msra.mxu0 0.0
    %1697 = vmatprep.subr.mxu0 0.0
    %1698 = vmatpush1.msra.mxu0 0.0
    %1699 = vmatprep.subr.mxu0 0.0
    %1700 = vmatpush1.msra.mxu0 0.0
    %1701 = vmatprep.subr.mxu0 0.0
    %1702 = vmatpush1.msra.mxu0 0.0
    %1703 = vmatprep.subr.mxu0 0.0
    %1704 = vmatpush1.msra.mxu0 0.0
    %1705 = vmatprep.subr.mxu0 0.0
    %1706 = vmatpush1.msra.mxu0 0.0
    %1707 = vmatprep.subr.mxu0 0.0
    %1708 = vmatpush1.msra.mxu0 0.0
    %1709 = vmatprep.subr.mxu0 0.0
    %1710 = vmatpush1.msra.mxu0 0.0
    %1711 = vmatprep.subr.mxu0 0.0
    %1712 = vmatpush1.msra.mxu0 0.0
    %1713 = vmatprep.subr.mxu0 0.0
    %1714 = vmatpush1.msra.mxu0 0.0
    %1715 = vmatprep.subr.mxu0 0.0
    %1716 = vmatpush1.msra.mxu0 0.0
    %1717 = vmatprep.subr.mxu0 0.0
    %1718 = vmatpush1.msra.mxu0 0.0
    %1719 = vmatprep.subr.mxu0 0.0
    %1720 = vmatpush1.msra.mxu0 0.0
    %1721 = vmatprep.subr.mxu0 0.0
    %1722 = vmatpush1.msra.mxu0 0.0
    %1723 = vmatprep.subr.mxu0 0.0
    %1724 = vmatpush1.msra.mxu0 0.0
    %1725 = vmatprep.subr.mxu0 0.0
    %1726 = vmatpush1.msra.mxu0 0.0
    %1727 = vmatprep.mubr.f32.mxu0 0.0
    %1728 = vmatmul.mubr.f32.gmra.mrb[0].mxu0 %v1658
    %v1729 = vpop.f32.mrb[0].mxu0
    %v1730 = vadd.f32 %v1655, %v1729
    %v1731 = vpop.f32.mrb[0].mxu0
    %1732 = vmatprep.mubr.f32.mxu0 0.0
    %1733 = vmatmul.mubr.f32.gmra.mrb[0].mxu0 %v1661
    %v1734 = vpop.f32.mrb[0].mxu0
    %v1735 = vadd.f32 %v1655, %v1734
    %v1736 = vpop.f32.mrb[0].mxu0
    %1737 = vdwg.mxu0
    %v1738 = vadd.f32 %v1730, %v168
    %v1739 = vadd.f32 %v1735, %v169
    %v1740 = vld [vmem:[%s8] sm:$0x1]
    %v1741 = vld [vmem:[%s9] sm:$0x1]
    %v1742 = vsel %vm126, %v1738, 0.0
    %1743 = vadd.xlane.f32.xlu0 %v1742
    %v1744 = vpop.xlane.xlu0 %1743
    %v1745 = vsel %vm126, %v1739, 0.0
    %1746 = vadd.xlane.f32.xlu0 %v1745
    %v1747 = vpop.xlane.xlu0 %1746
    %v1748 = vmul.f32 %v1744, %v133
    %v1749 = vmul.f32 %v1747, %v133
    %v1750 = vsub.f32 %v1738, %v1748
    %v1751 = vsub.f32 %v1739, %v1749
    %v1752 = vmul.f32 %v1750, %v1750
    %v1753 = vmul.f32 %v1751, %v1751
    %v1754 = vsel %vm126, %v1752, 0.0
    %1755 = vadd.xlane.f32.xlu0 %v1754
    %v1756 = vpop.xlane.xlu0 %1755
    %v1757 = vsel %vm126, %v1753, 0.0
    %1758 = vadd.xlane.f32.xlu0 %v1757
    %v1759 = vpop.xlane.xlu0 %1758
    %v1760 = vmul.f32 %v1756, %v133
    %v1761 = vmul.f32 %v1759, %v133
    %v1762 = vadd.f32 %v1760, 1e-12
    %v1763 = vadd.f32 %v1761, 1e-12
    %v1764 = vrsqrt.pop %v1762
    %v1765 = vrsqrt.pop %v1763
    %v1766 = vmul.f32 %v1750, %v1764
    %v1767 = vmul.f32 %v1751, %v1765
    %v1769 = vlaneseq
    %v1770 = vshrl.u32 %v1769, 7
    %v1771 = vsub.s32 0, %v1770
    %v1772 = vrot.slane %v1740, %v1771
    %v1774 = vmul.f32 %v1766, %v1772
    %v1775 = vmul.f32 %v1767, %v1772
    %v1777 = vlaneseq
    %v1778 = vshrl.u32 %v1777, 7
    %v1779 = vsub.s32 0, %v1778
    %v1780 = vrot.slane %v1741, %v1779
    %v1782 = vadd.f32 %v1774, %v1780
    %v1783 = vadd.f32 %v1775, %v1780
    %v1784 = vld [vmem:[#allocation4] sm:$0xff]
    %v1785 = vld [vmem:[#allocation4 + $0x8] sm:$0xff]
    %v1786 = vld [vmem:[#allocation4 + $0x10] sm:$0xff]
    %v1787 = vld [vmem:[#allocation4 + $0x18] sm:$0xff]
    %v1788 = vld [vmem:[#allocation4 + $0x20] sm:$0xff]
    %v1789 = vld [vmem:[#allocation4 + $0x28] sm:$0xff]
    %v1790 = vld [vmem:[#allocation4 + $0x30] sm:$0xff]
    %v1791 = vld [vmem:[#allocation4 + $0x38] sm:$0xff]
    %v1792 = vld [vmem:[#allocation4 + $0x40] sm:$0xff]
    %v1793 = vld [vmem:[#allocation4 + $0x48] sm:$0xff]
    %v1794 = vld [vmem:[#allocation4 + $0x50] sm:$0xff]
    %v1795 = vld [vmem:[#allocation4 + $0x58] sm:$0xff]
    %v1796 = vld [vmem:[#allocation4 + $0x60] sm:$0xff]
    %v1797 = vld [vmem:[#allocation4 + $0x68] sm:$0xff]
    %v1798 = vld [vmem:[#allocation4 + $0x70] sm:$0xff]
    %v1799 = vld [vmem:[#allocation4 + $0x78] sm:$0xff]
    %v1800 = vld [vmem:[%s11] sm:$0x3]
    %v1802 = vlaneseq
    %v1803 = vshrl.u32 %v1802, 7
    %v1804 = vsub.s32 0, %v1803
    %v1805 = vrot.slane %v1800, %v1804
    %v1806 = vlaneseq
    %v1807 = vshrl.u32 %v1806, 7
    %v1808 = vsub.s32 1, %v1807
    %v1809 = vrot.slane %v1800, %v1808
    %v1813 = vsel %vm126, %v1782, 0
    %v1816 = vsel %vm126, %v1783, 0
    %1818 = vmatprep.subr.mxu0 %v1785
    %1819 = vmatpush1.msra.mxu0 %v1784
    %1820 = vmatprep.subr.mxu0 %v1787
    %1821 = vmatpush1.msra.mxu0 %v1786
    %1822 = vmatprep.subr.mxu0 %v1789
    %1823 = vmatpush1.msra.mxu0 %v1788
    %1824 = vmatprep.subr.mxu0 %v1791
    %1825 = vmatpush1.msra.mxu0 %v1790
    %1826 = vmatprep.subr.mxu0 %v1793
    %1827 = vmatpush1.msra.mxu0 %v1792
    %1828 = vmatprep.subr.mxu0 %v1795
    %1829 = vmatpush1.msra.mxu0 %v1794
    %1830 = vmatprep.subr.mxu0 %v1797
    %1831 = vmatpush1.msra.mxu0 %v1796
    %1832 = vmatprep.subr.mxu0 %v1799
    %1833 = vmatpush1.msra.mxu0 %v1798
    %1834 = vmatprep.subr.mxu0 0.0
    %1835 = vmatpush1.msra.mxu0 0.0
    %1836 = vmatprep.subr.mxu0 0.0
    %1837 = vmatpush1.msra.mxu0 0.0
    %1838 = vmatprep.subr.mxu0 0.0
    %1839 = vmatpush1.msra.mxu0 0.0
    %1840 = vmatprep.subr.mxu0 0.0
    %1841 = vmatpush1.msra.mxu0 0.0
    %1842 = vmatprep.subr.mxu0 0.0
    %1843 = vmatpush1.msra.mxu0 0.0
    %1844 = vmatprep.subr.mxu0 0.0
    %1845 = vmatpush1.msra.mxu0 0.0
    %1846 = vmatprep.subr.mxu0 0.0
    %1847 = vmatpush1.msra.mxu0 0.0
    %1848 = vmatprep.subr.mxu0 0.0
    %1849 = vmatpush1.msra.mxu0 0.0
    %1850 = vmatprep.subr.mxu0 0.0
    %1851 = vmatpush1.msra.mxu0 0.0
    %1852 = vmatprep.subr.mxu0 0.0
    %1853 = vmatpush1.msra.mxu0 0.0
    %1854 = vmatprep.subr.mxu0 0.0
    %1855 = vmatpush1.msra.mxu0 0.0
    %1856 = vmatprep.subr.mxu0 0.0
    %1857 = vmatpush1.msra.mxu0 0.0
    %1858 = vmatprep.subr.mxu0 0.0
    %1859 = vmatpush1.msra.mxu0 0.0
    %1860 = vmatprep.subr.mxu0 0.0
    %1861 = vmatpush1.msra.mxu0 0.0
    %1862 = vmatprep.subr.mxu0 0.0
    %1863 = vmatpush1.msra.mxu0 0.0
    %1864 = vmatprep.subr.mxu0 0.0
    %1865 = vmatpush1.msra.mxu0 0.0
    %1866 = vmatprep.subr.mxu0 0.0
    %1867 = vmatpush1.msra.mxu0 0.0
    %1868 = vmatprep.subr.mxu0 0.0
    %1869 = vmatpush1.msra.mxu0 0.0
    %1870 = vmatprep.subr.mxu0 0.0
    %1871 = vmatpush1.msra.mxu0 0.0
    %1872 = vmatprep.subr.mxu0 0.0
    %1873 = vmatpush1.msra.mxu0 0.0
    %1874 = vmatprep.subr.mxu0 0.0
    %1875 = vmatpush1.msra.mxu0 0.0
    %1876 = vmatprep.subr.mxu0 0.0
    %1877 = vmatpush1.msra.mxu0 0.0
    %1878 = vmatprep.subr.mxu0 0.0
    %1879 = vmatpush1.msra.mxu0 0.0
    %1880 = vmatprep.subr.mxu0 0.0
    %1881 = vmatpush1.msra.mxu0 0.0
    %1882 = vmatprep.mubr.f32.mxu0 0.0
    %1883 = vmatmul.mubr.f32.gmra.mrb[0].mxu0 %v1813
    %v1884 = vpop.f32.mrb[0].mxu0
    %v1885 = vadd.f32 %v1805, %v1884
    %v1886 = vpop.f32.mrb[0].mxu0
    %v1887 = vadd.f32 %v1809, %v1886
    %1888 = vmatprep.mubr.f32.mxu0 0.0
    %1889 = vmatmul.mubr.f32.gmra.mrb[0].mxu0 %v1816
    %v1890 = vpop.f32.mrb[0].mxu0
    %v1891 = vadd.f32 %v1805, %v1890
    %v1892 = vpop.f32.mrb[0].mxu0
    %v1893 = vadd.f32 %v1809, %v1892
    %1894 = vdwg.mxu0
    %v1895 = vmul.f32 %v1885, 0.5
    %v1896 = vmul.f32 %v1887, 0.5
    %v1897 = vmul.f32 %v1891, 0.5
    %v1898 = vmul.f32 %v1893, 0.5
    %v1899 = vmul.f32 %v1885, 0.044715
    %v1900 = vmul.f32 %v1887, 0.044715
    %v1901 = vmul.f32 %v1891, 0.044715
    %v1902 = vmul.f32 %v1893, 0.044715
    %v1903 = vmul.f32 %v1899, %v1885
    %v1904 = vmul.f32 %v1900, %v1887
    %v1905 = vmul.f32 %v1901, %v1891
    %v1906 = vmul.f32 %v1902, %v1893
    %v1907 = vmul.f32 %v1903, %v1885
    %v1908 = vmul.f32 %v1904, %v1887
    %v1909 = vmul.f32 %v1905, %v1891
    %v1910 = vmul.f32 %v1906, %v1893
    %v1911 = vadd.f32 %v1885, %v1907
    %v1912 = vadd.f32 %v1887, %v1908
    %v1913 = vadd.f32 %v1891, %v1909
    %v1914 = vadd.f32 %v1893, %v1910
    %v1915 = vmul.f32 %v1911, 0.7978846
    %v1916 = vmul.f32 %v1912, 0.7978846
    %v1917 = vmul.f32 %v1913, 0.7978846
    %v1918 = vmul.f32 %v1914, 0.7978846
    %v1919 = vtanh.pop %v1915
    %v1920 = vtanh.pop %v1916
    %v1921 = vtanh.pop %v1917
    %v1922 = vtanh.pop %v1918
    %v1923 = vadd.f32 %v1919, 1.0
    %v1924 = vadd.f32 %v1920, 1.0
    %v1925 = vadd.f32 %v1921, 1.0
    %v1926 = vadd.f32 %v1922, 1.0
    %v1927 = vmul.f32 %v1895, %v1923
    %v1928 = vmul.f32 %v1896, %v1924
    %v1929 = vmul.f32 %v1897, %v1925
    %v1930 = vmul.f32 %v1898, %v1926
    %v1931 = vld [vmem:[#allocation7] sm:$0xff]
    %v1932 = vld [vmem:[#allocation7 + $0x8] sm:$0xff]
    %v1933 = vld [vmem:[#allocation7 + $0x10] sm:$0xff]
    %v1934 = vld [vmem:[#allocation7 + $0x18] sm:$0xff]
    %v1935 = vld [vmem:[#allocation7 + $0x20] sm:$0xff]
    %v1936 = vld [vmem:[#allocation7 + $0x28] sm:$0xff]
    %v1937 = vld [vmem:[#allocation7 + $0x30] sm:$0xff]
    %v1938 = vld [vmem:[#allocation7 + $0x38] sm:$0xff]
    %v1939 = vld [vmem:[#allocation7 + $0x40] sm:$0xff]
    %v1940 = vld [vmem:[#allocation7 + $0x48] sm:$0xff]
    %v1941 = vld [vmem:[#allocation7 + $0x50] sm:$0xff]
    %v1942 = vld [vmem:[#allocation7 + $0x58] sm:$0xff]
    %v1943 = vld [vmem:[#allocation7 + $0x60] sm:$0xff]
    %v1944 = vld [vmem:[#allocation7 + $0x68] sm:$0xff]
    %v1945 = vld [vmem:[#allocation7 + $0x70] sm:$0xff]
    %v1946 = vld [vmem:[#allocation7 + $0x78] sm:$0xff]
    %v1947 = vld [vmem:[#allocation7 + $0x80] sm:$0xff]
    %v1948 = vld [vmem:[#allocation7 + $0x88] sm:$0xff]
    %v1949 = vld [vmem:[#allocation7 + $0x90] sm:$0xff]
    %v1950 = vld [vmem:[#allocation7 + $0x98] sm:$0xff]
    %v1951 = vld [vmem:[#allocation7 + $0xa0] sm:$0xff]
    %v1952 = vld [vmem:[#allocation7 + $0xa8] sm:$0xff]
    %v1953 = vld [vmem:[#allocation7 + $0xb0] sm:$0xff]
    %v1954 = vld [vmem:[#allocation7 + $0xb8] sm:$0xff]
    %v1955 = vld [vmem:[#allocation7 + $0xc0] sm:$0xff]
    %v1956 = vld [vmem:[#allocation7 + $0xc8] sm:$0xff]
    %v1957 = vld [vmem:[#allocation7 + $0xd0] sm:$0xff]
    %v1958 = vld [vmem:[#allocation7 + $0xd8] sm:$0xff]
    %v1959 = vld [vmem:[#allocation7 + $0xe0] sm:$0xff]
    %v1960 = vld [vmem:[#allocation7 + $0xe8] sm:$0xff]
    %v1961 = vld [vmem:[#allocation7 + $0xf0] sm:$0xff]
    %v1962 = vld [vmem:[#allocation7 + $0xf8] sm:$0xff]
    %v1963 = vld [vmem:[%s13] sm:$0x1]
    %v1965 = vlaneseq
    %v1966 = vshrl.u32 %v1965, 7
    %v1967 = vsub.s32 0, %v1966
    %v1968 = vrot.slane %v1963, %v1967
    %1970 = vmatprep.subr.mxu0 0.0
    %1971 = vmatpush1.msra.mxu0 %v1931
    %1972 = vmatprep.subr.mxu0 0.0
    %1973 = vmatpush1.msra.mxu0 %v1932
    %1974 = vmatprep.subr.mxu0 0.0
    %1975 = vmatpush1.msra.mxu0 %v1933
    %1976 = vmatprep.subr.mxu0 0.0
    %1977 = vmatpush1.msra.mxu0 %v1934
    %1978 = vmatprep.subr.mxu0 0.0
    %1979 = vmatpush1.msra.mxu0 %v1935
    %1980 = vmatprep.subr.mxu0 0.0
    %1981 = vmatpush1.msra.mxu0 %v1936
    %1982 = vmatprep.subr.mxu0 0.0
    %1983 = vmatpush1.msra.mxu0 %v1937
    %1984 = vmatprep.subr.mxu0 0.0
    %1985 = vmatpush1.msra.mxu0 %v1938
    %1986 = vmatprep.subr.mxu0 0.0
    %1987 = vmatpush1.msra.mxu0 %v1939
    %1988 = vmatprep.subr.mxu0 0.0
    %1989 = vmatpush1.msra.mxu0 %v1940
    %1990 = vmatprep.subr.mxu0 0.0
    %1991 = vmatpush1.msra.mxu0 %v1941
    %1992 = vmatprep.subr.mxu0 0.0
    %1993 = vmatpush1.msra.mxu0 %v1942
    %1994 = vmatprep.subr.mxu0 0.0
    %1995 = vmatpush1.msra.mxu0 %v1943
    %1996 = vmatprep.subr.mxu0 0.0
    %1997 = vmatpush1.msra.mxu0 %v1944
    %1998 = vmatprep.subr.mxu0 0.0
    %1999 = vmatpush1.msra.mxu0 %v1945
    %2000 = vmatprep.subr.mxu0 0.0
    %2001 = vmatpush1.msra.mxu0 %v1946
    %2002 = vmatprep.subr.mxu0 0.0
    %2003 = vmatpush1.msra.mxu0 %v1947
    %2004 = vmatprep.subr.mxu0 0.0
    %2005 = vmatpush1.msra.mxu0 %v1948
    %2006 = vmatprep.subr.mxu0 0.0
    %2007 = vmatpush1.msra.mxu0 %v1949
    %2008 = vmatprep.subr.mxu0 0.0
    %2009 = vmatpush1.msra.mxu0 %v1950
    %2010 = vmatprep.subr.mxu0 0.0
    %2011 = vmatpush1.msra.mxu0 %v1951
    %2012 = vmatprep.subr.mxu0 0.0
    %2013 = vmatpush1.msra.mxu0 %v1952
    %2014 = vmatprep.subr.mxu0 0.0
    %2015 = vmatpush1.msra.mxu0 %v1953
    %2016 = vmatprep.subr.mxu0 0.0
    %2017 = vmatpush1.msra.mxu0 %v1954
    %2018 = vmatprep.subr.mxu0 0.0
    %2019 = vmatpush1.msra.mxu0 %v1955
    %2020 = vmatprep.subr.mxu0 0.0
    %2021 = vmatpush1.msra.mxu0 %v1956
    %2022 = vmatprep.subr.mxu0 0.0
    %2023 = vmatpush1.msra.mxu0 %v1957
    %2024 = vmatprep.subr.mxu0 0.0
    %2025 = vmatpush1.msra.mxu0 %v1958
    %2026 = vmatprep.subr.mxu0 0.0
    %2027 = vmatpush1.msra.mxu0 %v1959
    %2028 = vmatprep.subr.mxu0 0.0
    %2029 = vmatpush1.msra.mxu0 %v1960
    %2030 = vmatprep.subr.mxu0 0.0
    %2031 = vmatpush1.msra.mxu0 %v1961
    %2032 = vmatprep.subr.mxu0 0.0
    %2033 = vmatpush1.msra.mxu0 %v1962
    %2034 = vmatprep.mubr.f32.mxu0 %v1928
    %2035 = vmatmul.mubr.f32.gmra.mrb[0].mxu0 %v1927
    %v2036 = vpop.f32.mrb[0].mxu0
    %v2037 = vadd.f32 %v1968, %v2036
    %v2038 = vpop.f32.mrb[0].mxu0
    %2039 = vmatprep.mubr.f32.mxu0 %v1930
    %2040 = vmatmul.mubr.f32.gmra.mrb[0].mxu0 %v1929
    %v2041 = vpop.f32.mrb[0].mxu0
    %v2042 = vadd.f32 %v1968, %v2041
    %v2043 = vpop.f32.mrb[0].mxu0
    %2044 = vdwg.mxu0
    %v2045 = vadd.f32 %v2037, %v1782
    %v2046 = vadd.f32 %v2042, %v1783
    %v2047 = vld [vmem:[%s14] sm:$0x1]
    %v2048 = vld [vmem:[%s15] sm:$0x1]
    %v2049 = vsel %vm126, %v2045, 0.0
    %2050 = vadd.xlane.f32.xlu0 %v2049
    %v2051 = vpop.xlane.xlu0 %2050
    %v2052 = vsel %vm126, %v2046, 0.0
    %2053 = vadd.xlane.f32.xlu0 %v2052
    %v2054 = vpop.xlane.xlu0 %2053
    %v2055 = vmul.f32 %v2051, %v133
    %v2056 = vmul.f32 %v2054, %v133
    %v2057 = vsub.f32 %v2045, %v2055
    %v2058 = vsub.f32 %v2046, %v2056
    %v2059 = vmul.f32 %v2057, %v2057
    %v2060 = vmul.f32 %v2058, %v2058
    %v2061 = vsel %vm126, %v2059, 0.0
    %2062 = vadd.xlane.f32.xlu0 %v2061
    %v2063 = vpop.xlane.xlu0 %2062
    %v2064 = vsel %vm126, %v2060, 0.0
    %2065 = vadd.xlane.f32.xlu0 %v2064
    %v2066 = vpop.xlane.xlu0 %2065
    %v2067 = vmul.f32 %v2063, %v133
    %v2068 = vmul.f32 %v2066, %v133
    %v2069 = vadd.f32 %v2067, 1e-12
    %v2070 = vadd.f32 %v2068, 1e-12
    %v2071 = vrsqrt.pop %v2069
    %v2072 = vrsqrt.pop %v2070
    %v2073 = vmul.f32 %v2057, %v2071
    %v2074 = vmul.f32 %v2058, %v2072
    %v2076 = vlaneseq
    %v2077 = vshrl.u32 %v2076, 7
    %v2078 = vsub.s32 0, %v2077
    %v2079 = vrot.slane %v2047, %v2078
    %v2081 = vmul.f32 %v2073, %v2079
    %v2082 = vmul.f32 %v2074, %v2079
    %v2084 = vlaneseq
    %v2085 = vshrl.u32 %v2084, 7
    %v2086 = vsub.s32 0, %v2085
    %v2087 = vrot.slane %v2048, %v2086
    %v2089 = vadd.f32 %v2081, %v2087
    %v2090 = vadd.f32 %v2082, %v2087
    %s2091 = scalar_lea.vmem %s4, 128
    %v2092 = vld [vmem:[%s2091] sm:$0xff]
    %v2093 = vld [vmem:[%s2091 + $0x8] sm:$0xff]
    %v2094 = vld [vmem:[%s2091 + $0x10] sm:$0xff]
    %v2095 = vld [vmem:[%s2091 + $0x18] sm:$0xff]
    %v2096 = vld [vmem:[%s2091 + $0x20] sm:$0xff]
    %v2097 = vld [vmem:[%s2091 + $0x28] sm:$0xff]
    %v2098 = vld [vmem:[%s2091 + $0x30] sm:$0xff]
    %v2099 = vld [vmem:[%s2091 + $0x38] sm:$0xff]
    %v2100 = vld [vmem:[%s2091 + $0x40] sm:$0xff]
    %v2101 = vld [vmem:[%s2091 + $0x48] sm:$0xff]
    %v2102 = vld [vmem:[%s2091 + $0x50] sm:$0xff]
    %v2103 = vld [vmem:[%s2091 + $0x58] sm:$0xff]
    %v2104 = vld [vmem:[%s2091 + $0x60] sm:$0xff]
    %v2105 = vld [vmem:[%s2091 + $0x68] sm:$0xff]
    %v2106 = vld [vmem:[%s2091 + $0x70] sm:$0xff]
    %v2107 = vld [vmem:[%s2091 + $0x78] sm:$0xff]
    %s2108 = scalar_lea.vmem %s5, 2
    %v2109 = vld [vmem:[%s2108] sm:$0x3]
    %v2111 = vlaneseq
    %v2112 = vshrl.u32 %v2111, 7
    %v2113 = vsub.s32 0, %v2112
    %v2114 = vrot.slane %v2109, %v2113
    %v2115 = vlaneseq
    %v2116 = vshrl.u32 %v2115, 7
    %v2117 = vsub.s32 1, %v2116
    %v2118 = vrot.slane %v2109, %v2117
    %v2122 = vsel %vm126, %v2089, 0
    %v2125 = vsel %vm126, %v2090, 0
    %2127 = vmatprep.subr.mxu0 %v2093
    %2128 = vmatpush1.msra.mxu0 %v2092
    %2129 = vmatprep.subr.mxu0 %v2095
    %2130 = vmatpush1.msra.mxu0 %v2094
    %2131 = vmatprep.subr.mxu0 %v2097
    %2132 = vmatpush1.msra.mxu0 %v2096
    %2133 = vmatprep.subr.mxu0 %v2099
    %2134 = vmatpush1.msra.mxu0 %v2098
    %2135 = vmatprep.subr.mxu0 %v2101
    %2136 = vmatpush1.msra.mxu0 %v2100
    %2137 = vmatprep.subr.mxu0 %v2103
    %2138 = vmatpush1.msra.mxu0 %v2102
    %2139 = vmatprep.subr.mxu0 %v2105
    %2140 = vmatpush1.msra.mxu0 %v2104
    %2141 = vmatprep.subr.mxu0 %v2107
    %2142 = vmatpush1.msra.mxu0 %v2106
    %2143 = vmatprep.subr.mxu0 0.0
    %2144 = vmatpush1.msra.mxu0 0.0
    %2145 = vmatprep.subr.mxu0 0.0
    %2146 = vmatpush1.msra.mxu0 0.0
    %2147 = vmatprep.subr.mxu0 0.0
    %2148 = vmatpush1.msra.mxu0 0.0
    %2149 = vmatprep.subr.mxu0 0.0
    %2150 = vmatpush1.msra.mxu0 0.0
    %2151 = vmatprep.subr.mxu0 0.0
    %2152 = vmatpush1.msra.mxu0 0.0
    %2153 = vmatprep.subr.mxu0 0.0
    %2154 = vmatpush1.msra.mxu0 0.0
    %2155 = vmatprep.subr.mxu0 0.0
    %2156 = vmatpush1.msra.mxu0 0.0
    %2157 = vmatprep.subr.mxu0 0.0
    %2158 = vmatpush1.msra.mxu0 0.0
    %2159 = vmatprep.subr.mxu0 0.0
    %2160 = vmatpush1.msra.mxu0 0.0
    %2161 = vmatprep.subr.mxu0 0.0
    %2162 = vmatpush1.msra.mxu0 0.0
    %2163 = vmatprep.subr.mxu0 0.0
    %2164 = vmatpush1.msra.mxu0 0.0
    %2165 = vmatprep.subr.mxu0 0.0
    %2166 = vmatpush1.msra.mxu0 0.0
    %2167 = vmatprep.subr.mxu0 0.0
    %2168 = vmatpush1.msra.mxu0 0.0
    %2169 = vmatprep.subr.mxu0 0.0
    %2170 = vmatpush1.msra.mxu0 0.0
    %2171 = vmatprep.subr.mxu0 0.0
    %2172 = vmatpush1.msra.mxu0 0.0
    %2173 = vmatprep.subr.mxu0 0.0
    %2174 = vmatpush1.msra.mxu0 0.0
    %2175 = vmatprep.subr.mxu0 0.0
    %2176 = vmatpush1.msra.mxu0 0.0
    %2177 = vmatprep.subr.mxu0 0.0
    %2178 = vmatpush1.msra.mxu0 0.0
    %2179 = vmatprep.subr.mxu0 0.0
    %2180 = vmatpush1.msra.mxu0 0.0
    %2181 = vmatprep.subr.mxu0 0.0
    %2182 = vmatpush1.msra.mxu0 0.0
    %2183 = vmatprep.subr.mxu0 0.0
    %2184 = vmatpush1.msra.mxu0 0.0
    %2185 = vmatprep.subr.mxu0 0.0
    %2186 = vmatpush1.msra.mxu0 0.0
    %2187 = vmatprep.subr.mxu0 0.0
    %2188 = vmatpush1.msra.mxu0 0.0
    %2189 = vmatprep.subr.mxu0 0.0
    %2190 = vmatpush1.msra.mxu0 0.0
    %2191 = vmatprep.mubr.f32.mxu0 0.0
    %2192 = vmatmul.mubr.f32.gmra.mrb[0].mxu0 %v2122
    %v2193 = vpop.f32.mrb[0].mxu0
    %v2194 = vadd.f32 %v2114, %v2193
    %v2195 = vpop.f32.mrb[0].mxu0
    %v2196 = vadd.f32 %v2118, %v2195
    %2197 = vmatprep.mubr.f32.mxu0 0.0
    %2198 = vmatmul.mubr.f32.gmra.mrb[0].mxu0 %v2125
    %v2199 = vpop.f32.mrb[0].mxu0
    %v2200 = vadd.f32 %v2114, %v2199
    %v2201 = vpop.f32.mrb[0].mxu0
    %v2202 = vadd.f32 %v2118, %v2201
    %2203 = vdwg.mxu0
    %2205 = vrot.lane.b32.xlu0 %v2194, 64
    %v2206 = vpop.permute.xlu0 %2205
    %v2207 = vsel %vm288, %v2194, 0
    %v2209 = vsel %vm288, %v2206, 0
    %2211 = vmatprep.subr.mxu0 0.0
    %2212 = vmatpush1.xpose.msra.mxu0 %v2209
    %2213 = vmatprep.subr.mxu0 0.0
    %2214 = vmatpush1.xpose.msra.mxu0 0.0
    %2215 = vmatprep.subr.mxu0 0.0
    %2216 = vmatpush1.xpose.msra.mxu0 0.0
    %2217 = vmatprep.subr.mxu0 0.0
    %2218 = vmatpush1.xpose.msra.mxu0 0.0
    %2219 = vmatprep.subr.mxu0 0.0
    %2220 = vmatpush1.xpose.msra.mxu0 0.0
    %2221 = vmatprep.subr.mxu0 0.0
    %2222 = vmatpush1.xpose.msra.mxu0 0.0
    %2223 = vmatprep.subr.mxu0 0.0
    %2224 = vmatpush1.xpose.msra.mxu0 0.0
    %2225 = vmatprep.subr.mxu0 0.0
    %2226 = vmatpush1.xpose.msra.mxu0 0.0
    %2227 = vmatprep.subr.mxu0 0.0
    %2228 = vmatpush1.xpose.msra.mxu0 0.0
    %2229 = vmatprep.subr.mxu0 0.0
    %2230 = vmatpush1.xpose.msra.mxu0 0.0
    %2231 = vmatprep.subr.mxu0 0.0
    %2232 = vmatpush1.xpose.msra.mxu0 0.0
    %2233 = vmatprep.subr.mxu0 0.0
    %2234 = vmatpush1.xpose.msra.mxu0 0.0
    %2235 = vmatprep.subr.mxu0 0.0
    %2236 = vmatpush1.xpose.msra.mxu0 0.0
    %2237 = vmatprep.subr.mxu0 0.0
    %2238 = vmatpush1.xpose.msra.mxu0 0.0
    %2239 = vmatprep.subr.mxu0 0.0
    %2240 = vmatpush1.xpose.msra.mxu0 0.0
    %2241 = vmatprep.subr.mxu0 0.0
    %2242 = vmatpush1.xpose.msra.mxu0 0.0
    %2243 = vmatprep.subr.mxu0 0.0
    %2244 = vmatpush1.xpose.msra.mxu0 0.0
    %2245 = vmatprep.subr.mxu0 0.0
    %2246 = vmatpush1.xpose.msra.mxu0 0.0
    %2247 = vmatprep.subr.mxu0 0.0
    %2248 = vmatpush1.xpose.msra.mxu0 0.0
    %2249 = vmatprep.subr.mxu0 0.0
    %2250 = vmatpush1.xpose.msra.mxu0 0.0
    %2251 = vmatprep.subr.mxu0 0.0
    %2252 = vmatpush1.xpose.msra.mxu0 0.0
    %2253 = vmatprep.subr.mxu0 0.0
    %2254 = vmatpush1.xpose.msra.mxu0 0.0
    %2255 = vmatprep.subr.mxu0 0.0
    %2256 = vmatpush1.xpose.msra.mxu0 0.0
    %2257 = vmatprep.subr.mxu0 0.0
    %2258 = vmatpush1.xpose.msra.mxu0 0.0
    %2259 = vmatprep.subr.mxu0 0.0
    %2260 = vmatpush1.xpose.msra.mxu0 0.0
    %2261 = vmatprep.subr.mxu0 0.0
    %2262 = vmatpush1.xpose.msra.mxu0 0.0
    %2263 = vmatprep.subr.mxu0 0.0
    %2264 = vmatpush1.xpose.msra.mxu0 0.0
    %2265 = vmatprep.subr.mxu0 0.0
    %2266 = vmatpush1.xpose.msra.mxu0 0.0
    %2267 = vmatprep.subr.mxu0 0.0
    %2268 = vmatpush1.xpose.msra.mxu0 0.0
    %2269 = vmatprep.subr.mxu0 0.0
    %2270 = vmatpush1.xpose.msra.mxu0 0.0
    %2271 = vmatprep.subr.mxu0 0.0
    %2272 = vmatpush1.xpose.msra.mxu0 0.0
    %2273 = vmatprep.subr.mxu0 0.0
    %2274 = vmatpush1.xpose.msra.mxu0 0.0
    %2275 = vmatprep.mubr.f32.mxu0 0.0
    %2276 = vmatmul.mubr.f32.gmra.mrb[0].mxu0 %v2207
    %v2277 = vpop.f32.mrb[0].mxu0
    %v2278 = vadd.f32 %v284, %v2277
    %v2279 = vpop.f32.mrb[0].mxu0
    %2280 = vdwg.mxu0
    %v2281 = vsel %vm363, %v2278, -inf
    %2282 = vmax.xlane.f32.xlu0 %v2281
    %v2283 = vpop.xlane.xlu0 %2282
    %v2284 = vsub.f32 %v2278, %v2283
    %v2285 = vmul.f32 %v2284, 1.442695
    %v2286 = vpow.pop %v2285
    %v2287 = vsel %vm363, %v2286, 0.0
    %2288 = vadd.xlane.f32.xlu0 %v2287
    %v2289 = vpop.xlane.xlu0 %2288
    %v2290 = vrcp.pop %v2289
    %v2291 = vmul.f32 %v2286, %v2290
    %v2293 = vsel %vm363, %v2291, 0
    %2295 = vmatprep.subr.mxu0 0.0
    %2296 = vmatpush1.msra.mxu0 %v2196
    %2297 = vmatprep.subr.mxu0 0.0
    %2298 = vmatpush1.msra.mxu0 0.0
    %2299 = vmatprep.subr.mxu0 0.0
    %2300 = vmatpush1.msra.mxu0 0.0
    %2301 = vmatprep.subr.mxu0 0.0
    %2302 = vmatpush1.msra.mxu0 0.0
    %2303 = vmatprep.subr.mxu0 0.0
    %2304 = vmatpush1.msra.mxu0 0.0
    %2305 = vmatprep.subr.mxu0 0.0
    %2306 = vmatpush1.msra.mxu0 0.0
    %2307 = vmatprep.subr.mxu0 0.0
    %2308 = vmatpush1.msra.mxu0 0.0
    %2309 = vmatprep.subr.mxu0 0.0
    %2310 = vmatpush1.msra.mxu0 0.0
    %2311 = vmatprep.subr.mxu0 0.0
    %2312 = vmatpush1.msra.mxu0 0.0
    %2313 = vmatprep.subr.mxu0 0.0
    %2314 = vmatpush1.msra.mxu0 0.0
    %2315 = vmatprep.subr.mxu0 0.0
    %2316 = vmatpush1.msra.mxu0 0.0
    %2317 = vmatprep.subr.mxu0 0.0
    %2318 = vmatpush1.msra.mxu0 0.0
    %2319 = vmatprep.subr.mxu0 0.0
    %2320 = vmatpush1.msra.mxu0 0.0
    %2321 = vmatprep.subr.mxu0 0.0
    %2322 = vmatpush1.msra.mxu0 0.0
    %2323 = vmatprep.subr.mxu0 0.0
    %2324 = vmatpush1.msra.mxu0 0.0
    %2325 = vmatprep.subr.mxu0 0.0
    %2326 = vmatpush1.msra.mxu0 0.0
    %2327 = vmatprep.subr.mxu0 0.0
    %2328 = vmatpush1.msra.mxu0 0.0
    %2329 = vmatprep.subr.mxu0 0.0
    %2330 = vmatpush1.msra.mxu0 0.0
    %2331 = vmatprep.subr.mxu0 0.0
    %2332 = vmatpush1.msra.mxu0 0.0
    %2333 = vmatprep.subr.mxu0 0.0
    %2334 = vmatpush1.msra.mxu0 0.0
    %2335 = vmatprep.subr.mxu0 0.0
    %2336 = vmatpush1.msra.mxu0 0.0
    %2337 = vmatprep.subr.mxu0 0.0
    %2338 = vmatpush1.msra.mxu0 0.0
    %2339 = vmatprep.subr.mxu0 0.0
    %2340 = vmatpush1.msra.mxu0 0.0
    %2341 = vmatprep.subr.mxu0 0.0
    %2342 = vmatpush1.msra.mxu0 0.0
    %2343 = vmatprep.subr.mxu0 0.0
    %2344 = vmatpush1.msra.mxu0 0.0
    %2345 = vmatprep.subr.mxu0 0.0
    %2346 = vmatpush1.msra.mxu0 0.0
    %2347 = vmatprep.subr.mxu0 0.0
    %2348 = vmatpush1.msra.mxu0 0.0
    %2349 = vmatprep.subr.mxu0 0.0
    %2350 = vmatpush1.msra.mxu0 0.0
    %2351 = vmatprep.subr.mxu0 0.0
    %2352 = vmatpush1.msra.mxu0 0.0
    %2353 = vmatprep.subr.mxu0 0.0
    %2354 = vmatpush1.msra.mxu0 0.0
    %2355 = vmatprep.subr.mxu0 0.0
    %2356 = vmatpush1.msra.mxu0 0.0
    %2357 = vmatprep.subr.mxu0 0.0
    %2358 = vmatpush1.msra.mxu0 0.0
    %2359 = vmatprep.mubr.f32.mxu0 0.0
    %2360 = vmatmul.mubr.f32.gmra.mrb[0].mxu0 %v2293
    %v2361 = vpop.f32.mrb[0].mxu0
    %v2362 = vadd.f32 0.0, %v2361
    %v2363 = vpop.f32.mrb[0].mxu0
    %2364 = vdwg.mxu0
    %2365 = vst.msk [vmem:[#allocation2] sm:$0xff] %vm288, %v2362
    %2366 = vrot.lane.b32.xlu0 %v2194, 112
    %v2367 = vpop.permute.xlu0 %2366
    %2368 = vrot.lane.b32.xlu0 %v2194, 48
    %v2369 = vpop.permute.xlu0 %2368
    %v2370 = vsel %vm288, %v2367, 0
    %v2372 = vsel %vm288, %v2369, 0
    %2374 = vmatprep.subr.mxu0 0.0
    %2375 = vmatpush1.xpose.msra.mxu0 %v2372
    %2376 = vmatprep.subr.mxu0 0.0
    %2377 = vmatpush1.xpose.msra.mxu0 0.0
    %2378 = vmatprep.subr.mxu0 0.0
    %2379 = vmatpush1.xpose.msra.mxu0 0.0
    %2380 = vmatprep.subr.mxu0 0.0
    %2381 = vmatpush1.xpose.msra.mxu0 0.0
    %2382 = vmatprep.subr.mxu0 0.0
    %2383 = vmatpush1.xpose.msra.mxu0 0.0
    %2384 = vmatprep.subr.mxu0 0.0
    %2385 = vmatpush1.xpose.msra.mxu0 0.0
    %2386 = vmatprep.subr.mxu0 0.0
    %2387 = vmatpush1.xpose.msra.mxu0 0.0
    %2388 = vmatprep.subr.mxu0 0.0
    %2389 = vmatpush1.xpose.msra.mxu0 0.0
    %2390 = vmatprep.subr.mxu0 0.0
    %2391 = vmatpush1.xpose.msra.mxu0 0.0
    %2392 = vmatprep.subr.mxu0 0.0
    %2393 = vmatpush1.xpose.msra.mxu0 0.0
    %2394 = vmatprep.subr.mxu0 0.0
    %2395 = vmatpush1.xpose.msra.mxu0 0.0
    %2396 = vmatprep.subr.mxu0 0.0
    %2397 = vmatpush1.xpose.msra.mxu0 0.0
    %2398 = vmatprep.subr.mxu0 0.0
    %2399 = vmatpush1.xpose.msra.mxu0 0.0
    %2400 = vmatprep.subr.mxu0 0.0
    %2401 = vmatpush1.xpose.msra.mxu0 0.0
    %2402 = vmatprep.subr.mxu0 0.0
    %2403 = vmatpush1.xpose.msra.mxu0 0.0
    %2404 = vmatprep.subr.mxu0 0.0
    %2405 = vmatpush1.xpose.msra.mxu0 0.0
    %2406 = vmatprep.subr.mxu0 0.0
    %2407 = vmatpush1.xpose.msra.mxu0 0.0
    %2408 = vmatprep.subr.mxu0 0.0
    %2409 = vmatpush1.xpose.msra.mxu0 0.0
    %2410 = vmatprep.subr.mxu0 0.0
    %2411 = vmatpush1.xpose.msra.mxu0 0.0
    %2412 = vmatprep.subr.mxu0 0.0
    %2413 = vmatpush1.xpose.msra.mxu0 0.0
    %2414 = vmatprep.subr.mxu0 0.0
    %2415 = vmatpush1.xpose.msra.mxu0 0.0
    %2416 = vmatprep.subr.mxu0 0.0
    %2417 = vmatpush1.xpose.msra.mxu0 0.0
    %2418 = vmatprep.subr.mxu0 0.0
    %2419 = vmatpush1.xpose.msra.mxu0 0.0
    %2420 = vmatprep.subr.mxu0 0.0
    %2421 = vmatpush1.xpose.msra.mxu0 0.0
    %2422 = vmatprep.subr.mxu0 0.0
    %2423 = vmatpush1.xpose.msra.mxu0 0.0
    %2424 = vmatprep.subr.mxu0 0.0
    %2425 = vmatpush1.xpose.msra.mxu0 0.0
    %2426 = vmatprep.subr.mxu0 0.0
    %2427 = vmatpush1.xpose.msra.mxu0 0.0
    %2428 = vmatprep.subr.mxu0 0.0
    %2429 = vmatpush1.xpose.msra.mxu0 0.0
    %2430 = vmatprep.subr.mxu0 0.0
    %2431 = vmatpush1.xpose.msra.mxu0 0.0
    %2432 = vmatprep.subr.mxu0 0.0
    %2433 = vmatpush1.xpose.msra.mxu0 0.0
    %2434 = vmatprep.subr.mxu0 0.0
    %2435 = vmatpush1.xpose.msra.mxu0 0.0
    %2436 = vmatprep.subr.mxu0 0.0
    %2437 = vmatpush1.xpose.msra.mxu0 0.0
    %2438 = vmatprep.mubr.f32.mxu0 0.0
    %2439 = vmatmul.mubr.f32.gmra.mrb[0].mxu0 %v2370
    %v2440 = vpop.f32.mrb[0].mxu0
    %v2441 = vadd.f32 %v284, %v2440
    %v2442 = vpop.f32.mrb[0].mxu0
    %2443 = vdwg.mxu0
    %v2444 = vsel %vm363, %v2441, -inf
    %2445 = vmax.xlane.f32.xlu0 %v2444
    %v2446 = vpop.xlane.xlu0 %2445
    %v2447 = vsub.f32 %v2441, %v2446
    %v2448 = vmul.f32 %v2447, 1.442695
    %v2449 = vpow.pop %v2448
    %v2450 = vsel %vm363, %v2449, 0.0
    %2451 = vadd.xlane.f32.xlu0 %v2450
    %v2452 = vpop.xlane.xlu0 %2451
    %v2453 = vrcp.pop %v2452
    %v2454 = vmul.f32 %v2449, %v2453
    %2456 = vrot.lane.b32.xlu0 %v2196, 112
    %v2457 = vpop.permute.xlu0 %2456
    %v2460 = vsel %vm363, %v2454, 0
    %2462 = vmatprep.subr.mxu0 0.0
    %2463 = vmatpush1.msra.mxu0 %v2457
    %2464 = vmatprep.subr.mxu0 0.0
    %2465 = vmatpush1.msra.mxu0 0.0
    %2466 = vmatprep.subr.mxu0 0.0
    %2467 = vmatpush1.msra.mxu0 0.0
    %2468 = vmatprep.subr.mxu0 0.0
    %2469 = vmatpush1.msra.mxu0 0.0
    %2470 = vmatprep.subr.mxu0 0.0
    %2471 = vmatpush1.msra.mxu0 0.0
    %2472 = vmatprep.subr.mxu0 0.0
    %2473 = vmatpush1.msra.mxu0 0.0
    %2474 = vmatprep.subr.mxu0 0.0
    %2475 = vmatpush1.msra.mxu0 0.0
    %2476 = vmatprep.subr.mxu0 0.0
    %2477 = vmatpush1.msra.mxu0 0.0
    %2478 = vmatprep.subr.mxu0 0.0
    %2479 = vmatpush1.msra.mxu0 0.0
    %2480 = vmatprep.subr.mxu0 0.0
    %2481 = vmatpush1.msra.mxu0 0.0
    %2482 = vmatprep.subr.mxu0 0.0
    %2483 = vmatpush1.msra.mxu0 0.0
    %2484 = vmatprep.subr.mxu0 0.0
    %2485 = vmatpush1.msra.mxu0 0.0
    %2486 = vmatprep.subr.mxu0 0.0
    %2487 = vmatpush1.msra.mxu0 0.0
    %2488 = vmatprep.subr.mxu0 0.0
    %2489 = vmatpush1.msra.mxu0 0.0
    %2490 = vmatprep.subr.mxu0 0.0
    %2491 = vmatpush1.msra.mxu0 0.0
    %2492 = vmatprep.subr.mxu0 0.0
    %2493 = vmatpush1.msra.mxu0 0.0
    %2494 = vmatprep.subr.mxu0 0.0
    %2495 = vmatpush1.msra.mxu0 0.0
    %2496 = vmatprep.subr.mxu0 0.0
    %2497 = vmatpush1.msra.mxu0 0.0
    %2498 = vmatprep.subr.mxu0 0.0
    %2499 = vmatpush1.msra.mxu0 0.0
    %2500 = vmatprep.subr.mxu0 0.0
    %2501 = vmatpush1.msra.mxu0 0.0
    %2502 = vmatprep.subr.mxu0 0.0
    %2503 = vmatpush1.msra.mxu0 0.0
    %2504 = vmatprep.subr.mxu0 0.0
    %2505 = vmatpush1.msra.mxu0 0.0
    %2506 = vmatprep.subr.mxu0 0.0
    %2507 = vmatpush1.msra.mxu0 0.0
    %2508 = vmatprep.subr.mxu0 0.0
    %2509 = vmatpush1.msra.mxu0 0.0
    %2510 = vmatprep.subr.mxu0 0.0
    %2511 = vmatpush1.msra.mxu0 0.0
    %2512 = vmatprep.subr.mxu0 0.0
    %2513 = vmatpush1.msra.mxu0 0.0
    %2514 = vmatprep.subr.mxu0 0.0
    %2515 = vmatpush1.msra.mxu0 0.0
    %2516 = vmatprep.subr.mxu0 0.0
    %2517 = vmatpush1.msra.mxu0 0.0
    %2518 = vmatprep.subr.mxu0 0.0
    %2519 = vmatpush1.msra.mxu0 0.0
    %2520 = vmatprep.subr.mxu0 0.0
    %2521 = vmatpush1.msra.mxu0 0.0
    %2522 = vmatprep.subr.mxu0 0.0
    %2523 = vmatpush1.msra.mxu0 0.0
    %2524 = vmatprep.subr.mxu0 0.0
    %2525 = vmatpush1.msra.mxu0 0.0
    %2526 = vmatprep.mubr.f32.mxu0 0.0
    %2527 = vmatmul.mubr.f32.gmra.mrb[0].mxu0 %v2460
    %v2528 = vpop.f32.mrb[0].mxu0
    %v2529 = vadd.f32 0.0, %v2528
    %v2530 = vpop.f32.mrb[0].mxu0
    %2531 = vdwg.mxu0
    %2533 = vrot.lane.b32.xlu0 %v2529, 16
    %v2534 = vpop.permute.xlu0 %2533
    %2536 = vst.msk [vmem:[#allocation2] sm:$0xff] %vm619, %v2534
    %2537 = vrot.lane.b32.xlu0 %v2194, 96
    %v2538 = vpop.permute.xlu0 %2537
    %2539 = vrot.lane.b32.xlu0 %v2194, 32
    %v2540 = vpop.permute.xlu0 %2539
    %v2541 = vsel %vm288, %v2538, 0
    %v2543 = vsel %vm288, %v2540, 0
    %2545 = vmatprep.subr.mxu0 0.0
    %2546 = vmatpush1.xpose.msra.mxu0 %v2543
    %2547 = vmatprep.subr.mxu0 0.0
    %2548 = vmatpush1.xpose.msra.mxu0 0.0
    %2549 = vmatprep.subr.mxu0 0.0
    %2550 = vmatpush1.xpose.msra.mxu0 0.0
    %2551 = vmatprep.subr.mxu0 0.0
    %2552 = vmatpush1.xpose.msra.mxu0 0.0
    %2553 = vmatprep.subr.mxu0 0.0
    %2554 = vmatpush1.xpose.msra.mxu0 0.0
    %2555 = vmatprep.subr.mxu0 0.0
    %2556 = vmatpush1.xpose.msra.mxu0 0.0
    %2557 = vmatprep.subr.mxu0 0.0
    %2558 = vmatpush1.xpose.msra.mxu0 0.0
    %2559 = vmatprep.subr.mxu0 0.0
    %2560 = vmatpush1.xpose.msra.mxu0 0.0
    %2561 = vmatprep.subr.mxu0 0.0
    %2562 = vmatpush1.xpose.msra.mxu0 0.0
    %2563 = vmatprep.subr.mxu0 0.0
    %2564 = vmatpush1.xpose.msra.mxu0 0.0
    %2565 = vmatprep.subr.mxu0 0.0
    %2566 = vmatpush1.xpose.msra.mxu0 0.0
    %2567 = vmatprep.subr.mxu0 0.0
    %2568 = vmatpush1.xpose.msra.mxu0 0.0
    %2569 = vmatprep.subr.mxu0 0.0
    %2570 = vmatpush1.xpose.msra.mxu0 0.0
    %2571 = vmatprep.subr.mxu0 0.0
    %2572 = vmatpush1.xpose.msra.mxu0 0.0
    %2573 = vmatprep.subr.mxu0 0.0
    %2574 = vmatpush1.xpose.msra.mxu0 0.0
    %2575 = vmatprep.subr.mxu0 0.0
    %2576 = vmatpush1.xpose.msra.mxu0 0.0
    %2577 = vmatprep.subr.mxu0 0.0
    %2578 = vmatpush1.xpose.msra.mxu0 0.0
    %2579 = vmatprep.subr.mxu0 0.0
    %2580 = vmatpush1.xpose.msra.mxu0 0.0
    %2581 = vmatprep.subr.mxu0 0.0
    %2582 = vmatpush1.xpose.msra.mxu0 0.0
    %2583 = vmatprep.subr.mxu0 0.0
    %2584 = vmatpush1.xpose.msra.mxu0 0.0
    %2585 = vmatprep.subr.mxu0 0.0
    %2586 = vmatpush1.xpose.msra.mxu0 0.0
    %2587 = vmatprep.subr.mxu0 0.0
    %2588 = vmatpush1.xpose.msra.mxu0 0.0
    %2589 = vmatprep.subr.mxu0 0.0
    %2590 = vmatpush1.xpose.msra.mxu0 0.0
    %2591 = vmatprep.subr.mxu0 0.0
    %2592 = vmatpush1.xpose.msra.mxu0 0.0
    %2593 = vmatprep.subr.mxu0 0.0
    %2594 = vmatpush1.xpose.msra.mxu0 0.0
    %2595 = vmatprep.subr.mxu0 0.0
    %2596 = vmatpush1.xpose.msra.mxu0 0.0
    %2597 = vmatprep.subr.mxu0 0.0
    %2598 = vmatpush1.xpose.msra.mxu0 0.0
    %2599 = vmatprep.subr.mxu0 0.0
    %2600 = vmatpush1.xpose.msra.mxu0 0.0
    %2601 = vmatprep.subr.mxu0 0.0
    %2602 = vmatpush1.xpose.msra.mxu0 0.0
    %2603 = vmatprep.subr.mxu0 0.0
    %2604 = vmatpush1.xpose.msra.mxu0 0.0
    %2605 = vmatprep.subr.mxu0 0.0
    %2606 = vmatpush1.xpose.msra.mxu0 0.0
    %2607 = vmatprep.subr.mxu0 0.0
    %2608 = vmatpush1.xpose.msra.mxu0 0.0
    %2609 = vmatprep.mubr.f32.mxu0 0.0
    %2610 = vmatmul.mubr.f32.gmra.mrb[0].mxu0 %v2541
    %v2611 = vpop.f32.mrb[0].mxu0
    %v2612 = vadd.f32 %v284, %v2611
    %v2613 = vpop.f32.mrb[0].mxu0
    %2614 = vdwg.mxu0
    %v2615 = vsel %vm363, %v2612, -inf
    %2616 = vmax.xlane.f32.xlu0 %v2615
    %v2617 = vpop.xlane.xlu0 %2616
    %v2618 = vsub.f32 %v2612, %v2617
    %v2619 = vmul.f32 %v2618, 1.442695
    %v2620 = vpow.pop %v2619
    %v2621 = vsel %vm363, %v2620, 0.0
    %2622 = vadd.xlane.f32.xlu0 %v2621
    %v2623 = vpop.xlane.xlu0 %2622
    %v2624 = vrcp.pop %v2623
    %v2625 = vmul.f32 %v2620, %v2624
    %2626 = vrot.lane.b32.xlu0 %v2196, 96
    %v2627 = vpop.permute.xlu0 %2626
    %v2630 = vsel %vm363, %v2625, 0
    %2632 = vmatprep.subr.mxu0 0.0
    %2633 = vmatpush1.msra.mxu0 %v2627
    %2634 = vmatprep.subr.mxu0 0.0
    %2635 = vmatpush1.msra.mxu0 0.0
    %2636 = vmatprep.subr.mxu0 0.0
    %2637 = vmatpush1.msra.mxu0 0.0
    %2638 = vmatprep.subr.mxu0 0.0
    %2639 = vmatpush1.msra.mxu0 0.0
    %2640 = vmatprep.subr.mxu0 0.0
    %2641 = vmatpush1.msra.mxu0 0.0
    %2642 = vmatprep.subr.mxu0 0.0
    %2643 = vmatpush1.msra.mxu0 0.0
    %2644 = vmatprep.subr.mxu0 0.0
    %2645 = vmatpush1.msra.mxu0 0.0
    %2646 = vmatprep.subr.mxu0 0.0
    %2647 = vmatpush1.msra.mxu0 0.0
    %2648 = vmatprep.subr.mxu0 0.0
    %2649 = vmatpush1.msra.mxu0 0.0
    %2650 = vmatprep.subr.mxu0 0.0
    %2651 = vmatpush1.msra.mxu0 0.0
    %2652 = vmatprep.subr.mxu0 0.0
    %2653 = vmatpush1.msra.mxu0 0.0
    %2654 = vmatprep.subr.mxu0 0.0
    %2655 = vmatpush1.msra.mxu0 0.0
    %2656 = vmatprep.subr.mxu0 0.0
    %2657 = vmatpush1.msra.mxu0 0.0
    %2658 = vmatprep.subr.mxu0 0.0
    %2659 = vmatpush1.msra.mxu0 0.0
    %2660 = vmatprep.subr.mxu0 0.0
    %2661 = vmatpush1.msra.mxu0 0.0
    %2662 = vmatprep.subr.mxu0 0.0
    %2663 = vmatpush1.msra.mxu0 0.0
    %2664 = vmatprep.subr.mxu0 0.0
    %2665 = vmatpush1.msra.mxu0 0.0
    %2666 = vmatprep.subr.mxu0 0.0
    %2667 = vmatpush1.msra.mxu0 0.0
    %2668 = vmatprep.subr.mxu0 0.0
    %2669 = vmatpush1.msra.mxu0 0.0
    %2670 = vmatprep.subr.mxu0 0.0
    %2671 = vmatpush1.msra.mxu0 0.0
    %2672 = vmatprep.subr.mxu0 0.0
    %2673 = vmatpush1.msra.mxu0 0.0
    %2674 = vmatprep.subr.mxu0 0.0
    %2675 = vmatpush1.msra.mxu0 0.0
    %2676 = vmatprep.subr.mxu0 0.0
    %2677 = vmatpush1.msra.mxu0 0.0
    %2678 = vmatprep.subr.mxu0 0.0
    %2679 = vmatpush1.msra.mxu0 0.0
    %2680 = vmatprep.subr.mxu0 0.0
    %2681 = vmatpush1.msra.mxu0 0.0
    %2682 = vmatprep.subr.mxu0 0.0
    %2683 = vmatpush1.msra.mxu0 0.0
    %2684 = vmatprep.subr.mxu0 0.0
    %2685 = vmatpush1.msra.mxu0 0.0
    %2686 = vmatprep.subr.mxu0 0.0
    %2687 = vmatpush1.msra.mxu0 0.0
    %2688 = vmatprep.subr.mxu0 0.0
    %2689 = vmatpush1.msra.mxu0 0.0
    %2690 = vmatprep.subr.mxu0 0.0
    %2691 = vmatpush1.msra.mxu0 0.0
    %2692 = vmatprep.subr.mxu0 0.0
    %2693 = vmatpush1.msra.mxu0 0.0
    %2694 = vmatprep.subr.mxu0 0.0
    %2695 = vmatpush1.msra.mxu0 0.0
    %2696 = vmatprep.mubr.f32.mxu0 0.0
    %2697 = vmatmul.mubr.f32.gmra.mrb[0].mxu0 %v2630
    %v2698 = vpop.f32.mrb[0].mxu0
    %v2699 = vadd.f32 0.0, %v2698
    %v2700 = vpop.f32.mrb[0].mxu0
    %2701 = vdwg.mxu0
    %2703 = vrot.lane.b32.xlu0 %v2699, 32
    %v2704 = vpop.permute.xlu0 %2703
    %2706 = vst.msk [vmem:[#allocation2] sm:$0xff] %vm790, %v2704
    %2707 = vrot.lane.b32.xlu0 %v2194, 80
    %v2708 = vpop.permute.xlu0 %2707
    %2709 = vrot.lane.b32.xlu0 %v2194, 16
    %v2710 = vpop.permute.xlu0 %2709
    %v2711 = vsel %vm288, %v2708, 0
    %v2713 = vsel %vm288, %v2710, 0
    %2715 = vmatprep.subr.mxu0 0.0
    %2716 = vmatpush1.xpose.msra.mxu0 %v2713
    %2717 = vmatprep.subr.mxu0 0.0
    %2718 = vmatpush1.xpose.msra.mxu0 0.0
    %2719 = vmatprep.subr.mxu0 0.0
    %2720 = vmatpush1.xpose.msra.mxu0 0.0
    %2721 = vmatprep.subr.mxu0 0.0
    %2722 = vmatpush1.xpose.msra.mxu0 0.0
    %2723 = vmatprep.subr.mxu0 0.0
    %2724 = vmatpush1.xpose.msra.mxu0 0.0
    %2725 = vmatprep.subr.mxu0 0.0
    %2726 = vmatpush1.xpose.msra.mxu0 0.0
    %2727 = vmatprep.subr.mxu0 0.0
    %2728 = vmatpush1.xpose.msra.mxu0 0.0
    %2729 = vmatprep.subr.mxu0 0.0
    %2730 = vmatpush1.xpose.msra.mxu0 0.0
    %2731 = vmatprep.subr.mxu0 0.0
    %2732 = vmatpush1.xpose.msra.mxu0 0.0
    %2733 = vmatprep.subr.mxu0 0.0
    %2734 = vmatpush1.xpose.msra.mxu0 0.0
    %2735 = vmatprep.subr.mxu0 0.0
    %2736 = vmatpush1.xpose.msra.mxu0 0.0
    %2737 = vmatprep.subr.mxu0 0.0
    %2738 = vmatpush1.xpose.msra.mxu0 0.0
    %2739 = vmatprep.subr.mxu0 0.0
    %2740 = vmatpush1.xpose.msra.mxu0 0.0
    %2741 = vmatprep.subr.mxu0 0.0
    %2742 = vmatpush1.xpose.msra.mxu0 0.0
    %2743 = vmatprep.subr.mxu0 0.0
    %2744 = vmatpush1.xpose.msra.mxu0 0.0
    %2745 = vmatprep.subr.mxu0 0.0
    %2746 = vmatpush1.xpose.msra.mxu0 0.0
    %2747 = vmatprep.subr.mxu0 0.0
    %2748 = vmatpush1.xpose.msra.mxu0 0.0
    %2749 = vmatprep.subr.mxu0 0.0
    %2750 = vmatpush1.xpose.msra.mxu0 0.0
    %2751 = vmatprep.subr.mxu0 0.0
    %2752 = vmatpush1.xpose.msra.mxu0 0.0
    %2753 = vmatprep.subr.mxu0 0.0
    %2754 = vmatpush1.xpose.msra.mxu0 0.0
    %2755 = vmatprep.subr.mxu0 0.0
    %2756 = vmatpush1.xpose.msra.mxu0 0.0
    %2757 = vmatprep.subr.mxu0 0.0
    %2758 = vmatpush1.xpose.msra.mxu0 0.0
    %2759 = vmatprep.subr.mxu0 0.0
    %2760 = vmatpush1.xpose.msra.mxu0 0.0
    %2761 = vmatprep.subr.mxu0 0.0
    %2762 = vmatpush1.xpose.msra.mxu0 0.0
    %2763 = vmatprep.subr.mxu0 0.0
    %2764 = vmatpush1.xpose.msra.mxu0 0.0
    %2765 = vmatprep.subr.mxu0 0.0
    %2766 = vmatpush1.xpose.msra.mxu0 0.0
    %2767 = vmatprep.subr.mxu0 0.0
    %2768 = vmatpush1.xpose.msra.mxu0 0.0
    %2769 = vmatprep.subr.mxu0 0.0
    %2770 = vmatpush1.xpose.msra.mxu0 0.0
    %2771 = vmatprep.subr.mxu0 0.0
    %2772 = vmatpush1.xpose.msra.mxu0 0.0
    %2773 = vmatprep.subr.mxu0 0.0
    %2774 = vmatpush1.xpose.msra.mxu0 0.0
    %2775 = vmatprep.subr.mxu0 0.0
    %2776 = vmatpush1.xpose.msra.mxu0 0.0
    %2777 = vmatprep.subr.mxu0 0.0
    %2778 = vmatpush1.xpose.msra.mxu0 0.0
    %2779 = vmatprep.mubr.f32.mxu0 0.0
    %2780 = vmatmul.mubr.f32.gmra.mrb[0].mxu0 %v2711
    %v2781 = vpop.f32.mrb[0].mxu0
    %v2782 = vadd.f32 %v284, %v2781
    %v2783 = vpop.f32.mrb[0].mxu0
    %2784 = vdwg.mxu0
    %v2785 = vsel %vm363, %v2782, -inf
    %2786 = vmax.xlane.f32.xlu0 %v2785
    %v2787 = vpop.xlane.xlu0 %2786
    %v2788 = vsub.f32 %v2782, %v2787
    %v2789 = vmul.f32 %v2788, 1.442695
    %v2790 = vpow.pop %v2789
    %v2791 = vsel %vm363, %v2790, 0.0
    %2792 = vadd.xlane.f32.xlu0 %v2791
    %v2793 = vpop.xlane.xlu0 %2792
    %v2794 = vrcp.pop %v2793
    %v2795 = vmul.f32 %v2790, %v2794
    %2796 = vrot.lane.b32.xlu0 %v2196, 80
    %v2797 = vpop.permute.xlu0 %2796
    %v2800 = vsel %vm363, %v2795, 0
    %2802 = vmatprep.subr.mxu0 0.0
    %2803 = vmatpush1.msra.mxu0 %v2797
    %2804 = vmatprep.subr.mxu0 0.0
    %2805 = vmatpush1.msra.mxu0 0.0
    %2806 = vmatprep.subr.mxu0 0.0
    %2807 = vmatpush1.msra.mxu0 0.0
    %2808 = vmatprep.subr.mxu0 0.0
    %2809 = vmatpush1.msra.mxu0 0.0
    %2810 = vmatprep.subr.mxu0 0.0
    %2811 = vmatpush1.msra.mxu0 0.0
    %2812 = vmatprep.subr.mxu0 0.0
    %2813 = vmatpush1.msra.mxu0 0.0
    %2814 = vmatprep.subr.mxu0 0.0
    %2815 = vmatpush1.msra.mxu0 0.0
    %2816 = vmatprep.subr.mxu0 0.0
    %2817 = vmatpush1.msra.mxu0 0.0
    %2818 = vmatprep.subr.mxu0 0.0
    %2819 = vmatpush1.msra.mxu0 0.0
    %2820 = vmatprep.subr.mxu0 0.0
    %2821 = vmatpush1.msra.mxu0 0.0
    %2822 = vmatprep.subr.mxu0 0.0
    %2823 = vmatpush1.msra.mxu0 0.0
    %2824 = vmatprep.subr.mxu0 0.0
    %2825 = vmatpush1.msra.mxu0 0.0
    %2826 = vmatprep.subr.mxu0 0.0
    %2827 = vmatpush1.msra.mxu0 0.0
    %2828 = vmatprep.subr.mxu0 0.0
    %2829 = vmatpush1.msra.mxu0 0.0
    %2830 = vmatprep.subr.mxu0 0.0
    %2831 = vmatpush1.msra.mxu0 0.0
    %2832 = vmatprep.subr.mxu0 0.0
    %2833 = vmatpush1.msra.mxu0 0.0
    %2834 = vmatprep.subr.mxu0 0.0
    %2835 = vmatpush1.msra.mxu0 0.0
    %2836 = vmatprep.subr.mxu0 0.0
    %2837 = vmatpush1.msra.mxu0 0.0
    %2838 = vmatprep.subr.mxu0 0.0
    %2839 = vmatpush1.msra.mxu0 0.0
    %2840 = vmatprep.subr.mxu0 0.0
    %2841 = vmatpush1.msra.mxu0 0.0
    %2842 = vmatprep.subr.mxu0 0.0
    %2843 = vmatpush1.msra.mxu0 0.0
    %2844 = vmatprep.subr.mxu0 0.0
    %2845 = vmatpush1.msra.mxu0 0.0
    %2846 = vmatprep.subr.mxu0 0.0
    %2847 = vmatpush1.msra.mxu0 0.0
    %2848 = vmatprep.subr.mxu0 0.0
    %2849 = vmatpush1.msra.mxu0 0.0
    %2850 = vmatprep.subr.mxu0 0.0
    %2851 = vmatpush1.msra.mxu0 0.0
    %2852 = vmatprep.subr.mxu0 0.0
    %2853 = vmatpush1.msra.mxu0 0.0
    %2854 = vmatprep.subr.mxu0 0.0
    %2855 = vmatpush1.msra.mxu0 0.0
    %2856 = vmatprep.subr.mxu0 0.0
    %2857 = vmatpush1.msra.mxu0 0.0
    %2858 = vmatprep.subr.mxu0 0.0
    %2859 = vmatpush1.msra.mxu0 0.0
    %2860 = vmatprep.subr.mxu0 0.0
    %2861 = vmatpush1.msra.mxu0 0.0
    %2862 = vmatprep.subr.mxu0 0.0
    %2863 = vmatpush1.msra.mxu0 0.0
    %2864 = vmatprep.subr.mxu0 0.0
    %2865 = vmatpush1.msra.mxu0 0.0
    %2866 = vmatprep.mubr.f32.mxu0 0.0
    %2867 = vmatmul.mubr.f32.gmra.mrb[0].mxu0 %v2800
    %v2868 = vpop.f32.mrb[0].mxu0
    %v2869 = vadd.f32 0.0, %v2868
    %v2870 = vpop.f32.mrb[0].mxu0
    %2871 = vdwg.mxu0
    %2873 = vrot.lane.b32.xlu0 %v2869, 48
    %v2874 = vpop.permute.xlu0 %2873
    %2876 = vst.msk [vmem:[#allocation2] sm:$0xff] %vm961, %v2874
    %2878 = vrot.lane.b32.xlu0 %v2200, 64
    %v2879 = vpop.permute.xlu0 %2878
    %v2880 = vsel %vm288, %v2200, 0
    %v2882 = vsel %vm288, %v2879, 0
    %2884 = vmatprep.subr.mxu0 0.0
    %2885 = vmatpush1.xpose.msra.mxu0 %v2882
    %2886 = vmatprep.subr.mxu0 0.0
    %2887 = vmatpush1.xpose.msra.mxu0 0.0
    %2888 = vmatprep.subr.mxu0 0.0
    %2889 = vmatpush1.xpose.msra.mxu0 0.0
    %2890 = vmatprep.subr.mxu0 0.0
    %2891 = vmatpush1.xpose.msra.mxu0 0.0
    %2892 = vmatprep.subr.mxu0 0.0
    %2893 = vmatpush1.xpose.msra.mxu0 0.0
    %2894 = vmatprep.subr.mxu0 0.0
    %2895 = vmatpush1.xpose.msra.mxu0 0.0
    %2896 = vmatprep.subr.mxu0 0.0
    %2897 = vmatpush1.xpose.msra.mxu0 0.0
    %2898 = vmatprep.subr.mxu0 0.0
    %2899 = vmatpush1.xpose.msra.mxu0 0.0
    %2900 = vmatprep.subr.mxu0 0.0
    %2901 = vmatpush1.xpose.msra.mxu0 0.0
    %2902 = vmatprep.subr.mxu0 0.0
    %2903 = vmatpush1.xpose.msra.mxu0 0.0
    %2904 = vmatprep.subr.mxu0 0.0
    %2905 = vmatpush1.xpose.msra.mxu0 0.0
    %2906 = vmatprep.subr.mxu0 0.0
    %2907 = vmatpush1.xpose.msra.mxu0 0.0
    %2908 = vmatprep.subr.mxu0 0.0
    %2909 = vmatpush1.xpose.msra.mxu0 0.0
    %2910 = vmatprep.subr.mxu0 0.0
    %2911 = vmatpush1.xpose.msra.mxu0 0.0
    %2912 = vmatprep.subr.mxu0 0.0
    %2913 = vmatpush1.xpose.msra.mxu0 0.0
    %2914 = vmatprep.subr.mxu0 0.0
    %2915 = vmatpush1.xpose.msra.mxu0 0.0
    %2916 = vmatprep.subr.mxu0 0.0
    %2917 = vmatpush1.xpose.msra.mxu0 0.0
    %2918 = vmatprep.subr.mxu0 0.0
    %2919 = vmatpush1.xpose.msra.mxu0 0.0
    %2920 = vmatprep.subr.mxu0 0.0
    %2921 = vmatpush1.xpose.msra.mxu0 0.0
    %2922 = vmatprep.subr.mxu0 0.0
    %2923 = vmatpush1.xpose.msra.mxu0 0.0
    %2924 = vmatprep.subr.mxu0 0.0
    %2925 = vmatpush1.xpose.msra.mxu0 0.0
    %2926 = vmatprep.subr.mxu0 0.0
    %2927 = vmatpush1.xpose.msra.mxu0 0.0
    %2928 = vmatprep.subr.mxu0 0.0
    %2929 = vmatpush1.xpose.msra.mxu0 0.0
    %2930 = vmatprep.subr.mxu0 0.0
    %2931 = vmatpush1.xpose.msra.mxu0 0.0
    %2932 = vmatprep.subr.mxu0 0.0
    %2933 = vmatpush1.xpose.msra.mxu0 0.0
    %2934 = vmatprep.subr.mxu0 0.0
    %2935 = vmatpush1.xpose.msra.mxu0 0.0
    %2936 = vmatprep.subr.mxu0 0.0
    %2937 = vmatpush1.xpose.msra.mxu0 0.0
    %2938 = vmatprep.subr.mxu0 0.0
    %2939 = vmatpush1.xpose.msra.mxu0 0.0
    %2940 = vmatprep.subr.mxu0 0.0
    %2941 = vmatpush1.xpose.msra.mxu0 0.0
    %2942 = vmatprep.subr.mxu0 0.0
    %2943 = vmatpush1.xpose.msra.mxu0 0.0
    %2944 = vmatprep.subr.mxu0 0.0
    %2945 = vmatpush1.xpose.msra.mxu0 0.0
    %2946 = vmatprep.subr.mxu0 0.0
    %2947 = vmatpush1.xpose.msra.mxu0 0.0
    %2948 = vmatprep.mubr.f32.mxu0 0.0
    %2949 = vmatmul.mubr.f32.gmra.mrb[0].mxu0 %v2880
    %v2950 = vpop.f32.mrb[0].mxu0
    %v2951 = vadd.f32 %v966, %v2950
    %v2952 = vpop.f32.mrb[0].mxu0
    %2953 = vdwg.mxu0
    %v2954 = vsel %vm363, %v2951, -inf
    %2955 = vmax.xlane.f32.xlu0 %v2954
    %v2956 = vpop.xlane.xlu0 %2955
    %v2957 = vsub.f32 %v2951, %v2956
    %v2958 = vmul.f32 %v2957, 1.442695
    %v2959 = vpow.pop %v2958
    %v2960 = vsel %vm363, %v2959, 0.0
    %2961 = vadd.xlane.f32.xlu0 %v2960
    %v2962 = vpop.xlane.xlu0 %2961
    %v2963 = vrcp.pop %v2962
    %v2964 = vmul.f32 %v2959, %v2963
    %v2966 = vsel %vm363, %v2964, 0
    %2968 = vmatprep.subr.mxu0 0.0
    %2969 = vmatpush1.msra.mxu0 %v2202
    %2970 = vmatprep.subr.mxu0 0.0
    %2971 = vmatpush1.msra.mxu0 0.0
    %2972 = vmatprep.subr.mxu0 0.0
    %2973 = vmatpush1.msra.mxu0 0.0
    %2974 = vmatprep.subr.mxu0 0.0
    %2975 = vmatpush1.msra.mxu0 0.0
    %2976 = vmatprep.subr.mxu0 0.0
    %2977 = vmatpush1.msra.mxu0 0.0
    %2978 = vmatprep.subr.mxu0 0.0
    %2979 = vmatpush1.msra.mxu0 0.0
    %2980 = vmatprep.subr.mxu0 0.0
    %2981 = vmatpush1.msra.mxu0 0.0
    %2982 = vmatprep.subr.mxu0 0.0
    %2983 = vmatpush1.msra.mxu0 0.0
    %2984 = vmatprep.subr.mxu0 0.0
    %2985 = vmatpush1.msra.mxu0 0.0
    %2986 = vmatprep.subr.mxu0 0.0
    %2987 = vmatpush1.msra.mxu0 0.0
    %2988 = vmatprep.subr.mxu0 0.0
    %2989 = vmatpush1.msra.mxu0 0.0
    %2990 = vmatprep.subr.mxu0 0.0
    %2991 = vmatpush1.msra.mxu0 0.0
    %2992 = vmatprep.subr.mxu0 0.0
    %2993 = vmatpush1.msra.mxu0 0.0
    %2994 = vmatprep.subr.mxu0 0.0
    %2995 = vmatpush1.msra.mxu0 0.0
    %2996 = vmatprep.subr.mxu0 0.0
    %2997 = vmatpush1.msra.mxu0 0.0
    %2998 = vmatprep.subr.mxu0 0.0
    %2999 = vmatpush1.msra.mxu0 0.0
    %3000 = vmatprep.subr.mxu0 0.0
    %3001 = vmatpush1.msra.mxu0 0.0
    %3002 = vmatprep.subr.mxu0 0.0
    %3003 = vmatpush1.msra.mxu0 0.0
    %3004 = vmatprep.subr.mxu0 0.0
    %3005 = vmatpush1.msra.mxu0 0.0
    %3006 = vmatprep.subr.mxu0 0.0
    %3007 = vmatpush1.msra.mxu0 0.0
    %3008 = vmatprep.subr.mxu0 0.0
    %3009 = vmatpush1.msra.mxu0 0.0
    %3010 = vmatprep.subr.mxu0 0.0
    %3011 = vmatpush1.msra.mxu0 0.0
    %3012 = vmatprep.subr.mxu0 0.0
    %3013 = vmatpush1.msra.mxu0 0.0
    %3014 = vmatprep.subr.mxu0 0.0
    %3015 = vmatpush1.msra.mxu0 0.0
    %3016 = vmatprep.subr.mxu0 0.0
    %3017 = vmatpush1.msra.mxu0 0.0
    %3018 = vmatprep.subr.mxu0 0.0
    %3019 = vmatpush1.msra.mxu0 0.0
    %3020 = vmatprep.subr.mxu0 0.0
    %3021 = vmatpush1.msra.mxu0 0.0
    %3022 = vmatprep.subr.mxu0 0.0
    %3023 = vmatpush1.msra.mxu0 0.0
    %3024 = vmatprep.subr.mxu0 0.0
    %3025 = vmatpush1.msra.mxu0 0.0
    %3026 = vmatprep.subr.mxu0 0.0
    %3027 = vmatpush1.msra.mxu0 0.0
    %3028 = vmatprep.subr.mxu0 0.0
    %3029 = vmatpush1.msra.mxu0 0.0
    %3030 = vmatprep.subr.mxu0 0.0
    %3031 = vmatpush1.msra.mxu0 0.0
    %3032 = vmatprep.mubr.f32.mxu0 0.0
    %3033 = vmatmul.mubr.f32.gmra.mrb[0].mxu0 %v2966
    %v3034 = vpop.f32.mrb[0].mxu0
    %v3035 = vadd.f32 0.0, %v3034
    %v3036 = vpop.f32.mrb[0].mxu0
    %3037 = vdwg.mxu0
    %3038 = vst.msk [vmem:[#allocation2 + $0x8] sm:$0xff] %vm288, %v3035
    %3039 = vrot.lane.b32.xlu0 %v2200, 112
    %v3040 = vpop.permute.xlu0 %3039
    %3041 = vrot.lane.b32.xlu0 %v2200, 48
    %v3042 = vpop.permute.xlu0 %3041
    %v3043 = vsel %vm288, %v3040, 0
    %v3045 = vsel %vm288, %v3042, 0
    %3047 = vmatprep.subr.mxu0 0.0
    %3048 = vmatpush1.xpose.msra.mxu0 %v3045
    %3049 = vmatprep.subr.mxu0 0.0
    %3050 = vmatpush1.xpose.msra.mxu0 0.0
    %3051 = vmatprep.subr.mxu0 0.0
    %3052 = vmatpush1.xpose.msra.mxu0 0.0
    %3053 = vmatprep.subr.mxu0 0.0
    %3054 = vmatpush1.xpose.msra.mxu0 0.0
    %3055 = vmatprep.subr.mxu0 0.0
    %3056 = vmatpush1.xpose.msra.mxu0 0.0
    %3057 = vmatprep.subr.mxu0 0.0
    %3058 = vmatpush1.xpose.msra.mxu0 0.0
    %3059 = vmatprep.subr.mxu0 0.0
    %3060 = vmatpush1.xpose.msra.mxu0 0.0
    %3061 = vmatprep.subr.mxu0 0.0
    %3062 = vmatpush1.xpose.msra.mxu0 0.0
    %3063 = vmatprep.subr.mxu0 0.0
    %3064 = vmatpush1.xpose.msra.mxu0 0.0
    %3065 = vmatprep.subr.mxu0 0.0
    %3066 = vmatpush1.xpose.msra.mxu0 0.0
    %3067 = vmatprep.subr.mxu0 0.0
    %3068 = vmatpush1.xpose.msra.mxu0 0.0
    %3069 = vmatprep.subr.mxu0 0.0
    %3070 = vmatpush1.xpose.msra.mxu0 0.0
    %3071 = vmatprep.subr.mxu0 0.0
    %3072 = vmatpush1.xpose.msra.mxu0 0.0
    %3073 = vmatprep.subr.mxu0 0.0
    %3074 = vmatpush1.xpose.msra.mxu0 0.0
    %3075 = vmatprep.subr.mxu0 0.0
    %3076 = vmatpush1.xpose.msra.mxu0 0.0
    %3077 = vmatprep.subr.mxu0 0.0
    %3078 = vmatpush1.xpose.msra.mxu0 0.0
    %3079 = vmatprep.subr.mxu0 0.0
    %3080 = vmatpush1.xpose.msra.mxu0 0.0
    %3081 = vmatprep.subr.mxu0 0.0
    %3082 = vmatpush1.xpose.msra.mxu0 0.0
    %3083 = vmatprep.subr.mxu0 0.0
    %3084 = vmatpush1.xpose.msra.mxu0 0.0
    %3085 = vmatprep.subr.mxu0 0.0
    %3086 = vmatpush1.xpose.msra.mxu0 0.0
    %3087 = vmatprep.subr.mxu0 0.0
    %3088 = vmatpush1.xpose.msra.mxu0 0.0
    %3089 = vmatprep.subr.mxu0 0.0
    %3090 = vmatpush1.xpose.msra.mxu0 0.0
    %3091 = vmatprep.subr.mxu0 0.0
    %3092 = vmatpush1.xpose.msra.mxu0 0.0
    %3093 = vmatprep.subr.mxu0 0.0
    %3094 = vmatpush1.xpose.msra.mxu0 0.0
    %3095 = vmatprep.subr.mxu0 0.0
    %3096 = vmatpush1.xpose.msra.mxu0 0.0
    %3097 = vmatprep.subr.mxu0 0.0
    %3098 = vmatpush1.xpose.msra.mxu0 0.0
    %3099 = vmatprep.subr.mxu0 0.0
    %3100 = vmatpush1.xpose.msra.mxu0 0.0
    %3101 = vmatprep.subr.mxu0 0.0
    %3102 = vmatpush1.xpose.msra.mxu0 0.0
    %3103 = vmatprep.subr.mxu0 0.0
    %3104 = vmatpush1.xpose.msra.mxu0 0.0
    %3105 = vmatprep.subr.mxu0 0.0
    %3106 = vmatpush1.xpose.msra.mxu0 0.0
    %3107 = vmatprep.subr.mxu0 0.0
    %3108 = vmatpush1.xpose.msra.mxu0 0.0
    %3109 = vmatprep.subr.mxu0 0.0
    %3110 = vmatpush1.xpose.msra.mxu0 0.0
    %3111 = vmatprep.mubr.f32.mxu0 0.0
    %3112 = vmatmul.mubr.f32.gmra.mrb[0].mxu0 %v3043
    %v3113 = vpop.f32.mrb[0].mxu0
    %v3114 = vadd.f32 %v966, %v3113
    %v3115 = vpop.f32.mrb[0].mxu0
    %3116 = vdwg.mxu0
    %v3117 = vsel %vm363, %v3114, -inf
    %3118 = vmax.xlane.f32.xlu0 %v3117
    %v3119 = vpop.xlane.xlu0 %3118
    %v3120 = vsub.f32 %v3114, %v3119
    %v3121 = vmul.f32 %v3120, 1.442695
    %v3122 = vpow.pop %v3121
    %v3123 = vsel %vm363, %v3122, 0.0
    %3124 = vadd.xlane.f32.xlu0 %v3123
    %v3125 = vpop.xlane.xlu0 %3124
    %v3126 = vrcp.pop %v3125
    %v3127 = vmul.f32 %v3122, %v3126
    %3129 = vrot.lane.b32.xlu0 %v2202, 112
    %v3130 = vpop.permute.xlu0 %3129
    %v3133 = vsel %vm363, %v3127, 0
    %3135 = vmatprep.subr.mxu0 0.0
    %3136 = vmatpush1.msra.mxu0 %v3130
    %3137 = vmatprep.subr.mxu0 0.0
    %3138 = vmatpush1.msra.mxu0 0.0
    %3139 = vmatprep.subr.mxu0 0.0
    %3140 = vmatpush1.msra.mxu0 0.0
    %3141 = vmatprep.subr.mxu0 0.0
    %3142 = vmatpush1.msra.mxu0 0.0
    %3143 = vmatprep.subr.mxu0 0.0
    %3144 = vmatpush1.msra.mxu0 0.0
    %3145 = vmatprep.subr.mxu0 0.0
    %3146 = vmatpush1.msra.mxu0 0.0
    %3147 = vmatprep.subr.mxu0 0.0
    %3148 = vmatpush1.msra.mxu0 0.0
    %3149 = vmatprep.subr.mxu0 0.0
    %3150 = vmatpush1.msra.mxu0 0.0
    %3151 = vmatprep.subr.mxu0 0.0
    %3152 = vmatpush1.msra.mxu0 0.0
    %3153 = vmatprep.subr.mxu0 0.0
    %3154 = vmatpush1.msra.mxu0 0.0
    %3155 = vmatprep.subr.mxu0 0.0
    %3156 = vmatpush1.msra.mxu0 0.0
    %3157 = vmatprep.subr.mxu0 0.0
    %3158 = vmatpush1.msra.mxu0 0.0
    %3159 = vmatprep.subr.mxu0 0.0
    %3160 = vmatpush1.msra.mxu0 0.0
    %3161 = vmatprep.subr.mxu0 0.0
    %3162 = vmatpush1.msra.mxu0 0.0
    %3163 = vmatprep.subr.mxu0 0.0
    %3164 = vmatpush1.msra.mxu0 0.0
    %3165 = vmatprep.subr.mxu0 0.0
    %3166 = vmatpush1.msra.mxu0 0.0
    %3167 = vmatprep.subr.mxu0 0.0
    %3168 = vmatpush1.msra.mxu0 0.0
    %3169 = vmatprep.subr.mxu0 0.0
    %3170 = vmatpush1.msra.mxu0 0.0
    %3171 = vmatprep.subr.mxu0 0.0
    %3172 = vmatpush1.msra.mxu0 0.0
    %3173 = vmatprep.subr.mxu0 0.0
    %3174 = vmatpush1.msra.mxu0 0.0
    %3175 = vmatprep.subr.mxu0 0.0
    %3176 = vmatpush1.msra.mxu0 0.0
    %3177 = vmatprep.subr.mxu0 0.0
    %3178 = vmatpush1.msra.mxu0 0.0
    %3179 = vmatprep.subr.mxu0 0.0
    %3180 = vmatpush1.msra.mxu0 0.0
    %3181 = vmatprep.subr.mxu0 0.0
    %3182 = vmatpush1.msra.mxu0 0.0
    %3183 = vmatprep.subr.mxu0 0.0
    %3184 = vmatpush1.msra.mxu0 0.0
    %3185 = vmatprep.subr.mxu0 0.0
    %3186 = vmatpush1.msra.mxu0 0.0
    %3187 = vmatprep.subr.mxu0 0.0
    %3188 = vmatpush1.msra.mxu0 0.0
    %3189 = vmatprep.subr.mxu0 0.0
    %3190 = vmatpush1.msra.mxu0 0.0
    %3191 = vmatprep.subr.mxu0 0.0
    %3192 = vmatpush1.msra.mxu0 0.0
    %3193 = vmatprep.subr.mxu0 0.0
    %3194 = vmatpush1.msra.mxu0 0.0
    %3195 = vmatprep.subr.mxu0 0.0
    %3196 = vmatpush1.msra.mxu0 0.0
    %3197 = vmatprep.subr.mxu0 0.0
    %3198 = vmatpush1.msra.mxu0 0.0
    %3199 = vmatprep.mubr.f32.mxu0 0.0
    %3200 = vmatmul.mubr.f32.gmra.mrb[0].mxu0 %v3133
    %v3201 = vpop.f32.mrb[0].mxu0
    %v3202 = vadd.f32 0.0, %v3201
    %v3203 = vpop.f32.mrb[0].mxu0
    %3204 = vdwg.mxu0
    %3206 = vrot.lane.b32.xlu0 %v3202, 16
    %v3207 = vpop.permute.xlu0 %3206
    %3209 = vst.msk [vmem:[#allocation2 + $0x8] sm:$0xff] %vm619, %v3207
    %3210 = vrot.lane.b32.xlu0 %v2200, 96
    %v3211 = vpop.permute.xlu0 %3210
    %3212 = vrot.lane.b32.xlu0 %v2200, 32
    %v3213 = vpop.permute.xlu0 %3212
    %v3214 = vsel %vm288, %v3211, 0
    %v3216 = vsel %vm288, %v3213, 0
    %3218 = vmatprep.subr.mxu0 0.0
    %3219 = vmatpush1.xpose.msra.mxu0 %v3216
    %3220 = vmatprep.subr.mxu0 0.0
    %3221 = vmatpush1.xpose.msra.mxu0 0.0
    %3222 = vmatprep.subr.mxu0 0.0
    %3223 = vmatpush1.xpose.msra.mxu0 0.0
    %3224 = vmatprep.subr.mxu0 0.0
    %3225 = vmatpush1.xpose.msra.mxu0 0.0
    %3226 = vmatprep.subr.mxu0 0.0
    %3227 = vmatpush1.xpose.msra.mxu0 0.0
    %3228 = vmatprep.subr.mxu0 0.0
    %3229 = vmatpush1.xpose.msra.mxu0 0.0
    %3230 = vmatprep.subr.mxu0 0.0
    %3231 = vmatpush1.xpose.msra.mxu0 0.0
    %3232 = vmatprep.subr.mxu0 0.0
    %3233 = vmatpush1.xpose.msra.mxu0 0.0
    %3234 = vmatprep.subr.mxu0 0.0
    %3235 = vmatpush1.xpose.msra.mxu0 0.0
    %3236 = vmatprep.subr.mxu0 0.0
    %3237 = vmatpush1.xpose.msra.mxu0 0.0
    %3238 = vmatprep.subr.mxu0 0.0
    %3239 = vmatpush1.xpose.msra.mxu0 0.0
    %3240 = vmatprep.subr.mxu0 0.0
    %3241 = vmatpush1.xpose.msra.mxu0 0.0
    %3242 = vmatprep.subr.mxu0 0.0
    %3243 = vmatpush1.xpose.msra.mxu0 0.0
    %3244 = vmatprep.subr.mxu0 0.0
    %3245 = vmatpush1.xpose.msra.mxu0 0.0
    %3246 = vmatprep.subr.mxu0 0.0
    %3247 = vmatpush1.xpose.msra.mxu0 0.0
    %3248 = vmatprep.subr.mxu0 0.0
    %3249 = vmatpush1.xpose.msra.mxu0 0.0
    %3250 = vmatprep.subr.mxu0 0.0
    %3251 = vmatpush1.xpose.msra.mxu0 0.0
    %3252 = vmatprep.subr.mxu0 0.0
    %3253 = vmatpush1.xpose.msra.mxu0 0.0
    %3254 = vmatprep.subr.mxu0 0.0
    %3255 = vmatpush1.xpose.msra.mxu0 0.0
    %3256 = vmatprep.subr.mxu0 0.0
    %3257 = vmatpush1.xpose.msra.mxu0 0.0
    %3258 = vmatprep.subr.mxu0 0.0
    %3259 = vmatpush1.xpose.msra.mxu0 0.0
    %3260 = vmatprep.subr.mxu0 0.0
    %3261 = vmatpush1.xpose.msra.mxu0 0.0
    %3262 = vmatprep.subr.mxu0 0.0
    %3263 = vmatpush1.xpose.msra.mxu0 0.0
    %3264 = vmatprep.subr.mxu0 0.0
    %3265 = vmatpush1.xpose.msra.mxu0 0.0
    %3266 = vmatprep.subr.mxu0 0.0
    %3267 = vmatpush1.xpose.msra.mxu0 0.0
    %3268 = vmatprep.subr.mxu0 0.0
    %3269 = vmatpush1.xpose.msra.mxu0 0.0
    %3270 = vmatprep.subr.mxu0 0.0
    %3271 = vmatpush1.xpose.msra.mxu0 0.0
    %3272 = vmatprep.subr.mxu0 0.0
    %3273 = vmatpush1.xpose.msra.mxu0 0.0
    %3274 = vmatprep.subr.mxu0 0.0
    %3275 = vmatpush1.xpose.msra.mxu0 0.0
    %3276 = vmatprep.subr.mxu0 0.0
    %3277 = vmatpush1.xpose.msra.mxu0 0.0
    %3278 = vmatprep.subr.mxu0 0.0
    %3279 = vmatpush1.xpose.msra.mxu0 0.0
    %3280 = vmatprep.subr.mxu0 0.0
    %3281 = vmatpush1.xpose.msra.mxu0 0.0
    %3282 = vmatprep.mubr.f32.mxu0 0.0
    %3283 = vmatmul.mubr.f32.gmra.mrb[0].mxu0 %v3214
    %v3284 = vpop.f32.mrb[0].mxu0
    %v3285 = vadd.f32 %v966, %v3284
    %v3286 = vpop.f32.mrb[0].mxu0
    %3287 = vdwg.mxu0
    %v3288 = vsel %vm363, %v3285, -inf
    %3289 = vmax.xlane.f32.xlu0 %v3288
    %v3290 = vpop.xlane.xlu0 %3289
    %v3291 = vsub.f32 %v3285, %v3290
    %v3292 = vmul.f32 %v3291, 1.442695
    %v3293 = vpow.pop %v3292
    %v3294 = vsel %vm363, %v3293, 0.0
    %3295 = vadd.xlane.f32.xlu0 %v3294
    %v3296 = vpop.xlane.xlu0 %3295
    %v3297 = vrcp.pop %v3296
    %v3298 = vmul.f32 %v3293, %v3297
    %3299 = vrot.lane.b32.xlu0 %v2202, 96
    %v3300 = vpop.permute.xlu0 %3299
    %v3303 = vsel %vm363, %v3298, 0
    %3305 = vmatprep.subr.mxu0 0.0
    %3306 = vmatpush1.msra.mxu0 %v3300
    %3307 = vmatprep.subr.mxu0 0.0
    %3308 = vmatpush1.msra.mxu0 0.0
    %3309 = vmatprep.subr.mxu0 0.0
    %3310 = vmatpush1.msra.mxu0 0.0
    %3311 = vmatprep.subr.mxu0 0.0
    %3312 = vmatpush1.msra.mxu0 0.0
    %3313 = vmatprep.subr.mxu0 0.0
    %3314 = vmatpush1.msra.mxu0 0.0
    %3315 = vmatprep.subr.mxu0 0.0
    %3316 = vmatpush1.msra.mxu0 0.0
    %3317 = vmatprep.subr.mxu0 0.0
    %3318 = vmatpush1.msra.mxu0 0.0
    %3319 = vmatprep.subr.mxu0 0.0
    %3320 = vmatpush1.msra.mxu0 0.0
    %3321 = vmatprep.subr.mxu0 0.0
    %3322 = vmatpush1.msra.mxu0 0.0
    %3323 = vmatprep.subr.mxu0 0.0
    %3324 = vmatpush1.msra.mxu0 0.0
    %3325 = vmatprep.subr.mxu0 0.0
    %3326 = vmatpush1.msra.mxu0 0.0
    %3327 = vmatprep.subr.mxu0 0.0
    %3328 = vmatpush1.msra.mxu0 0.0
    %3329 = vmatprep.subr.mxu0 0.0
    %3330 = vmatpush1.msra.mxu0 0.0
    %3331 = vmatprep.subr.mxu0 0.0
    %3332 = vmatpush1.msra.mxu0 0.0
    %3333 = vmatprep.subr.mxu0 0.0
    %3334 = vmatpush1.msra.mxu0 0.0
    %3335 = vmatprep.subr.mxu0 0.0
    %3336 = vmatpush1.msra.mxu0 0.0
    %3337 = vmatprep.subr.mxu0 0.0
    %3338 = vmatpush1.msra.mxu0 0.0
    %3339 = vmatprep.subr.mxu0 0.0
    %3340 = vmatpush1.msra.mxu0 0.0
    %3341 = vmatprep.subr.mxu0 0.0
    %3342 = vmatpush1.msra.mxu0 0.0
    %3343 = vmatprep.subr.mxu0 0.0
    %3344 = vmatpush1.msra.mxu0 0.0
    %3345 = vmatprep.subr.mxu0 0.0
    %3346 = vmatpush1.msra.mxu0 0.0
    %3347 = vmatprep.subr.mxu0 0.0
    %3348 = vmatpush1.msra.mxu0 0.0
    %3349 = vmatprep.subr.mxu0 0.0
    %3350 = vmatpush1.msra.mxu0 0.0
    %3351 = vmatprep.subr.mxu0 0.0
    %3352 = vmatpush1.msra.mxu0 0.0
    %3353 = vmatprep.subr.mxu0 0.0
    %3354 = vmatpush1.msra.mxu0 0.0
    %3355 = vmatprep.subr.mxu0 0.0
    %3356 = vmatpush1.msra.mxu0 0.0
    %3357 = vmatprep.subr.mxu0 0.0
    %3358 = vmatpush1.msra.mxu0 0.0
    %3359 = vmatprep.subr.mxu0 0.0
    %3360 = vmatpush1.msra.mxu0 0.0
    %3361 = vmatprep.subr.mxu0 0.0
    %3362 = vmatpush1.msra.mxu0 0.0
    %3363 = vmatprep.subr.mxu0 0.0
    %3364 = vmatpush1.msra.mxu0 0.0
    %3365 = vmatprep.subr.mxu0 0.0
    %3366 = vmatpush1.msra.mxu0 0.0
    %3367 = vmatprep.subr.mxu0 0.0
    %3368 = vmatpush1.msra.mxu0 0.0
    %3369 = vmatprep.mubr.f32.mxu0 0.0
    %3370 = vmatmul.mubr.f32.gmra.mrb[0].mxu0 %v3303
    %v3371 = vpop.f32.mrb[0].mxu0
    %v3372 = vadd.f32 0.0, %v3371
    %v3373 = vpop.f32.mrb[0].mxu0
    %3374 = vdwg.mxu0
    %3376 = vrot.lane.b32.xlu0 %v3372, 32
    %v3377 = vpop.permute.xlu0 %3376
    %3379 = vst.msk [vmem:[#allocation2 + $0x8] sm:$0xff] %vm790, %v3377
    %3380 = vrot.lane.b32.xlu0 %v2200, 80
    %v3381 = vpop.permute.xlu0 %3380
    %3382 = vrot.lane.b32.xlu0 %v2200, 16
    %v3383 = vpop.permute.xlu0 %3382
    %v3384 = vsel %vm288, %v3381, 0
    %v3386 = vsel %vm288, %v3383, 0
    %3388 = vmatprep.subr.mxu0 0.0
    %3389 = vmatpush1.xpose.msra.mxu0 %v3386
    %3390 = vmatprep.subr.mxu0 0.0
    %3391 = vmatpush1.xpose.msra.mxu0 0.0
    %3392 = vmatprep.subr.mxu0 0.0
    %3393 = vmatpush1.xpose.msra.mxu0 0.0
    %3394 = vmatprep.subr.mxu0 0.0
    %3395 = vmatpush1.xpose.msra.mxu0 0.0
    %3396 = vmatprep.subr.mxu0 0.0
    %3397 = vmatpush1.xpose.msra.mxu0 0.0
    %3398 = vmatprep.subr.mxu0 0.0
    %3399 = vmatpush1.xpose.msra.mxu0 0.0
    %3400 = vmatprep.subr.mxu0 0.0
    %3401 = vmatpush1.xpose.msra.mxu0 0.0
    %3402 = vmatprep.subr.mxu0 0.0
    %3403 = vmatpush1.xpose.msra.mxu0 0.0
    %3404 = vmatprep.subr.mxu0 0.0
    %3405 = vmatpush1.xpose.msra.mxu0 0.0
    %3406 = vmatprep.subr.mxu0 0.0
    %3407 = vmatpush1.xpose.msra.mxu0 0.0
    %3408 = vmatprep.subr.mxu0 0.0
    %3409 = vmatpush1.xpose.msra.mxu0 0.0
    %3410 = vmatprep.subr.mxu0 0.0
    %3411 = vmatpush1.xpose.msra.mxu0 0.0
    %3412 = vmatprep.subr.mxu0 0.0
    %3413 = vmatpush1.xpose.msra.mxu0 0.0
    %3414 = vmatprep.subr.mxu0 0.0
    %3415 = vmatpush1.xpose.msra.mxu0 0.0
    %3416 = vmatprep.subr.mxu0 0.0
    %3417 = vmatpush1.xpose.msra.mxu0 0.0
    %3418 = vmatprep.subr.mxu0 0.0
    %3419 = vmatpush1.xpose.msra.mxu0 0.0
    %3420 = vmatprep.subr.mxu0 0.0
    %3421 = vmatpush1.xpose.msra.mxu0 0.0
    %3422 = vmatprep.subr.mxu0 0.0
    %3423 = vmatpush1.xpose.msra.mxu0 0.0
    %3424 = vmatprep.subr.mxu0 0.0
    %3425 = vmatpush1.xpose.msra.mxu0 0.0
    %3426 = vmatprep.subr.mxu0 0.0
    %3427 = vmatpush1.xpose.msra.mxu0 0.0
    %3428 = vmatprep.subr.mxu0 0.0
    %3429 = vmatpush1.xpose.msra.mxu0 0.0
    %3430 = vmatprep.subr.mxu0 0.0
    %3431 = vmatpush1.xpose.msra.mxu0 0.0
    %3432 = vmatprep.subr.mxu0 0.0
    %3433 = vmatpush1.xpose.msra.mxu0 0.0
    %3434 = vmatprep.subr.mxu0 0.0
    %3435 = vmatpush1.xpose.msra.mxu0 0.0
    %3436 = vmatprep.subr.mxu0 0.0
    %3437 = vmatpush1.xpose.msra.mxu0 0.0
    %3438 = vmatprep.subr.mxu0 0.0
    %3439 = vmatpush1.xpose.msra.mxu0 0.0
    %3440 = vmatprep.subr.mxu0 0.0
    %3441 = vmatpush1.xpose.msra.mxu0 0.0
    %3442 = vmatprep.subr.mxu0 0.0
    %3443 = vmatpush1.xpose.msra.mxu0 0.0
    %3444 = vmatprep.subr.mxu0 0.0
    %3445 = vmatpush1.xpose.msra.mxu0 0.0
    %3446 = vmatprep.subr.mxu0 0.0
    %3447 = vmatpush1.xpose.msra.mxu0 0.0
    %3448 = vmatprep.subr.mxu0 0.0
    %3449 = vmatpush1.xpose.msra.mxu0 0.0
    %3450 = vmatprep.subr.mxu0 0.0
    %3451 = vmatpush1.xpose.msra.mxu0 0.0
    %3452 = vmatprep.mubr.f32.mxu0 0.0
    %3453 = vmatmul.mubr.f32.gmra.mrb[0].mxu0 %v3384
    %v3454 = vpop.f32.mrb[0].mxu0
    %v3455 = vadd.f32 %v966, %v3454
    %v3456 = vpop.f32.mrb[0].mxu0
    %3457 = vdwg.mxu0
    %v3458 = vsel %vm363, %v3455, -inf
    %3459 = vmax.xlane.f32.xlu0 %v3458
    %v3460 = vpop.xlane.xlu0 %3459
    %v3461 = vsub.f32 %v3455, %v3460
    %v3462 = vmul.f32 %v3461, 1.442695
    %v3463 = vpow.pop %v3462
    %v3464 = vsel %vm363, %v3463, 0.0
    %3465 = vadd.xlane.f32.xlu0 %v3464
    %v3466 = vpop.xlane.xlu0 %3465
    %v3467 = vrcp.pop %v3466
    %v3468 = vmul.f32 %v3463, %v3467
    %3469 = vrot.lane.b32.xlu0 %v2202, 80
    %v3470 = vpop.permute.xlu0 %3469
    %v3473 = vsel %vm363, %v3468, 0
    %3475 = vmatprep.subr.mxu0 0.0
    %3476 = vmatpush1.msra.mxu0 %v3470
    %3477 = vmatprep.subr.mxu0 0.0
    %3478 = vmatpush1.msra.mxu0 0.0
    %3479 = vmatprep.subr.mxu0 0.0
    %3480 = vmatpush1.msra.mxu0 0.0
    %3481 = vmatprep.subr.mxu0 0.0
    %3482 = vmatpush1.msra.mxu0 0.0
    %3483 = vmatprep.subr.mxu0 0.0
    %3484 = vmatpush1.msra.mxu0 0.0
    %3485 = vmatprep.subr.mxu0 0.0
    %3486 = vmatpush1.msra.mxu0 0.0
    %3487 = vmatprep.subr.mxu0 0.0
    %3488 = vmatpush1.msra.mxu0 0.0
    %3489 = vmatprep.subr.mxu0 0.0
    %3490 = vmatpush1.msra.mxu0 0.0
    %3491 = vmatprep.subr.mxu0 0.0
    %3492 = vmatpush1.msra.mxu0 0.0
    %3493 = vmatprep.subr.mxu0 0.0
    %3494 = vmatpush1.msra.mxu0 0.0
    %3495 = vmatprep.subr.mxu0 0.0
    %3496 = vmatpush1.msra.mxu0 0.0
    %3497 = vmatprep.subr.mxu0 0.0
    %3498 = vmatpush1.msra.mxu0 0.0
    %3499 = vmatprep.subr.mxu0 0.0
    %3500 = vmatpush1.msra.mxu0 0.0
    %3501 = vmatprep.subr.mxu0 0.0
    %3502 = vmatpush1.msra.mxu0 0.0
    %3503 = vmatprep.subr.mxu0 0.0
    %3504 = vmatpush1.msra.mxu0 0.0
    %3505 = vmatprep.subr.mxu0 0.0
    %3506 = vmatpush1.msra.mxu0 0.0
    %3507 = vmatprep.subr.mxu0 0.0
    %3508 = vmatpush1.msra.mxu0 0.0
    %3509 = vmatprep.subr.mxu0 0.0
    %3510 = vmatpush1.msra.mxu0 0.0
    %3511 = vmatprep.subr.mxu0 0.0
    %3512 = vmatpush1.msra.mxu0 0.0
    %3513 = vmatprep.subr.mxu0 0.0
    %3514 = vmatpush1.msra.mxu0 0.0
    %3515 = vmatprep.subr.mxu0 0.0
    %3516 = vmatpush1.msra.mxu0 0.0
    %3517 = vmatprep.subr.mxu0 0.0
    %3518 = vmatpush1.msra.mxu0 0.0
    %3519 = vmatprep.subr.mxu0 0.0
    %3520 = vmatpush1.msra.mxu0 0.0
    %3521 = vmatprep.subr.mxu0 0.0
    %3522 = vmatpush1.msra.mxu0 0.0
    %3523 = vmatprep.subr.mxu0 0.0
    %3524 = vmatpush1.msra.mxu0 0.0
    %3525 = vmatprep.subr.mxu0 0.0
    %3526 = vmatpush1.msra.mxu0 0.0
    %3527 = vmatprep.subr.mxu0 0.0
    %3528 = vmatpush1.msra.mxu0 0.0
    %3529 = vmatprep.subr.mxu0 0.0
    %3530 = vmatpush1.msra.mxu0 0.0
    %3531 = vmatprep.subr.mxu0 0.0
    %3532 = vmatpush1.msra.mxu0 0.0
    %3533 = vmatprep.subr.mxu0 0.0
    %3534 = vmatpush1.msra.mxu0 0.0
    %3535 = vmatprep.subr.mxu0 0.0
    %3536 = vmatpush1.msra.mxu0 0.0
    %3537 = vmatprep.subr.mxu0 0.0
    %3538 = vmatpush1.msra.mxu0 0.0
    %3539 = vmatprep.mubr.f32.mxu0 0.0
    %3540 = vmatmul.mubr.f32.gmra.mrb[0].mxu0 %v3473
    %v3541 = vpop.f32.mrb[0].mxu0
    %v3542 = vadd.f32 0.0, %v3541
    %v3543 = vpop.f32.mrb[0].mxu0
    %3544 = vdwg.mxu0
    %3546 = vrot.lane.b32.xlu0 %v3542, 48
    %v3547 = vpop.permute.xlu0 %3546
    %3549 = vst.msk [vmem:[#allocation2 + $0x8] sm:$0xff] %vm961, %v3547
    %v3550 = vld [vmem:[#allocation2] sm:$0xff]
    %v3551 = vld [vmem:[#allocation2 + $0x8] sm:$0xff]
    %s3552 = scalar_lea.vmem %s6, 64
    %v3553 = vld [vmem:[%s3552] sm:$0xff]
    %v3554 = vld [vmem:[%s3552 + $0x8] sm:$0xff]
    %v3555 = vld [vmem:[%s3552 + $0x10] sm:$0xff]
    %v3556 = vld [vmem:[%s3552 + $0x18] sm:$0xff]
    %v3557 = vld [vmem:[%s3552 + $0x20] sm:$0xff]
    %v3558 = vld [vmem:[%s3552 + $0x28] sm:$0xff]
    %v3559 = vld [vmem:[%s3552 + $0x30] sm:$0xff]
    %v3560 = vld [vmem:[%s3552 + $0x38] sm:$0xff]
    %s3561 = scalar_lea.vmem %s7, 1
    %v3562 = vld [vmem:[%s3561] sm:$0x1]
    %v3564 = vlaneseq
    %v3565 = vshrl.u32 %v3564, 7
    %v3566 = vsub.s32 0, %v3565
    %v3567 = vrot.slane %v3562, %v3566
    %v3570 = vsel %vm126, %v3550, 0
    %v3573 = vsel %vm126, %v3551, 0
    %3575 = vmatprep.subr.mxu0 0.0
    %3576 = vmatpush1.msra.mxu0 %v3553
    %3577 = vmatprep.subr.mxu0 0.0
    %3578 = vmatpush1.msra.mxu0 %v3554
    %3579 = vmatprep.subr.mxu0 0.0
    %3580 = vmatpush1.msra.mxu0 %v3555
    %3581 = vmatprep.subr.mxu0 0.0
    %3582 = vmatpush1.msra.mxu0 %v3556
    %3583 = vmatprep.subr.mxu0 0.0
    %3584 = vmatpush1.msra.mxu0 %v3557
    %3585 = vmatprep.subr.mxu0 0.0
    %3586 = vmatpush1.msra.mxu0 %v3558
    %3587 = vmatprep.subr.mxu0 0.0
    %3588 = vmatpush1.msra.mxu0 %v3559
    %3589 = vmatprep.subr.mxu0 0.0
    %3590 = vmatpush1.msra.mxu0 %v3560
    %3591 = vmatprep.subr.mxu0 0.0
    %3592 = vmatpush1.msra.mxu0 0.0
    %3593 = vmatprep.subr.mxu0 0.0
    %3594 = vmatpush1.msra.mxu0 0.0
    %3595 = vmatprep.subr.mxu0 0.0
    %3596 = vmatpush1.msra.mxu0 0.0
    %3597 = vmatprep.subr.mxu0 0.0
    %3598 = vmatpush1.msra.mxu0 0.0
    %3599 = vmatprep.subr.mxu0 0.0
    %3600 = vmatpush1.msra.mxu0 0.0
    %3601 = vmatprep.subr.mxu0 0.0
    %3602 = vmatpush1.msra.mxu0 0.0
    %3603 = vmatprep.subr.mxu0 0.0
    %3604 = vmatpush1.msra.mxu0 0.0
    %3605 = vmatprep.subr.mxu0 0.0
    %3606 = vmatpush1.msra.mxu0 0.0
    %3607 = vmatprep.subr.mxu0 0.0
    %3608 = vmatpush1.msra.mxu0 0.0
    %3609 = vmatprep.subr.mxu0 0.0
    %3610 = vmatpush1.msra.mxu0 0.0
    %3611 = vmatprep.subr.mxu0 0.0
    %3612 = vmatpush1.msra.mxu0 0.0
    %3613 = vmatprep.subr.mxu0 0.0
    %3614 = vmatpush1.msra.mxu0 0.0
    %3615 = vmatprep.subr.mxu0 0.0
    %3616 = vmatpush1.msra.mxu0 0.0
    %3617 = vmatprep.subr.mxu0 0.0
    %3618 = vmatpush1.msra.mxu0 0.0
    %3619 = vmatprep.subr.mxu0 0.0
    %3620 = vmatpush1.msra.mxu0 0.0
    %3621 = vmatprep.subr.mxu0 0.0
    %3622 = vmatpush1.msra.mxu0 0.0
    %3623 = vmatprep.subr.mxu0 0.0
    %3624 = vmatpush1.msra.mxu0 0.0
    %3625 = vmatprep.subr.mxu0 0.0
    %3626 = vmatpush1.msra.mxu0 0.0
    %3627 = vmatprep.subr.mxu0 0.0
    %3628 = vmatpush1.msra.mxu0 0.0
    %3629 = vmatprep.subr.mxu0 0.0
    %3630 = vmatpush1.msra.mxu0 0.0
    %3631 = vmatprep.subr.mxu0 0.0
    %3632 = vmatpush1.msra.mxu0 0.0
    %3633 = vmatprep.subr.mxu0 0.0
    %3634 = vmatpush1.msra.mxu0 0.0
    %3635 = vmatprep.subr.mxu0 0.0
    %3636 = vmatpush1.msra.mxu0 0.0
    %3637 = vmatprep.subr.mxu0 0.0
    %3638 = vmatpush1.msra.mxu0 0.0
    %3639 = vmatprep.mubr.f32.mxu0 0.0
    %3640 = vmatmul.mubr.f32.gmra.mrb[0].mxu0 %v3570
    %v3641 = vpop.f32.mrb[0].mxu0
    %v3642 = vadd.f32 %v3567, %v3641
    %v3643 = vpop.f32.mrb[0].mxu0
    %3644 = vmatprep.mubr.f32.mxu0 0.0
    %3645 = vmatmul.mubr.f32.gmra.mrb[0].mxu0 %v3573
    %v3646 = vpop.f32.mrb[0].mxu0
    %v3647 = vadd.f32 %v3567, %v3646
    %v3648 = vpop.f32.mrb[0].mxu0
    %3649 = vdwg.mxu0
    %v3650 = vadd.f32 %v3642, %v2089
    %v3651 = vadd.f32 %v3647, %v2090
    %s3652 = scalar_lea.vmem %s8, 1
    %v3653 = vld [vmem:[%s3652] sm:$0x1]
    %s3654 = scalar_lea.vmem %s9, 1
    %v3655 = vld [vmem:[%s3654] sm:$0x1]
    %v3656 = vsel %vm126, %v3650, 0.0
    %3657 = vadd.xlane.f32.xlu0 %v3656
    %v3658 = vpop.xlane.xlu0 %3657
    %v3659 = vsel %vm126, %v3651, 0.0
    %3660 = vadd.xlane.f32.xlu0 %v3659
    %v3661 = vpop.xlane.xlu0 %3660
    %v3662 = vmul.f32 %v3658, %v133
    %v3663 = vmul.f32 %v3661, %v133
    %v3664 = vsub.f32 %v3650, %v3662
    %v3665 = vsub.f32 %v3651, %v3663
    %v3666 = vmul.f32 %v3664, %v3664
    %v3667 = vmul.f32 %v3665, %v3665
    %v3668 = vsel %vm126, %v3666, 0.0
    %3669 = vadd.xlane.f32.xlu0 %v3668
    %v3670 = vpop.xlane.xlu0 %3669
    %v3671 = vsel %vm126, %v3667, 0.0
    %3672 = vadd.xlane.f32.xlu0 %v3671
    %v3673 = vpop.xlane.xlu0 %3672
    %v3674 = vmul.f32 %v3670, %v133
    %v3675 = vmul.f32 %v3673, %v133
    %v3676 = vadd.f32 %v3674, 1e-12
    %v3677 = vadd.f32 %v3675, 1e-12
    %v3678 = vrsqrt.pop %v3676
    %v3679 = vrsqrt.pop %v3677
    %v3680 = vmul.f32 %v3664, %v3678
    %v3681 = vmul.f32 %v3665, %v3679
    %v3683 = vlaneseq
    %v3684 = vshrl.u32 %v3683, 7
    %v3685 = vsub.s32 0, %v3684
    %v3686 = vrot.slane %v3653, %v3685
    %v3688 = vmul.f32 %v3680, %v3686
    %v3689 = vmul.f32 %v3681, %v3686
    %v3691 = vlaneseq
    %v3692 = vshrl.u32 %v3691, 7
    %v3693 = vsub.s32 0, %v3692
    %v3694 = vrot.slane %v3655, %v3693
    %v3696 = vadd.f32 %v3688, %v3694
    %v3697 = vadd.f32 %v3689, %v3694
    %s3698 = scalar_lea.vmem [#allocation4], 128
    %v3699 = vld [vmem:[%s3698] sm:$0xff]
    %v3700 = vld [vmem:[%s3698 + $0x8] sm:$0xff]
    %v3701 = vld [vmem:[%s3698 + $0x10] sm:$0xff]
    %v3702 = vld [vmem:[%s3698 + $0x18] sm:$0xff]
    %v3703 = vld [vmem:[%s3698 + $0x20] sm:$0xff]
    %v3704 = vld [vmem:[%s3698 + $0x28] sm:$0xff]
    %v3705 = vld [vmem:[%s3698 + $0x30] sm:$0xff]
    %v3706 = vld [vmem:[%s3698 + $0x38] sm:$0xff]
    %v3707 = vld [vmem:[%s3698 + $0x40] sm:$0xff]
    %v3708 = vld [vmem:[%s3698 + $0x48] sm:$0xff]
    %v3709 = vld [vmem:[%s3698 + $0x50] sm:$0xff]
    %v3710 = vld [vmem:[%s3698 + $0x58] sm:$0xff]
    %v3711 = vld [vmem:[%s3698 + $0x60] sm:$0xff]
    %v3712 = vld [vmem:[%s3698 + $0x68] sm:$0xff]
    %v3713 = vld [vmem:[%s3698 + $0x70] sm:$0xff]
    %v3714 = vld [vmem:[%s3698 + $0x78] sm:$0xff]
    %s3715 = scalar_lea.vmem %s11, 2
    %v3716 = vld [vmem:[%s3715] sm:$0x3]
    %v3718 = vlaneseq
    %v3719 = vshrl.u32 %v3718, 7
    %v3720 = vsub.s32 0, %v3719
    %v3721 = vrot.slane %v3716, %v3720
    %v3722 = vlaneseq
    %v3723 = vshrl.u32 %v3722, 7
    %v3724 = vsub.s32 1, %v3723
    %v3725 = vrot.slane %v3716, %v3724
    %v3729 = vsel %vm126, %v3696, 0
    %v3732 = vsel %vm126, %v3697, 0
    %3734 = vmatprep.subr.mxu0 %v3700
    %3735 = vmatpush1.msra.mxu0 %v3699
    %3736 = vmatprep.subr.mxu0 %v3702
    %3737 = vmatpush1.msra.mxu0 %v3701
    %3738 = vmatprep.subr.mxu0 %v3704
    %3739 = vmatpush1.msra.mxu0 %v3703
    %3740 = vmatprep.subr.mxu0 %v3706
    %3741 = vmatpush1.msra.mxu0 %v3705
    %3742 = vmatprep.subr.mxu0 %v3708
    %3743 = vmatpush1.msra.mxu0 %v3707
    %3744 = vmatprep.subr.mxu0 %v3710
    %3745 = vmatpush1.msra.mxu0 %v3709
    %3746 = vmatprep.subr.mxu0 %v3712
    %3747 = vmatpush1.msra.mxu0 %v3711
    %3748 = vmatprep.subr.mxu0 %v3714
    %3749 = vmatpush1.msra.mxu0 %v3713
    %3750 = vmatprep.subr.mxu0 0.0
    %3751 = vmatpush1.msra.mxu0 0.0
    %3752 = vmatprep.subr.mxu0 0.0
    %3753 = vmatpush1.msra.mxu0 0.0
    %3754 = vmatprep.subr.mxu0 0.0
    %3755 = vmatpush1.msra.mxu0 0.0
    %3756 = vmatprep.subr.mxu0 0.0
    %3757 = vmatpush1.msra.mxu0 0.0
    %3758 = vmatprep.subr.mxu0 0.0
    %3759 = vmatpush1.msra.mxu0 0.0
    %3760 = vmatprep.subr.mxu0 0.0
    %3761 = vmatpush1.msra.mxu0 0.0
    %3762 = vmatprep.subr.mxu0 0.0
    %3763 = vmatpush1.msra.mxu0 0.0
    %3764 = vmatprep.subr.mxu0 0.0
    %3765 = vmatpush1.msra.mxu0 0.0
    %3766 = vmatprep.subr.mxu0 0.0
    %3767 = vmatpush1.msra.mxu0 0.0
    %3768 = vmatprep.subr.mxu0 0.0
    %3769 = vmatpush1.msra.mxu0 0.0
    %3770 = vmatprep.subr.mxu0 0.0
    %3771 = vmatpush1.msra.mxu0 0.0
    %3772 = vmatprep.subr.mxu0 0.0
    %3773 = vmatpush1.msra.mxu0 0.0
    %3774 = vmatprep.subr.mxu0 0.0
    %3775 = vmatpush1.msra.mxu0 0.0
    %3776 = vmatprep.subr.mxu0 0.0
    %3777 = vmatpush1.msra.mxu0 0.0
    %3778 = vmatprep.subr.mxu0 0.0
    %3779 = vmatpush1.msra.mxu0 0.0
    %3780 = vmatprep.subr.mxu0 0.0
    %3781 = vmatpush1.msra.mxu0 0.0
    %3782 = vmatprep.subr.mxu0 0.0
    %3783 = vmatpush1.msra.mxu0 0.0
    %3784 = vmatprep.subr.mxu0 0.0
    %3785 = vmatpush1.msra.mxu0 0.0
    %3786 = vmatprep.subr.mxu0 0.0
    %3787 = vmatpush1.msra.mxu0 0.0
    %3788 = vmatprep.subr.mxu0 0.0
    %3789 = vmatpush1.msra.mxu0 0.0
    %3790 = vmatprep.subr.mxu0 0.0
    %3791 = vmatpush1.msra.mxu0 0.0
    %3792 = vmatprep.subr.mxu0 0.0
    %3793 = vmatpush1.msra.mxu0 0.0
    %3794 = vmatprep.subr.mxu0 0.0
    %3795 = vmatpush1.msra.mxu0 0.0
    %3796 = vmatprep.subr.mxu0 0.0
    %3797 = vmatpush1.msra.mxu0 0.0
    %3798 = vmatprep.mubr.f32.mxu0 0.0
    %3799 = vmatmul.mubr.f32.gmra.mrb[0].mxu0 %v3729
    %v3800 = vpop.f32.mrb[0].mxu0
    %v3801 = vadd.f32 %v3721, %v3800
    %v3802 = vpop.f32.mrb[0].mxu0
    %v3803 = vadd.f32 %v3725, %v3802
    %3804 = vmatprep.mubr.f32.mxu0 0.0
    %3805 = vmatmul.mubr.f32.gmra.mrb[0].mxu0 %v3732
    %v3806 = vpop.f32.mrb[0].mxu0
    %v3807 = vadd.f32 %v3721, %v3806
    %v3808 = vpop.f32.mrb[0].mxu0
    %v3809 = vadd.f32 %v3725, %v3808
    %3810 = vdwg.mxu0
    %v3811 = vmul.f32 %v3801, 0.5
    %v3812 = vmul.f32 %v3803, 0.5
    %v3813 = vmul.f32 %v3807, 0.5
    %v3814 = vmul.f32 %v3809, 0.5
    %v3815 = vmul.f32 %v3801, 0.044715
    %v3816 = vmul.f32 %v3803, 0.044715
    %v3817 = vmul.f32 %v3807, 0.044715
    %v3818 = vmul.f32 %v3809, 0.044715
    %v3819 = vmul.f32 %v3815, %v3801
    %v3820 = vmul.f32 %v3816, %v3803
    %v3821 = vmul.f32 %v3817, %v3807
    %v3822 = vmul.f32 %v3818, %v3809
    %v3823 = vmul.f32 %v3819, %v3801
    %v3824 = vmul.f32 %v3820, %v3803
    %v3825 = vmul.f32 %v3821, %v3807
    %v3826 = vmul.f32 %v3822, %v3809
    %v3827 = vadd.f32 %v3801, %v3823
    %v3828 = vadd.f32 %v3803, %v3824
    %v3829 = vadd.f32 %v3807, %v3825
    %v3830 = vadd.f32 %v3809, %v3826
    %v3831 = vmul.f32 %v3827, 0.7978846
    %v3832 = vmul.f32 %v3828, 0.7978846
    %v3833 = vmul.f32 %v3829, 0.7978846
    %v3834 = vmul.f32 %v3830, 0.7978846
    %v3835 = vtanh.pop %v3831
    %v3836 = vtanh.pop %v3832
    %v3837 = vtanh.pop %v3833
    %v3838 = vtanh.pop %v3834
    %v3839 = vadd.f32 %v3835, 1.0
    %v3840 = vadd.f32 %v3836, 1.0
    %v3841 = vadd.f32 %v3837, 1.0
    %v3842 = vadd.f32 %v3838, 1.0
    %v3843 = vmul.f32 %v3811, %v3839
    %v3844 = vmul.f32 %v3812, %v3840
    %v3845 = vmul.f32 %v3813, %v3841
    %v3846 = vmul.f32 %v3814, %v3842
    %s3847 = scalar_lea.vmem [#allocation7], 256
    %v3848 = vld [vmem:[%s3847] sm:$0xff]
    %v3849 = vld [vmem:[%s3847 + $0x8] sm:$0xff]
    %v3850 = vld [vmem:[%s3847 + $0x10] sm:$0xff]
    %v3851 = vld [vmem:[%s3847 + $0x18] sm:$0xff]
    %v3852 = vld [vmem:[%s3847 + $0x20] sm:$0xff]
    %v3853 = vld [vmem:[%s3847 + $0x28] sm:$0xff]
    %v3854 = vld [vmem:[%s3847 + $0x30] sm:$0xff]
    %v3855 = vld [vmem:[%s3847 + $0x38] sm:$0xff]
    %v3856 = vld [vmem:[%s3847 + $0x40] sm:$0xff]
    %v3857 = vld [vmem:[%s3847 + $0x48] sm:$0xff]
    %v3858 = vld [vmem:[%s3847 + $0x50] sm:$0xff]
    %v3859 = vld [vmem:[%s3847 + $0x58] sm:$0xff]
    %v3860 = vld [vmem:[%s3847 + $0x60] sm:$0xff]
    %v3861 = vld [vmem:[%s3847 + $0x68] sm:$0xff]
    %v3862 = vld [vmem:[%s3847 + $0x70] sm:$0xff]
    %v3863 = vld [vmem:[%s3847 + $0x78] sm:$0xff]
    %v3864 = vld [vmem:[%s3847 + $0x80] sm:$0xff]
    %v3865 = vld [vmem:[%s3847 + $0x88] sm:$0xff]
    %v3866 = vld [vmem:[%s3847 + $0x90] sm:$0xff]
    %v3867 = vld [vmem:[%s3847 + $0x98] sm:$0xff]
    %v3868 = vld [vmem:[%s3847 + $0xa0] sm:$0xff]
    %v3869 = vld [vmem:[%s3847 + $0xa8] sm:$0xff]
    %v3870 = vld [vmem:[%s3847 + $0xb0] sm:$0xff]
    %v3871 = vld [vmem:[%s3847 + $0xb8] sm:$0xff]
    %v3872 = vld [vmem:[%s3847 + $0xc0] sm:$0xff]
    %v3873 = vld [vmem:[%s3847 + $0xc8] sm:$0xff]
    %v3874 = vld [vmem:[%s3847 + $0xd0] sm:$0xff]
    %v3875 = vld [vmem:[%s3847 + $0xd8] sm:$0xff]
    %v3876 = vld [vmem:[%s3847 + $0xe0] sm:$0xff]
    %v3877 = vld [vmem:[%s3847 + $0xe8] sm:$0xff]
    %v3878 = vld [vmem:[%s3847 + $0xf0] sm:$0xff]
    %v3879 = vld [vmem:[%s3847 + $0xf8] sm:$0xff]
    %s3880 = scalar_lea.vmem %s13, 1
    %v3881 = vld [vmem:[%s3880] sm:$0x1]
    %v3883 = vlaneseq
    %v3884 = vshrl.u32 %v3883, 7
    %v3885 = vsub.s32 0, %v3884
    %v3886 = vrot.slane %v3881, %v3885
    %3888 = vmatprep.subr.mxu0 0.0
    %3889 = vmatpush1.msra.mxu0 %v3848
    %3890 = vmatprep.subr.mxu0 0.0
    %3891 = vmatpush1.msra.mxu0 %v3849
    %3892 = vmatprep.subr.mxu0 0.0
    %3893 = vmatpush1.msra.mxu0 %v3850
    %3894 = vmatprep.subr.mxu0 0.0
    %3895 = vmatpush1.msra.mxu0 %v3851
    %3896 = vmatprep.subr.mxu0 0.0
    %3897 = vmatpush1.msra.mxu0 %v3852
    %3898 = vmatprep.subr.mxu0 0.0
    %3899 = vmatpush1.msra.mxu0 %v3853
    %3900 = vmatprep.subr.mxu0 0.0
    %3901 = vmatpush1.msra.mxu0 %v3854
    %3902 = vmatprep.subr.mxu0 0.0
    %3903 = vmatpush1.msra.mxu0 %v3855
    %3904 = vmatprep.subr.mxu0 0.0
    %3905 = vmatpush1.msra.mxu0 %v3856
    %3906 = vmatprep.subr.mxu0 0.0
    %3907 = vmatpush1.msra.mxu0 %v3857
    %3908 = vmatprep.subr.mxu0 0.0
    %3909 = vmatpush1.msra.mxu0 %v3858
    %3910 = vmatprep.subr.mxu0 0.0
    %3911 = vmatpush1.msra.mxu0 %v3859
    %3912 = vmatprep.subr.mxu0 0.0
    %3913 = vmatpush1.msra.mxu0 %v3860
    %3914 = vmatprep.subr.mxu0 0.0
    %3915 = vmatpush1.msra.mxu0 %v3861
    %3916 = vmatprep.subr.mxu0 0.0
    %3917 = vmatpush1.msra.mxu0 %v3862
    %3918 = vmatprep.subr.mxu0 0.0
    %3919 = vmatpush1.msra.mxu0 %v3863
    %3920 = vmatprep.subr.mxu0 0.0
    %3921 = vmatpush1.msra.mxu0 %v3864
    %3922 = vmatprep.subr.mxu0 0.0
    %3923 = vmatpush1.msra.mxu0 %v3865
    %3924 = vmatprep.subr.mxu0 0.0
    %3925 = vmatpush1.msra.mxu0 %v3866
    %3926 = vmatprep.subr.mxu0 0.0
    %3927 = vmatpush1.msra.mxu0 %v3867
    %3928 = vmatprep.subr.mxu0 0.0
    %3929 = vmatpush1.msra.mxu0 %v3868
    %3930 = vmatprep.subr.mxu0 0.0
    %3931 = vmatpush1.msra.mxu0 %v3869
    %3932 = vmatprep.subr.mxu0 0.0
    %3933 = vmatpush1.msra.mxu0 %v3870
    %3934 = vmatprep.subr.mxu0 0.0
    %3935 = vmatpush1.msra.mxu0 %v3871
    %3936 = vmatprep.subr.mxu0 0.0
    %3937 = vmatpush1.msra.mxu0 %v3872
    %3938 = vmatprep.subr.mxu0 0.0
    %3939 = vmatpush1.msra.mxu0 %v3873
    %3940 = vmatprep.subr.mxu0 0.0
    %3941 = vmatpush1.msra.mxu0 %v3874
    %3942 = vmatprep.subr.mxu0 0.0
    %3943 = vmatpush1.msra.mxu0 %v3875
    %3944 = vmatprep.subr.mxu0 0.0
    %3945 = vmatpush1.msra.mxu0 %v3876
    %3946 = vmatprep.subr.mxu0 0.0
    %3947 = vmatpush1.msra.mxu0 %v3877
    %3948 = vmatprep.subr.mxu0 0.0
    %3949 = vmatpush1.msra.mxu0 %v3878
    %3950 = vmatprep.subr.mxu0 0.0
    %3951 = vmatpush1.msra.mxu0 %v3879
    %3952 = vmatprep.mubr.f32.mxu0 %v3844
    %3953 = vmatmul.mubr.f32.gmra.mrb[0].mxu0 %v3843
    %v3954 = vpop.f32.mrb[0].mxu0
    %v3955 = vadd.f32 %v3886, %v3954
    %v3956 = vpop.f32.mrb[0].mxu0
    %3957 = vmatprep.mubr.f32.mxu0 %v3846
    %3958 = vmatmul.mubr.f32.gmra.mrb[0].mxu0 %v3845
    %v3959 = vpop.f32.mrb[0].mxu0
    %v3960 = vadd.f32 %v3886, %v3959
    %v3961 = vpop.f32.mrb[0].mxu0
    %3962 = vdwg.mxu0
    %v3963 = vadd.f32 %v3955, %v3696
    %v3964 = vadd.f32 %v3960, %v3697
    %s3965 = scalar_lea.vmem %s14, 1
    %v3966 = vld [vmem:[%s3965] sm:$0x1]
    %s3967 = scalar_lea.vmem %s15, 1
    %v3968 = vld [vmem:[%s3967] sm:$0x1]
    %v3969 = vsel %vm126, %v3963, 0.0
    %3970 = vadd.xlane.f32.xlu0 %v3969
    %v3971 = vpop.xlane.xlu0 %3970
    %v3972 = vsel %vm126, %v3964, 0.0
    %3973 = vadd.xlane.f32.xlu0 %v3972
    %v3974 = vpop.xlane.xlu0 %3973
    %v3975 = vmul.f32 %v3971, %v133
    %v3976 = vmul.f32 %v3974, %v133
    %v3977 = vsub.f32 %v3963, %v3975
    %v3978 = vsub.f32 %v3964, %v3976
    %v3979 = vmul.f32 %v3977, %v3977
    %v3980 = vmul.f32 %v3978, %v3978
    %v3981 = vsel %vm126, %v3979, 0.0
    %3982 = vadd.xlane.f32.xlu0 %v3981
    %v3983 = vpop.xlane.xlu0 %3982
    %v3984 = vsel %vm126, %v3980, 0.0
    %3985 = vadd.xlane.f32.xlu0 %v3984
    %v3986 = vpop.xlane.xlu0 %3985
    %v3987 = vmul.f32 %v3983, %v133
    %v3988 = vmul.f32 %v3986, %v133
    %v3989 = vadd.f32 %v3987, 1e-12
    %v3990 = vadd.f32 %v3988, 1e-12
    %v3991 = vrsqrt.pop %v3989
    %v3992 = vrsqrt.pop %v3990
    %v3993 = vmul.f32 %v3977, %v3991
    %v3994 = vmul.f32 %v3978, %v3992
    %v3996 = vlaneseq
    %v3997 = vshrl.u32 %v3996, 7
    %v3998 = vsub.s32 0, %v3997
    %v3999 = vrot.slane %v3966, %v3998
    %v4001 = vmul.f32 %v3993, %v3999
    %v4002 = vmul.f32 %v3994, %v3999
    %v4004 = vlaneseq
    %v4005 = vshrl.u32 %v4004, 7
    %v4006 = vsub.s32 0, %v4005
    %v4007 = vrot.slane %v3968, %v4006
    %v4009 = vadd.f32 %v4001, %v4007
    %v4010 = vadd.f32 %v4002, %v4007
    %vm4011 = vcmask 516096
    %4012 = vst.msk [vmem:[#allocation3] sm:$0x1] %vm4011, %v4009
    %4013 = vst.msk [vmem:[#allocation3 + $0x1] sm:$0x1] %vm4011, %v4010
    %v4014 = vld [vmem:[#allocation3] sm:$0x3]
    %v4015 = vld [vmem:[#allocation9] sm:$0xff]
    %v4016 = vld [vmem:[#allocation9 + $0x8] sm:$0xff]
    %v4017 = vld [vmem:[#allocation9 + $0x10] sm:$0xff]
    %v4018 = vld [vmem:[#allocation9 + $0x18] sm:$0xff]
    %v4019 = vld [vmem:[#allocation9 + $0x20] sm:$0xff]
    %v4020 = vld [vmem:[#allocation9 + $0x28] sm:$0xff]
    %v4021 = vld [vmem:[#allocation9 + $0x30] sm:$0xff]
    %v4022 = vld [vmem:[#allocation9 + $0x38] sm:$0xff]
    %v4023 = vld [vmem:[%s17] sm:$0x1]
    %v4025 = vlaneseq
    %v4026 = vshrl.u32 %v4025, 7
    %v4027 = vsub.s32 0, %v4026
    %v4028 = vrot.slane %v4023, %v4027
    %v4031 = vsel %vm126, %v4014, 0
    %4033 = vmatprep.subr.mxu0 0.0
    %4034 = vmatpush1.msra.mxu0 %v4015
    %4035 = vmatprep.subr.mxu0 0.0
    %4036 = vmatpush1.msra.mxu0 %v4016
    %4037 = vmatprep.subr.mxu0 0.0
    %4038 = vmatpush1.msra.mxu0 %v4017
    %4039 = vmatprep.subr.mxu0 0.0
    %4040 = vmatpush1.msra.mxu0 %v4018
    %4041 = vmatprep.subr.mxu0 0.0
    %4042 = vmatpush1.msra.mxu0 %v4019
    %4043 = vmatprep.subr.mxu0 0.0
    %4044 = vmatpush1.msra.mxu0 %v4020
    %4045 = vmatprep.subr.mxu0 0.0
    %4046 = vmatpush1.msra.mxu0 %v4021
    %4047 = vmatprep.subr.mxu0 0.0
    %4048 = vmatpush1.msra.mxu0 %v4022
    %4049 = vmatprep.subr.mxu0 0.0
    %4050 = vmatpush1.msra.mxu0 0.0
    %4051 = vmatprep.subr.mxu0 0.0
    %4052 = vmatpush1.msra.mxu0 0.0
    %4053 = vmatprep.subr.mxu0 0.0
    %4054 = vmatpush1.msra.mxu0 0.0
    %4055 = vmatprep.subr.mxu0 0.0
    %4056 = vmatpush1.msra.mxu0 0.0
    %4057 = vmatprep.subr.mxu0 0.0
    %4058 = vmatpush1.msra.mxu0 0.0
    %4059 = vmatprep.subr.mxu0 0.0
    %4060 = vmatpush1.msra.mxu0 0.0
    %4061 = vmatprep.subr.mxu0 0.0
    %4062 = vmatpush1.msra.mxu0 0.0
    %4063 = vmatprep.subr.mxu0 0.0
    %4064 = vmatpush1.msra.mxu0 0.0
    %4065 = vmatprep.subr.mxu0 0.0
    %4066 = vmatpush1.msra.mxu0 0.0
    %4067 = vmatprep.subr.mxu0 0.0
    %4068 = vmatpush1.msra.mxu0 0.0
    %4069 = vmatprep.subr.mxu0 0.0
    %4070 = vmatpush1.msra.mxu0 0.0
    %4071 = vmatprep.subr.mxu0 0.0
    %4072 = vmatpush1.msra.mxu0 0.0
    %4073 = vmatprep.subr.mxu0 0.0
    %4074 = vmatpush1.msra.mxu0 0.0
    %4075 = vmatprep.subr.mxu0 0.0
    %4076 = vmatpush1.msra.mxu0 0.0
    %4077 = vmatprep.subr.mxu0 0.0
    %4078 = vmatpush1.msra.mxu0 0.0
    %4079 = vmatprep.subr.mxu0 0.0
    %4080 = vmatpush1.msra.mxu0 0.0
    %4081 = vmatprep.subr.mxu0 0.0
    %4082 = vmatpush1.msra.mxu0 0.0
    %4083 = vmatprep.subr.mxu0 0.0
    %4084 = vmatpush1.msra.mxu0 0.0
    %4085 = vmatprep.subr.mxu0 0.0
    %4086 = vmatpush1.msra.mxu0 0.0
    %4087 = vmatprep.subr.mxu0 0.0
    %4088 = vmatpush1.msra.mxu0 0.0
    %4089 = vmatprep.subr.mxu0 0.0
    %4090 = vmatpush1.msra.mxu0 0.0
    %4091 = vmatprep.subr.mxu0 0.0
    %4092 = vmatpush1.msra.mxu0 0.0
    %4093 = vmatprep.subr.mxu0 0.0
    %4094 = vmatpush1.msra.mxu0 0.0
    %4095 = vmatprep.subr.mxu0 0.0
    %4096 = vmatpush1.msra.mxu0 0.0
    %4097 = vmatprep.mubr.f32.mxu0 0.0
    %4098 = vmatmul.mubr.f32.gmra.mrb[0].mxu0 %v4031
    %v4099 = vpop.f32.mrb[0].mxu0
    %v4100 = vadd.f32 %v4028, %v4099
    %v4101 = vpop.f32.mrb[0].mxu0
    %4102 = vdwg.mxu0
    %v4103 = vtanh.pop %v4100
    %v4104 = vld [vmem:[#allocation10] sm:$0xff]
    %v4105 = vld [vmem:[#allocation10 + $0x8] sm:$0xff]
    %v4106 = vld [vmem:[#allocation10 + $0x10] sm:$0xff]
    %v4107 = vld [vmem:[#allocation10 + $0x18] sm:$0xff]
    %v4108 = vld [vmem:[#allocation10 + $0x20] sm:$0xff]
    %v4109 = vld [vmem:[#allocation10 + $0x28] sm:$0xff]
    %v4110 = vld [vmem:[#allocation10 + $0x30] sm:$0xff]
    %v4111 = vld [vmem:[#allocation10 + $0x38] sm:$0xff]
    %v4112 = vld [vmem:[%s19] sm:$0x1]
    %v4114 = vlaneseq
    %v4115 = vshrl.u32 %v4114, 7
    %v4116 = vsub.s32 0, %v4115
    %v4117 = vrot.slane %v4112, %v4116
    %v4120 = vsel %vm126, %v4103, 0
    %4122 = vmatprep.subr.mxu0 0.0
    %4123 = vmatpush1.msra.mxu0 %v4104
    %4124 = vmatprep.subr.mxu0 0.0
    %4125 = vmatpush1.msra.mxu0 %v4105
    %4126 = vmatprep.subr.mxu0 0.0
    %4127 = vmatpush1.msra.mxu0 %v4106
    %4128 = vmatprep.subr.mxu0 0.0
    %4129 = vmatpush1.msra.mxu0 %v4107
    %4130 = vmatprep.subr.mxu0 0.0
    %4131 = vmatpush1.msra.mxu0 %v4108
    %4132 = vmatprep.subr.mxu0 0.0
    %4133 = vmatpush1.msra.mxu0 %v4109
    %4134 = vmatprep.subr.mxu0 0.0
    %4135 = vmatpush1.msra.mxu0 %v4110
    %4136 = vmatprep.subr.mxu0 0.0
    %4137 = vmatpush1.msra.mxu0 %v4111
    %4138 = vmatprep.subr.mxu0 0.0
    %4139 = vmatpush1.msra.mxu0 0.0
    %4140 = vmatprep.subr.mxu0 0.0
    %4141 = vmatpush1.msra.mxu0 0.0
    %4142 = vmatprep.subr.mxu0 0.0
    %4143 = vmatpush1.msra.mxu0 0.0
    %4144 = vmatprep.subr.mxu0 0.0
    %4145 = vmatpush1.msra.mxu0 0.0
    %4146 = vmatprep.subr.mxu0 0.0
    %4147 = vmatpush1.msra.mxu0 0.0
    %4148 = vmatprep.subr.mxu0 0.0
    %4149 = vmatpush1.msra.mxu0 0.0
    %4150 = vmatprep.subr.mxu0 0.0
    %4151 = vmatpush1.msra.mxu0 0.0
    %4152 = vmatprep.subr.mxu0 0.0
    %4153 = vmatpush1.msra.mxu0 0.0
    %4154 = vmatprep.subr.mxu0 0.0
    %4155 = vmatpush1.msra.mxu0 0.0
    %4156 = vmatprep.subr.mxu0 0.0
    %4157 = vmatpush1.msra.mxu0 0.0
    %4158 = vmatprep.subr.mxu0 0.0
    %4159 = vmatpush1.msra.mxu0 0.0
    %4160 = vmatprep.subr.mxu0 0.0
    %4161 = vmatpush1.msra.mxu0 0.0
    %4162 = vmatprep.subr.mxu0 0.0
    %4163 = vmatpush1.msra.mxu0 0.0
    %4164 = vmatprep.subr.mxu0 0.0
    %4165 = vmatpush1.msra.mxu0 0.0
    %4166 = vmatprep.subr.mxu0 0.0
    %4167 = vmatpush1.msra.mxu0 0.0
    %4168 = vmatprep.subr.mxu0 0.0
    %4169 = vmatpush1.msra.mxu0 0.0
    %4170 = vmatprep.subr.mxu0 0.0
    %4171 = vmatpush1.msra.mxu0 0.0
    %4172 = vmatprep.subr.mxu0 0.0
    %4173 = vmatpush1.msra.mxu0 0.0
    %4174 = vmatprep.subr.mxu0 0.0
    %4175 = vmatpush1.msra.mxu0 0.0
    %4176 = vmatprep.subr.mxu0 0.0
    %4177 = vmatpush1.msra.mxu0 0.0
    %4178 = vmatprep.subr.mxu0 0.0
    %4179 = vmatpush1.msra.mxu0 0.0
    %4180 = vmatprep.subr.mxu0 0.0
    %4181 = vmatpush1.msra.mxu0 0.0
    %4182 = vmatprep.subr.mxu0 0.0
    %4183 = vmatpush1.msra.mxu0 0.0
    %4184 = vmatprep.subr.mxu0 0.0
    %4185 = vmatpush1.msra.mxu0 0.0
    %4186 = vmatprep.mubr.f32.mxu0 0.0
    %4187 = vmatmul.mubr.f32.gmra.mrb[0].mxu0 %v4120
    %v4188 = vpop.f32.mrb[0].mxu0
    %v4189 = vadd.f32 %v4117, %v4188
    %v4190 = vpop.f32.mrb[0].mxu0
    %4191 = vdwg.mxu0
    %vm4192 = vcmask 41984
    %4193 = vst.msk [vmem:[#allocation12] sm:$0x3] %vm4192, %v4189
    // Predicated region
    $region98: #{_lambda_.1} parent=1 // pred_check
      _
    $region99: #{_lambda_.1} parent=1 // pred_check_branch
      %4195 = sbr.rel (0) target = $region101
    $region100: #{_lambda_.1} parent=1 // pred_region
      %s4197 = ssub.s32 32, 32
      %4198 = vsyncadd [#allocation6], %s4197
      %s4200 = sshll.u32 [#allocation12], 4
      %s4201 = int_to_ptr.vmem [resolvable:$true] %s4200
      %4203 = dma.vmem_to_hbm [thread:$0]  %s4201, 32, %s20, [#allocation6]
    $region101: #{_lambda_.1} parent=1 // pred_fallthru
      _
    // Predicated region
    $region102: #{_lambda_.1} parent=1 // pred_check
      _
    $region103: #{_lambda_.1} parent=1 // pred_check_branch
      %4205 = sbr.rel (0) target = $region105
    $region104: #{_lambda_.1} parent=1 // pred_region
      %4206 = dma.done [#allocation6], 32
    $region105: #{_lambda_.1} parent=1 // pred_fallthru
      _
    %4207 = vsyncpa [#allocation5], 1
    %4208 = vsyncpa [#allocation8], 1
    %4209 = vsyncpa [#allocation11], 1
    %4210 = vsyncpa [#allocation6], 1

</llo_original>
